<compile_context>
chip_gen: v5e
topology: v5e:2x2
jax: 0.10.0
libtpu: 0.0.40
codegen_flags: <defaults>
</compile_context>

<pallas_src>
import jax
import jax.numpy as jnp
from jax.experimental import pallas as pl
from jax.experimental.pallas import tpu as pltpu

FILTERS_2 = 16
KERNEL_2 = 5

# Geometry implied by the module's flatten (32x32 RGB input).
H0, C0 = 32, 3                 # input spatial / channels
K1, C1 = 5, 6                  # conv1
H1 = H0 - K1 + 1               # 28
P1 = H1 // 2                   # 14
K2, C2 = KERNEL_2, FILTERS_2   # conv2
H2 = P1 - K2 + 1               # 10
P2 = H2 // 2                   # 5
F1, F2, F3 = 100, 50, 10       # fc sizes


# ---------------------------------------------------------------------------
# Fused Pallas kernel (one grid step = one sample)
# ---------------------------------------------------------------------------
def _cnn_fused_kernel(x_ref, m1_ref, b1_ref, rp1_ref, cp1_ref,
                      s2_ref, m2_ref, b2_ref, rp2_ref, cp2_ref,
                      e5_ref, g1_ref, fb1_ref, w2_ref, fb2_ref,
                      w3_ref, fb3_ref, o_ref):
    f32 = jnp.float32

    def mm(a, b):
        return jnp.dot(a, b, preferred_element_type=f32)

    # conv1 + bias + relu : (28, 28*6) ; columns = wo*6 + cout
    h1 = jnp.zeros((H1, H1 * C1), f32)
    for i in range(K1):
        h1 = h1 + mm(x_ref[i:i + H1, :], m1_ref[i])
    h1 = jnp.maximum(h1 + b1_ref[...], 0.0)

    # pool1 (2x2 stride 2) : (14, 14*6)
    a1 = jnp.maximum(mm(h1, cp1_ref[0]), mm(h1, cp1_ref[1]))
    p1 = jnp.maximum(mm(rp1_ref[0], a1), mm(rp1_ref[1], a1))

    # conv2 + bias + relu : (10, 10*16)
    h2 = jnp.zeros((H2, H2 * C2), f32)
    for i in range(K2):
        h2 = h2 + mm(mm(s2_ref[i], p1), m2_ref[i])
    h2 = jnp.maximum(h2 + b2_ref[...], 0.0)

    # pool2 : (5, 5*16)
    a2 = jnp.maximum(mm(h2, cp2_ref[0]), mm(h2, cp2_ref[1]))
    p2 = jnp.maximum(mm(rp2_ref[0], a2), mm(rp2_ref[1], a2))

    # fc1 (+ PyTorch NCHW flatten folded into g1) + relu : (1, 100)
    y1 = fb1_ref[...]
    for r in range(P2):
        y1 = y1 + mm(mm(e5_ref[r], p2), g1_ref[r])
    y1 = jnp.maximum(y1, 0.0)

    # fc2 + relu, fc3 : (1, 50) -> (1, 10)
    y2 = jnp.maximum(mm(y1, w2_ref[...]) + fb2_ref[...], 0.0)
    o_ref[...] = mm(y2, w3_ref[...]) + fb3_ref[...]


# ---------------------------------------------------------------------------
# Parameters (PyTorch-style uniform fan-in init)
# ---------------------------------------------------------------------------
def init_params(key):
    ks = jax.random.split(key, 10)

    def u(k, shape, fan_in):
        bound = 1.0 / jnp.sqrt(float(fan_in))
        return jax.random.uniform(k, shape, jnp.float32, -bound, bound)

    return {
        "conv1_w": u(ks[0], (C1, C0, K1, K1), C0 * K1 * K1),
        "conv1_b": u(ks[1], (C1,), C0 * K1 * K1),
        "conv2_w": u(ks[2], (C2, C1, K2, K2), C1 * K2 * K2),
        "conv2_b": u(ks[3], (C2,), C1 * K2 * K2),
        "fc1_w": u(ks[4], (F1, P2 * P2 * C2), P2 * P2 * C2),
        "fc1_b": u(ks[5], (F1,), P2 * P2 * C2),
        "fc2_w": u(ks[6], (F2, F1), F1),
        "fc2_b": u(ks[7], (F2,), F1),
        "fc3_w": u(ks[8], (F3, F2), F2),
        "fc3_b": u(ks[9], (F3,), F2),
    }


def prepare_params(p):
    """One-time weight-layout preprocessing (hoisted out of the hot path)."""
    f32 = jnp.float32

    def conv_tap_mats(w, w_in):
        # w: (Cout, Cin, K, K) -> m[i]: (w_in*Cin, w_out*Cout) with
        # m[i][w*Cin+ci, wo*Cout+co] = w[co, ci, i, w-wo]  for 0 <= w-wo < K
        c_out, c_in, k, _ = w.shape
        w_out = w_in - k + 1
        a = jnp.arange(w_in)[None, :, None]
        o = jnp.arange(w_out)[None, None, :]
        j = jnp.arange(k)[:, None, None]
        u = (a == o + j).astype(f32)                                # (K, w_in, w_out)
        m = jnp.einsum("jao,pqij->iaqop", u, w.astype(f32))         # (K, w_in, Cin, w_out, Cout)
        return m.reshape(k, w_in * c_in, w_out * c_out)

    def pool_rows(h_in):
        h_out = h_in // 2
        ho = jnp.arange(h_out)[:, None]
        h = jnp.arange(h_in)[None, :]
        return jnp.stack([(h == 2 * ho).astype(f32),
                          (h == 2 * ho + 1).astype(f32)])           # (2, h_out, h_in)

    def pool_cols(w_in, c):
        w_out = w_in // 2
        w = jnp.arange(w_in)[:, None]
        wo = jnp.arange(w_out)[None, :]
        eye = jnp.eye(c, dtype=f32)
        return jnp.stack([jnp.kron((w == 2 * wo).astype(f32), eye),
                          jnp.kron((w == 2 * wo + 1).astype(f32), eye)])  # (2, w_in*c, w_out*c)

    def row_shifts(h_out, h_in, k):
        ho = jnp.arange(h_out)[None, :, None]
        h = jnp.arange(h_in)[None, None, :]
        i = jnp.arange(k)[:, None, None]
        return (h == ho + i).astype(f32)                            # (K, h_out, h_in)

    # fc1 with PyTorch flatten (index = c*25 + ho*5 + wo) folded in:
    # g1[ho, wo*C2 + c, n] = fc1_w[n, c*25 + ho*5 + wo]
    g1 = jnp.transpose(p["fc1_w"].reshape(F1, C2, P2, P2), (2, 3, 1, 0)).reshape(P2, P2 * C2, F1)

    return {
        "m1": conv_tap_mats(p["conv1_w"], H0),               # (5, 96, 168)
        "b1r": jnp.tile(p["conv1_b"], H1)[None, :],          # (1, 168)
        "rp1": pool_rows(H1),                                # (2, 14, 28)
        "cp1": pool_cols(H1, C1),                            # (2, 168, 84)
        "s2": row_shifts(H2, P1, K2),                        # (5, 10, 14)
        "m2": conv_tap_mats(p["conv2_w"], P1),               # (5, 84, 160)
        "b2r": jnp.tile(p["conv2_b"], H2)[None, :],          # (1, 160)
        "rp2": pool_rows(H2),                                # (2, 5, 10)
        "cp2": pool_cols(H2, C2),                            # (2, 160, 80)
        "e5": jnp.eye(P2, dtype=f32).reshape(P2, 1, P2),     # (5, 1, 5)
        "g1": g1.astype(f32),                                # (5, 80, 100)
        "fb1": p["fc1_b"][None, :].astype(f32),              # (1, 100)
        "w2t": p["fc2_w"].T.astype(f32),                     # (100, 50)
        "fb2": p["fc2_b"][None, :].astype(f32),              # (1, 50)
        "w3t": p["fc3_w"].T.astype(f32),                     # (50, 10)
        "fb3": p["fc3_b"][None, :].astype(f32),              # (1, 10)
    }


_OPERANDS = ("m1", "b1r", "rp1", "cp1", "s2", "m2", "b2r", "rp2", "cp2",
             "e5", "g1", "fb1", "w2t", "fb2", "w3t", "fb3")


# ---------------------------------------------------------------------------
# Forward (mirrors CNN.forward); one fused pallas_call
# ---------------------------------------------------------------------------
def cnn_forward(prep, x_nchw):
    B = x_nchw.shape[0]
    # NCHW -> (B, H, W*C): the only XLA-side layout op, applied to the raw input.
    x2 = jnp.transpose(x_nchw, (0, 2, 3, 1)).reshape(B, H0, H0 * C0)

    def _full(arr):
        nd = arr.ndim
        return pl.BlockSpec(arr.shape, lambda b: (0,) * nd)

    in_specs = [pl.BlockSpec((None, H0, H0 * C0), lambda b: (b, 0, 0))]
    operands = [x2]
    for name in _OPERANDS:
        arr = prep[name]
        in_specs.append(_full(arr))
        operands.append(arr)

    kwargs = {}
    cp_cls = getattr(pltpu, "CompilerParams", None) or getattr(pltpu, "TPUCompilerParams", None)
    if cp_cls is not None:
        kwargs["compiler_params"] = cp_cls(dimension_semantics=("parallel",))

    out = pl.pallas_call(
        _cnn_fused_kernel,
        grid=(B,),
        in_specs=in_specs,
        out_specs=pl.BlockSpec((None, 1, F3), lambda b: (b, 0, 0)),
        out_shape=jax.ShapeDtypeStruct((B, 1, F3), jnp.float32),
        **kwargs,
    )(*operands)
    return out.reshape(B, F3)


if __name__ == "__main__":
    key = jax.random.PRNGKey(0)
    k_params, k_x = jax.random.split(key)
    params = init_params(k_params)
    prep = prepare_params(params)   # weight-layout prep done once, off the hot path

    # the module's flatten implies 32x32 RGB inputs; batch=2
    x = jax.random.normal(k_x, (2, 3, 32, 32), dtype=jnp.float32)

    out = jax.jit(cnn_forward)(prep, x)
    out = jax.block_until_ready(out)
    assert out.shape == (2, 10), out.shape
    print("KERNEL_OK")
</pallas_src>

<mosaic_0001>
module attributes {stable_mosaic.version = 11 : i64} {
  func.func @_cnn_fused_kernel(%arg0: i32, %arg1: memref<1x32x96xf32, #tpu.memory_space<vmem>>, %arg2: memref<5x96x168xf32, #tpu.memory_space<vmem>>, %arg3: memref<1x168xf32, #tpu.memory_space<vmem>>, %arg4: memref<2x14x28xf32, #tpu.memory_space<vmem>>, %arg5: memref<2x168x84xf32, #tpu.memory_space<vmem>>, %arg6: memref<5x10x14xf32, #tpu.memory_space<vmem>>, %arg7: memref<5x84x160xf32, #tpu.memory_space<vmem>>, %arg8: memref<1x160xf32, #tpu.memory_space<vmem>>, %arg9: memref<2x5x10xf32, #tpu.memory_space<vmem>>, %arg10: memref<2x160x80xf32, #tpu.memory_space<vmem>>, %arg11: memref<5x1x5xf32, #tpu.memory_space<vmem>>, %arg12: memref<5x80x100xf32, #tpu.memory_space<vmem>>, %arg13: memref<1x100xf32, #tpu.memory_space<vmem>>, %arg14: memref<100x50xf32, #tpu.memory_space<vmem>>, %arg15: memref<1x50xf32, #tpu.memory_space<vmem>>, %arg16: memref<50x10xf32, #tpu.memory_space<vmem>>, %arg17: memref<1x10xf32, #tpu.memory_space<vmem>>, %arg18: memref<1x1x10xf32, #tpu.memory_space<vmem>>) attributes {dimension_semantics = [#tpu.dimension_semantics<parallel>], iteration_bounds = array<i64: 2>, scalar_prefetch = 0 : i64, scratch_operands = 0 : i64, tpu.core_type = #tpu.core_type<tc>, window_params = [{transform_indices = @transform_0, window_bounds = array<i64: 1, 32, 96>}, {pipeline_mode = #tpu.pipeline_mode<synchronous>, transform_indices = @transform_1, window_bounds = array<i64: 5, 96, 168>}, {pipeline_mode = #tpu.pipeline_mode<synchronous>, transform_indices = @transform_2, window_bounds = array<i64: 1, 168>}, {pipeline_mode = #tpu.pipeline_mode<synchronous>, transform_indices = @transform_3, window_bounds = array<i64: 2, 14, 28>}, {pipeline_mode = #tpu.pipeline_mode<synchronous>, transform_indices = @transform_4, window_bounds = array<i64: 2, 168, 84>}, {pipeline_mode = #tpu.pipeline_mode<synchronous>, transform_indices = @transform_5, window_bounds = array<i64: 5, 10, 14>}, {pipeline_mode = #tpu.pipeline_mode<synchronous>, transform_indices = @transform_6, window_bounds = array<i64: 5, 84, 160>}, {pipeline_mode = #tpu.pipeline_mode<synchronous>, transform_indices = @transform_7, window_bounds = array<i64: 1, 160>}, {pipeline_mode = #tpu.pipeline_mode<synchronous>, transform_indices = @transform_8, window_bounds = array<i64: 2, 5, 10>}, {pipeline_mode = #tpu.pipeline_mode<synchronous>, transform_indices = @transform_9, window_bounds = array<i64: 2, 160, 80>}, {pipeline_mode = #tpu.pipeline_mode<synchronous>, transform_indices = @transform_10, window_bounds = array<i64: 5, 1, 5>}, {pipeline_mode = #tpu.pipeline_mode<synchronous>, transform_indices = @transform_11, window_bounds = array<i64: 5, 80, 100>}, {pipeline_mode = #tpu.pipeline_mode<synchronous>, transform_indices = @transform_12, window_bounds = array<i64: 1, 100>}, {pipeline_mode = #tpu.pipeline_mode<synchronous>, transform_indices = @transform_13, window_bounds = array<i64: 100, 50>}, {pipeline_mode = #tpu.pipeline_mode<synchronous>, transform_indices = @transform_14, window_bounds = array<i64: 1, 50>}, {pipeline_mode = #tpu.pipeline_mode<synchronous>, transform_indices = @transform_15, window_bounds = array<i64: 50, 10>}, {pipeline_mode = #tpu.pipeline_mode<synchronous>, transform_indices = @transform_16, window_bounds = array<i64: 1, 10>}, {transform_indices = @transform_17, window_bounds = array<i64: 1, 1, 10>}]} {
    %cst = arith.constant 0.000000e+00 : f32
    %0 = vector.broadcast %cst : f32 to vector<28x168xf32>
    %c0 = arith.constant 0 : index
    %c0_0 = arith.constant 0 : index
    %c0_1 = arith.constant 0 : index
    %1 = vector.load %arg1[%c0, %c0_0, %c0_1] : memref<1x32x96xf32, #tpu.memory_space<vmem>>, vector<1x28x96xf32>
    %2 = vector.shape_cast %1 : vector<1x28x96xf32> to vector<28x96xf32>
    %c0_2 = arith.constant 0 : index
    %c0_3 = arith.constant 0 : index
    %c0_4 = arith.constant 0 : index
    %3 = vector.load %arg2[%c0_2, %c0_3, %c0_4] : memref<5x96x168xf32, #tpu.memory_space<vmem>>, vector<1x96x168xf32>
    %4 = vector.shape_cast %3 : vector<1x96x168xf32> to vector<96x168xf32>
    %cst_5 = arith.constant dense<0.000000e+00> : vector<28x168xf32>
    %5 = tpu.matmul %2, %4, %cst_5 {dimension_numbers = #tpu.dot_dimension_numbers<[1], [0], [0], [1], [0, 0, 1, 1], [], []>} : vector<28x96xf32>, vector<96x168xf32>, vector<28x168xf32> -> vector<28x168xf32>
    %6 = arith.addf %0, %5 : vector<28x168xf32>
    %c0_6 = arith.constant 0 : index
    %c1 = arith.constant 1 : index
    %c0_7 = arith.constant 0 : index
    %7 = vector.load %arg1[%c0_6, %c1, %c0_7] : memref<1x32x96xf32, #tpu.memory_space<vmem>>, vector<1x28x96xf32>
    %8 = vector.shape_cast %7 : vector<1x28x96xf32> to vector<28x96xf32>
    %c1_8 = arith.constant 1 : index
    %c0_9 = arith.constant 0 : index
    %c0_10 = arith.constant 0 : index
    %9 = vector.load %arg2[%c1_8, %c0_9, %c0_10] : memref<5x96x168xf32, #tpu.memory_space<vmem>>, vector<1x96x168xf32>
    %10 = vector.shape_cast %9 : vector<1x96x168xf32> to vector<96x168xf32>
    %cst_11 = arith.constant dense<0.000000e+00> : vector<28x168xf32>
    %11 = tpu.matmul %8, %10, %cst_11 {dimension_numbers = #tpu.dot_dimension_numbers<[1], [0], [0], [1], [0, 0, 1, 1], [], []>} : vector<28x96xf32>, vector<96x168xf32>, vector<28x168xf32> -> vector<28x168xf32>
    %12 = arith.addf %6, %11 : vector<28x168xf32>
    %c0_12 = arith.constant 0 : index
    %c2 = arith.constant 2 : index
    %c0_13 = arith.constant 0 : index
    %13 = vector.load %arg1[%c0_12, %c2, %c0_13] : memref<1x32x96xf32, #tpu.memory_space<vmem>>, vector<1x28x96xf32>
    %14 = vector.shape_cast %13 : vector<1x28x96xf32> to vector<28x96xf32>
    %c2_14 = arith.constant 2 : index
    %c0_15 = arith.constant 0 : index
    %c0_16 = arith.constant 0 : index
    %15 = vector.load %arg2[%c2_14, %c0_15, %c0_16] : memref<5x96x168xf32, #tpu.memory_space<vmem>>, vector<1x96x168xf32>
    %16 = vector.shape_cast %15 : vector<1x96x168xf32> to vector<96x168xf32>
    %cst_17 = arith.constant dense<0.000000e+00> : vector<28x168xf32>
    %17 = tpu.matmul %14, %16, %cst_17 {dimension_numbers = #tpu.dot_dimension_numbers<[1], [0], [0], [1], [0, 0, 1, 1], [], []>} : vector<28x96xf32>, vector<96x168xf32>, vector<28x168xf32> -> vector<28x168xf32>
    %18 = arith.addf %12, %17 : vector<28x168xf32>
    %c0_18 = arith.constant 0 : index
    %c3 = arith.constant 3 : index
    %c0_19 = arith.constant 0 : index
    %19 = vector.load %arg1[%c0_18, %c3, %c0_19] : memref<1x32x96xf32, #tpu.memory_space<vmem>>, vector<1x28x96xf32>
    %20 = vector.shape_cast %19 : vector<1x28x96xf32> to vector<28x96xf32>
    %c3_20 = arith.constant 3 : index
    %c0_21 = arith.constant 0 : index
    %c0_22 = arith.constant 0 : index
    %21 = vector.load %arg2[%c3_20, %c0_21, %c0_22] : memref<5x96x168xf32, #tpu.memory_space<vmem>>, vector<1x96x168xf32>
    %22 = vector.shape_cast %21 : vector<1x96x168xf32> to vector<96x168xf32>
    %cst_23 = arith.constant dense<0.000000e+00> : vector<28x168xf32>
    %23 = tpu.matmul %20, %22, %cst_23 {dimension_numbers = #tpu.dot_dimension_numbers<[1], [0], [0], [1], [0, 0, 1, 1], [], []>} : vector<28x96xf32>, vector<96x168xf32>, vector<28x168xf32> -> vector<28x168xf32>
    %24 = arith.addf %18, %23 : vector<28x168xf32>
    %c0_24 = arith.constant 0 : index
    %c4 = arith.constant 4 : index
    %c0_25 = arith.constant 0 : index
    %25 = vector.load %arg1[%c0_24, %c4, %c0_25] : memref<1x32x96xf32, #tpu.memory_space<vmem>>, vector<1x28x96xf32>
    %26 = vector.shape_cast %25 : vector<1x28x96xf32> to vector<28x96xf32>
    %c4_26 = arith.constant 4 : index
    %c0_27 = arith.constant 0 : index
    %c0_28 = arith.constant 0 : index
    %27 = vector.load %arg2[%c4_26, %c0_27, %c0_28] : memref<5x96x168xf32, #tpu.memory_space<vmem>>, vector<1x96x168xf32>
    %28 = vector.shape_cast %27 : vector<1x96x168xf32> to vector<96x168xf32>
    %cst_29 = arith.constant dense<0.000000e+00> : vector<28x168xf32>
    %29 = tpu.matmul %26, %28, %cst_29 {dimension_numbers = #tpu.dot_dimension_numbers<[1], [0], [0], [1], [0, 0, 1, 1], [], []>} : vector<28x96xf32>, vector<96x168xf32>, vector<28x168xf32> -> vector<28x168xf32>
    %30 = arith.addf %24, %29 : vector<28x168xf32>
    %c0_30 = arith.constant 0 : index
    %c0_31 = arith.constant 0 : index
    %31 = vector.load %arg3[%c0_30, %c0_31] : memref<1x168xf32, #tpu.memory_space<vmem>>, vector<1x168xf32>
    %32 = vector.broadcast %31 : vector<1x168xf32> to vector<28x168xf32>
    %33 = arith.addf %30, %32 : vector<28x168xf32>
    %cst_32 = arith.constant 0.000000e+00 : f32
    %34 = vector.broadcast %cst_32 : f32 to vector<28x168xf32>
    %35 = arith.maximumf %33, %34 : vector<28x168xf32>
    %c0_33 = arith.constant 0 : index
    %c0_34 = arith.constant 0 : index
    %c0_35 = arith.constant 0 : index
    %36 = vector.load %arg5[%c0_33, %c0_34, %c0_35] : memref<2x168x84xf32, #tpu.memory_space<vmem>>, vector<1x168x84xf32>
    %37 = vector.shape_cast %36 : vector<1x168x84xf32> to vector<168x84xf32>
    %cst_36 = arith.constant dense<0.000000e+00> : vector<28x84xf32>
    %38 = tpu.matmul %35, %37, %cst_36 {dimension_numbers = #tpu.dot_dimension_numbers<[1], [0], [0], [1], [0, 0, 1, 1], [], []>} : vector<28x168xf32>, vector<168x84xf32>, vector<28x84xf32> -> vector<28x84xf32>
    %c1_37 = arith.constant 1 : index
    %c0_38 = arith.constant 0 : index
    %c0_39 = arith.constant 0 : index
    %39 = vector.load %arg5[%c1_37, %c0_38, %c0_39] : memref<2x168x84xf32, #tpu.memory_space<vmem>>, vector<1x168x84xf32>
    %40 = vector.shape_cast %39 : vector<1x168x84xf32> to vector<168x84xf32>
    %cst_40 = arith.constant dense<0.000000e+00> : vector<28x84xf32>
    %41 = tpu.matmul %35, %40, %cst_40 {dimension_numbers = #tpu.dot_dimension_numbers<[1], [0], [0], [1], [0, 0, 1, 1], [], []>} : vector<28x168xf32>, vector<168x84xf32>, vector<28x84xf32> -> vector<28x84xf32>
    %42 = arith.maximumf %38, %41 : vector<28x84xf32>
    %c0_41 = arith.constant 0 : index
    %c0_42 = arith.constant 0 : index
    %c0_43 = arith.constant 0 : index
    %43 = vector.load %arg4[%c0_41, %c0_42, %c0_43] : memref<2x14x28xf32, #tpu.memory_space<vmem>>, vector<1x14x28xf32>
    %44 = vector.shape_cast %43 : vector<1x14x28xf32> to vector<14x28xf32>
    %cst_44 = arith.constant dense<0.000000e+00> : vector<14x84xf32>
    %45 = tpu.matmul %44, %42, %cst_44 {dimension_numbers = #tpu.dot_dimension_numbers<[1], [0], [0], [1], [0, 0, 1, 1], [], []>} : vector<14x28xf32>, vector<28x84xf32>, vector<14x84xf32> -> vector<14x84xf32>
    %c1_45 = arith.constant 1 : index
    %c0_46 = arith.constant 0 : index
    %c0_47 = arith.constant 0 : index
    %46 = vector.load %arg4[%c1_45, %c0_46, %c0_47] : memref<2x14x28xf32, #tpu.memory_space<vmem>>, vector<1x14x28xf32>
    %47 = vector.shape_cast %46 : vector<1x14x28xf32> to vector<14x28xf32>
    %cst_48 = arith.constant dense<0.000000e+00> : vector<14x84xf32>
    %48 = tpu.matmul %47, %42, %cst_48 {dimension_numbers = #tpu.dot_dimension_numbers<[1], [0], [0], [1], [0, 0, 1, 1], [], []>} : vector<14x28xf32>, vector<28x84xf32>, vector<14x84xf32> -> vector<14x84xf32>
    %49 = arith.maximumf %45, %48 : vector<14x84xf32>
    %cst_49 = arith.constant 0.000000e+00 : f32
    %50 = vector.broadcast %cst_49 : f32 to vector<10x160xf32>
    %c0_50 = arith.constant 0 : index
    %c0_51 = arith.constant 0 : index
    %c0_52 = arith.constant 0 : index
    %51 = vector.load %arg6[%c0_50, %c0_51, %c0_52] : memref<5x10x14xf32, #tpu.memory_space<vmem>>, vector<1x10x14xf32>
    %52 = vector.shape_cast %51 : vector<1x10x14xf32> to vector<10x14xf32>
    %cst_53 = arith.constant dense<0.000000e+00> : vector<10x84xf32>
    %53 = tpu.matmul %52, %49, %cst_53 {dimension_numbers = #tpu.dot_dimension_numbers<[1], [0], [0], [1], [0, 0, 1, 1], [], []>} : vector<10x14xf32>, vector<14x84xf32>, vector<10x84xf32> -> vector<10x84xf32>
    %c0_54 = arith.constant 0 : index
    %c0_55 = arith.constant 0 : index
    %c0_56 = arith.constant 0 : index
    %54 = vector.load %arg7[%c0_54, %c0_55, %c0_56] : memref<5x84x160xf32, #tpu.memory_space<vmem>>, vector<1x84x160xf32>
    %55 = vector.shape_cast %54 : vector<1x84x160xf32> to vector<84x160xf32>
    %cst_57 = arith.constant dense<0.000000e+00> : vector<10x160xf32>
    %56 = tpu.matmul %53, %55, %cst_57 {dimension_numbers = #tpu.dot_dimension_numbers<[1], [0], [0], [1], [0, 0, 1, 1], [], []>} : vector<10x84xf32>, vector<84x160xf32>, vector<10x160xf32> -> vector<10x160xf32>
    %57 = arith.addf %50, %56 : vector<10x160xf32>
    %c1_58 = arith.constant 1 : index
    %c0_59 = arith.constant 0 : index
    %c0_60 = arith.constant 0 : index
    %58 = vector.load %arg6[%c1_58, %c0_59, %c0_60] : memref<5x10x14xf32, #tpu.memory_space<vmem>>, vector<1x10x14xf32>
    %59 = vector.shape_cast %58 : vector<1x10x14xf32> to vector<10x14xf32>
    %cst_61 = arith.constant dense<0.000000e+00> : vector<10x84xf32>
    %60 = tpu.matmul %59, %49, %cst_61 {dimension_numbers = #tpu.dot_dimension_numbers<[1], [0], [0], [1], [0, 0, 1, 1], [], []>} : vector<10x14xf32>, vector<14x84xf32>, vector<10x84xf32> -> vector<10x84xf32>
    %c1_62 = arith.constant 1 : index
    %c0_63 = arith.constant 0 : index
    %c0_64 = arith.constant 0 : index
    %61 = vector.load %arg7[%c1_62, %c0_63, %c0_64] : memref<5x84x160xf32, #tpu.memory_space<vmem>>, vector<1x84x160xf32>
    %62 = vector.shape_cast %61 : vector<1x84x160xf32> to vector<84x160xf32>
    %cst_65 = arith.constant dense<0.000000e+00> : vector<10x160xf32>
    %63 = tpu.matmul %60, %62, %cst_65 {dimension_numbers = #tpu.dot_dimension_numbers<[1], [0], [0], [1], [0, 0, 1, 1], [], []>} : vector<10x84xf32>, vector<84x160xf32>, vector<10x160xf32> -> vector<10x160xf32>
    %64 = arith.addf %57, %63 : vector<10x160xf32>
    %c2_66 = arith.constant 2 : index
    %c0_67 = arith.constant 0 : index
    %c0_68 = arith.constant 0 : index
    %65 = vector.load %arg6[%c2_66, %c0_67, %c0_68] : memref<5x10x14xf32, #tpu.memory_space<vmem>>, vector<1x10x14xf32>
    %66 = vector.shape_cast %65 : vector<1x10x14xf32> to vector<10x14xf32>
    %cst_69 = arith.constant dense<0.000000e+00> : vector<10x84xf32>
    %67 = tpu.matmul %66, %49, %cst_69 {dimension_numbers = #tpu.dot_dimension_numbers<[1], [0], [0], [1], [0, 0, 1, 1], [], []>} : vector<10x14xf32>, vector<14x84xf32>, vector<10x84xf32> -> vector<10x84xf32>
    %c2_70 = arith.constant 2 : index
    %c0_71 = arith.constant 0 : index
    %c0_72 = arith.constant 0 : index
    %68 = vector.load %arg7[%c2_70, %c0_71, %c0_72] : memref<5x84x160xf32, #tpu.memory_space<vmem>>, vector<1x84x160xf32>
    %69 = vector.shape_cast %68 : vector<1x84x160xf32> to vector<84x160xf32>
    %cst_73 = arith.constant dense<0.000000e+00> : vector<10x160xf32>
    %70 = tpu.matmul %67, %69, %cst_73 {dimension_numbers = #tpu.dot_dimension_numbers<[1], [0], [0], [1], [0, 0, 1, 1], [], []>} : vector<10x84xf32>, vector<84x160xf32>, vector<10x160xf32> -> vector<10x160xf32>
    %71 = arith.addf %64, %70 : vector<10x160xf32>
    %c3_74 = arith.constant 3 : index
    %c0_75 = arith.constant 0 : index
    %c0_76 = arith.constant 0 : index
    %72 = vector.load %arg6[%c3_74, %c0_75, %c0_76] : memref<5x10x14xf32, #tpu.memory_space<vmem>>, vector<1x10x14xf32>
    %73 = vector.shape_cast %72 : vector<1x10x14xf32> to vector<10x14xf32>
    %cst_77 = arith.constant dense<0.000000e+00> : vector<10x84xf32>
    %74 = tpu.matmul %73, %49, %cst_77 {dimension_numbers = #tpu.dot_dimension_numbers<[1], [0], [0], [1], [0, 0, 1, 1], [], []>} : vector<10x14xf32>, vector<14x84xf32>, vector<10x84xf32> -> vector<10x84xf32>
    %c3_78 = arith.constant 3 : index
    %c0_79 = arith.constant 0 : index
    %c0_80 = arith.constant 0 : index
    %75 = vector.load %arg7[%c3_78, %c0_79, %c0_80] : memref<5x84x160xf32, #tpu.memory_space<vmem>>, vector<1x84x160xf32>
    %76 = vector.shape_cast %75 : vector<1x84x160xf32> to vector<84x160xf32>
    %cst_81 = arith.constant dense<0.000000e+00> : vector<10x160xf32>
    %77 = tpu.matmul %74, %76, %cst_81 {dimension_numbers = #tpu.dot_dimension_numbers<[1], [0], [0], [1], [0, 0, 1, 1], [], []>} : vector<10x84xf32>, vector<84x160xf32>, vector<10x160xf32> -> vector<10x160xf32>
    %78 = arith.addf %71, %77 : vector<10x160xf32>
    %c4_82 = arith.constant 4 : index
    %c0_83 = arith.constant 0 : index
    %c0_84 = arith.constant 0 : index
    %79 = vector.load %arg6[%c4_82, %c0_83, %c0_84] : memref<5x10x14xf32, #tpu.memory_space<vmem>>, vector<1x10x14xf32>
    %80 = vector.shape_cast %79 : vector<1x10x14xf32> to vector<10x14xf32>
    %cst_85 = arith.constant dense<0.000000e+00> : vector<10x84xf32>
    %81 = tpu.matmul %80, %49, %cst_85 {dimension_numbers = #tpu.dot_dimension_numbers<[1], [0], [0], [1], [0, 0, 1, 1], [], []>} : vector<10x14xf32>, vector<14x84xf32>, vector<10x84xf32> -> vector<10x84xf32>
    %c4_86 = arith.constant 4 : index
    %c0_87 = arith.constant 0 : index
    %c0_88 = arith.constant 0 : index
    %82 = vector.load %arg7[%c4_86, %c0_87, %c0_88] : memref<5x84x160xf32, #tpu.memory_space<vmem>>, vector<1x84x160xf32>
    %83 = vector.shape_cast %82 : vector<1x84x160xf32> to vector<84x160xf32>
    %cst_89 = arith.constant dense<0.000000e+00> : vector<10x160xf32>
    %84 = tpu.matmul %81, %83, %cst_89 {dimension_numbers = #tpu.dot_dimension_numbers<[1], [0], [0], [1], [0, 0, 1, 1], [], []>} : vector<10x84xf32>, vector<84x160xf32>, vector<10x160xf32> -> vector<10x160xf32>
    %85 = arith.addf %78, %84 : vector<10x160xf32>
    %c0_90 = arith.constant 0 : index
    %c0_91 = arith.constant 0 : index
    %86 = vector.load %arg8[%c0_90, %c0_91] : memref<1x160xf32, #tpu.memory_space<vmem>>, vector<1x160xf32>
    %87 = vector.broadcast %86 : vector<1x160xf32> to vector<10x160xf32>
    %88 = arith.addf %85, %87 : vector<10x160xf32>
    %cst_92 = arith.constant 0.000000e+00 : f32
    %89 = vector.broadcast %cst_92 : f32 to vector<10x160xf32>
    %90 = arith.maximumf %88, %89 : vector<10x160xf32>
    %c0_93 = arith.constant 0 : index
    %c0_94 = arith.constant 0 : index
    %c0_95 = arith.constant 0 : index
    %91 = vector.load %arg10[%c0_93, %c0_94, %c0_95] : memref<2x160x80xf32, #tpu.memory_space<vmem>>, vector<1x160x80xf32>
    %92 = vector.shape_cast %91 : vector<1x160x80xf32> to vector<160x80xf32>
    %cst_96 = arith.constant dense<0.000000e+00> : vector<10x80xf32>
    %93 = tpu.matmul %90, %92, %cst_96 {dimension_numbers = #tpu.dot_dimension_numbers<[1], [0], [0], [1], [0, 0, 1, 1], [], []>} : vector<10x160xf32>, vector<160x80xf32>, vector<10x80xf32> -> vector<10x80xf32>
    %c1_97 = arith.constant 1 : index
    %c0_98 = arith.constant 0 : index
    %c0_99 = arith.constant 0 : index
    %94 = vector.load %arg10[%c1_97, %c0_98, %c0_99] : memref<2x160x80xf32, #tpu.memory_space<vmem>>, vector<1x160x80xf32>
    %95 = vector.shape_cast %94 : vector<1x160x80xf32> to vector<160x80xf32>
    %cst_100 = arith.constant dense<0.000000e+00> : vector<10x80xf32>
    %96 = tpu.matmul %90, %95, %cst_100 {dimension_numbers = #tpu.dot_dimension_numbers<[1], [0], [0], [1], [0, 0, 1, 1], [], []>} : vector<10x160xf32>, vector<160x80xf32>, vector<10x80xf32> -> vector<10x80xf32>
    %97 = arith.maximumf %93, %96 : vector<10x80xf32>
    %c0_101 = arith.constant 0 : index
    %c0_102 = arith.constant 0 : index
    %c0_103 = arith.constant 0 : index
    %98 = vector.load %arg9[%c0_101, %c0_102, %c0_103] : memref<2x5x10xf32, #tpu.memory_space<vmem>>, vector<1x5x10xf32>
    %99 = vector.shape_cast %98 : vector<1x5x10xf32> to vector<5x10xf32>
    %cst_104 = arith.constant dense<0.000000e+00> : vector<5x80xf32>
    %100 = tpu.matmul %99, %97, %cst_104 {dimension_numbers = #tpu.dot_dimension_numbers<[1], [0], [0], [1], [0, 0, 1, 1], [], []>} : vector<5x10xf32>, vector<10x80xf32>, vector<5x80xf32> -> vector<5x80xf32>
    %c1_105 = arith.constant 1 : index
    %c0_106 = arith.constant 0 : index
    %c0_107 = arith.constant 0 : index
    %101 = vector.load %arg9[%c1_105, %c0_106, %c0_107] : memref<2x5x10xf32, #tpu.memory_space<vmem>>, vector<1x5x10xf32>
    %102 = vector.shape_cast %101 : vector<1x5x10xf32> to vector<5x10xf32>
    %cst_108 = arith.constant dense<0.000000e+00> : vector<5x80xf32>
    %103 = tpu.matmul %102, %97, %cst_108 {dimension_numbers = #tpu.dot_dimension_numbers<[1], [0], [0], [1], [0, 0, 1, 1], [], []>} : vector<5x10xf32>, vector<10x80xf32>, vector<5x80xf32> -> vector<5x80xf32>
    %104 = arith.maximumf %100, %103 : vector<5x80xf32>
    %c0_109 = arith.constant 0 : index
    %c0_110 = arith.constant 0 : index
    %105 = vector.load %arg13[%c0_109, %c0_110] : memref<1x100xf32, #tpu.memory_space<vmem>>, vector<1x100xf32>
    %c0_111 = arith.constant 0 : index
    %c0_112 = arith.constant 0 : index
    %c0_113 = arith.constant 0 : index
    %106 = vector.load %arg11[%c0_111, %c0_112, %c0_113] : memref<5x1x5xf32, #tpu.memory_space<vmem>>, vector<1x1x5xf32>
    %107 = vector.shape_cast %106 : vector<1x1x5xf32> to vector<1x5xf32>
    %cst_114 = arith.constant dense<0.000000e+00> : vector<1x80xf32>
    %108 = tpu.matmul %107, %104, %cst_114 {dimension_numbers = #tpu.dot_dimension_numbers<[1], [0], [0], [1], [0, 0, 1, 1], [], []>} : vector<1x5xf32>, vector<5x80xf32>, vector<1x80xf32> -> vector<1x80xf32>
    %c0_115 = arith.constant 0 : index
    %c0_116 = arith.constant 0 : index
    %c0_117 = arith.constant 0 : index
    %109 = vector.load %arg12[%c0_115, %c0_116, %c0_117] : memref<5x80x100xf32, #tpu.memory_space<vmem>>, vector<1x80x100xf32>
    %110 = vector.shape_cast %109 : vector<1x80x100xf32> to vector<80x100xf32>
    %cst_118 = arith.constant dense<0.000000e+00> : vector<1x100xf32>
    %111 = tpu.matmul %108, %110, %cst_118 {dimension_numbers = #tpu.dot_dimension_numbers<[1], [0], [0], [1], [0, 0, 1, 1], [], []>} : vector<1x80xf32>, vector<80x100xf32>, vector<1x100xf32> -> vector<1x100xf32>
    %112 = arith.addf %105, %111 : vector<1x100xf32>
    %c1_119 = arith.constant 1 : index
    %c0_120 = arith.constant 0 : index
    %c0_121 = arith.constant 0 : index
    %113 = vector.load %arg11[%c1_119, %c0_120, %c0_121] : memref<5x1x5xf32, #tpu.memory_space<vmem>>, vector<1x1x5xf32>
    %114 = vector.shape_cast %113 : vector<1x1x5xf32> to vector<1x5xf32>
    %cst_122 = arith.constant dense<0.000000e+00> : vector<1x80xf32>
    %115 = tpu.matmul %114, %104, %cst_122 {dimension_numbers = #tpu.dot_dimension_numbers<[1], [0], [0], [1], [0, 0, 1, 1], [], []>} : vector<1x5xf32>, vector<5x80xf32>, vector<1x80xf32> -> vector<1x80xf32>
    %c1_123 = arith.constant 1 : index
    %c0_124 = arith.constant 0 : index
    %c0_125 = arith.constant 0 : index
    %116 = vector.load %arg12[%c1_123, %c0_124, %c0_125] : memref<5x80x100xf32, #tpu.memory_space<vmem>>, vector<1x80x100xf32>
    %117 = vector.shape_cast %116 : vector<1x80x100xf32> to vector<80x100xf32>
    %cst_126 = arith.constant dense<0.000000e+00> : vector<1x100xf32>
    %118 = tpu.matmul %115, %117, %cst_126 {dimension_numbers = #tpu.dot_dimension_numbers<[1], [0], [0], [1], [0, 0, 1, 1], [], []>} : vector<1x80xf32>, vector<80x100xf32>, vector<1x100xf32> -> vector<1x100xf32>
    %119 = arith.addf %112, %118 : vector<1x100xf32>
    %c2_127 = arith.constant 2 : index
    %c0_128 = arith.constant 0 : index
    %c0_129 = arith.constant 0 : index
    %120 = vector.load %arg11[%c2_127, %c0_128, %c0_129] : memref<5x1x5xf32, #tpu.memory_space<vmem>>, vector<1x1x5xf32>
    %121 = vector.shape_cast %120 : vector<1x1x5xf32> to vector<1x5xf32>
    %cst_130 = arith.constant dense<0.000000e+00> : vector<1x80xf32>
    %122 = tpu.matmul %121, %104, %cst_130 {dimension_numbers = #tpu.dot_dimension_numbers<[1], [0], [0], [1], [0, 0, 1, 1], [], []>} : vector<1x5xf32>, vector<5x80xf32>, vector<1x80xf32> -> vector<1x80xf32>
    %c2_131 = arith.constant 2 : index
    %c0_132 = arith.constant 0 : index
    %c0_133 = arith.constant 0 : index
    %123 = vector.load %arg12[%c2_131, %c0_132, %c0_133] : memref<5x80x100xf32, #tpu.memory_space<vmem>>, vector<1x80x100xf32>
    %124 = vector.shape_cast %123 : vector<1x80x100xf32> to vector<80x100xf32>
    %cst_134 = arith.constant dense<0.000000e+00> : vector<1x100xf32>
    %125 = tpu.matmul %122, %124, %cst_134 {dimension_numbers = #tpu.dot_dimension_numbers<[1], [0], [0], [1], [0, 0, 1, 1], [], []>} : vector<1x80xf32>, vector<80x100xf32>, vector<1x100xf32> -> vector<1x100xf32>
    %126 = arith.addf %119, %125 : vector<1x100xf32>
    %c3_135 = arith.constant 3 : index
    %c0_136 = arith.constant 0 : index
    %c0_137 = arith.constant 0 : index
    %127 = vector.load %arg11[%c3_135, %c0_136, %c0_137] : memref<5x1x5xf32, #tpu.memory_space<vmem>>, vector<1x1x5xf32>
    %128 = vector.shape_cast %127 : vector<1x1x5xf32> to vector<1x5xf32>
    %cst_138 = arith.constant dense<0.000000e+00> : vector<1x80xf32>
    %129 = tpu.matmul %128, %104, %cst_138 {dimension_numbers = #tpu.dot_dimension_numbers<[1], [0], [0], [1], [0, 0, 1, 1], [], []>} : vector<1x5xf32>, vector<5x80xf32>, vector<1x80xf32> -> vector<1x80xf32>
    %c3_139 = arith.constant 3 : index
    %c0_140 = arith.constant 0 : index
    %c0_141 = arith.constant 0 : index
    %130 = vector.load %arg12[%c3_139, %c0_140, %c0_141] : memref<5x80x100xf32, #tpu.memory_space<vmem>>, vector<1x80x100xf32>
    %131 = vector.shape_cast %130 : vector<1x80x100xf32> to vector<80x100xf32>
    %cst_142 = arith.constant dense<0.000000e+00> : vector<1x100xf32>
    %132 = tpu.matmul %129, %131, %cst_142 {dimension_numbers = #tpu.dot_dimension_numbers<[1], [0], [0], [1], [0, 0, 1, 1], [], []>} : vector<1x80xf32>, vector<80x100xf32>, vector<1x100xf32> -> vector<1x100xf32>
    %133 = arith.addf %126, %132 : vector<1x100xf32>
    %c4_143 = arith.constant 4 : index
    %c0_144 = arith.constant 0 : index
    %c0_145 = arith.constant 0 : index
    %134 = vector.load %arg11[%c4_143, %c0_144, %c0_145] : memref<5x1x5xf32, #tpu.memory_space<vmem>>, vector<1x1x5xf32>
    %135 = vector.shape_cast %134 : vector<1x1x5xf32> to vector<1x5xf32>
    %cst_146 = arith.constant dense<0.000000e+00> : vector<1x80xf32>
    %136 = tpu.matmul %135, %104, %cst_146 {dimension_numbers = #tpu.dot_dimension_numbers<[1], [0], [0], [1], [0, 0, 1, 1], [], []>} : vector<1x5xf32>, vector<5x80xf32>, vector<1x80xf32> -> vector<1x80xf32>
    %c4_147 = arith.constant 4 : index
    %c0_148 = arith.constant 0 : index
    %c0_149 = arith.constant 0 : index
    %137 = vector.load %arg12[%c4_147, %c0_148, %c0_149] : memref<5x80x100xf32, #tpu.memory_space<vmem>>, vector<1x80x100xf32>
    %138 = vector.shape_cast %137 : vector<1x80x100xf32> to vector<80x100xf32>
    %cst_150 = arith.constant dense<0.000000e+00> : vector<1x100xf32>
    %139 = tpu.matmul %136, %138, %cst_150 {dimension_numbers = #tpu.dot_dimension_numbers<[1], [0], [0], [1], [0, 0, 1, 1], [], []>} : vector<1x80xf32>, vector<80x100xf32>, vector<1x100xf32> -> vector<1x100xf32>
    %140 = arith.addf %133, %139 : vector<1x100xf32>
    %cst_151 = arith.constant 0.000000e+00 : f32
    %141 = vector.broadcast %cst_151 : f32 to vector<1x100xf32>
    %142 = arith.maximumf %140, %141 : vector<1x100xf32>
    %c0_152 = arith.constant 0 : index
    %c0_153 = arith.constant 0 : index
    %143 = vector.load %arg14[%c0_152, %c0_153] : memref<100x50xf32, #tpu.memory_space<vmem>>, vector<100x50xf32>
    %cst_154 = arith.constant dense<0.000000e+00> : vector<1x50xf32>
    %144 = tpu.matmul %142, %143, %cst_154 {dimension_numbers = #tpu.dot_dimension_numbers<[1], [0], [0], [1], [0, 0, 1, 1], [], []>} : vector<1x100xf32>, vector<100x50xf32>, vector<1x50xf32> -> vector<1x50xf32>
    %c0_155 = arith.constant 0 : index
    %c0_156 = arith.constant 0 : index
    %145 = vector.load %arg15[%c0_155, %c0_156] : memref<1x50xf32, #tpu.memory_space<vmem>>, vector<1x50xf32>
    %146 = arith.addf %144, %145 : vector<1x50xf32>
    %cst_157 = arith.constant 0.000000e+00 : f32
    %147 = vector.broadcast %cst_157 : f32 to vector<1x50xf32>
    %148 = arith.maximumf %146, %147 : vector<1x50xf32>
    %c0_158 = arith.constant 0 : index
    %c0_159 = arith.constant 0 : index
    %149 = vector.load %arg16[%c0_158, %c0_159] : memref<50x10xf32, #tpu.memory_space<vmem>>, vector<50x10xf32>
    %cst_160 = arith.constant dense<0.000000e+00> : vector<1x10xf32>
    %150 = tpu.matmul %148, %149, %cst_160 {dimension_numbers = #tpu.dot_dimension_numbers<[1], [0], [0], [1], [0, 0, 1, 1], [], []>} : vector<1x50xf32>, vector<50x10xf32>, vector<1x10xf32> -> vector<1x10xf32>
    %c0_161 = arith.constant 0 : index
    %c0_162 = arith.constant 0 : index
    %151 = vector.load %arg17[%c0_161, %c0_162] : memref<1x10xf32, #tpu.memory_space<vmem>>, vector<1x10xf32>
    %152 = arith.addf %150, %151 : vector<1x10xf32>
    %c0_163 = arith.constant 0 : index
    %c0_164 = arith.constant 0 : index
    %c0_165 = arith.constant 0 : index
    %153 = vector.load %arg18[%c0_163, %c0_164, %c0_165] : memref<1x1x10xf32, #tpu.memory_space<vmem>>, vector<1x1x10xf32>
    %154 = vector.shape_cast %153 : vector<1x1x10xf32> to vector<1x10xf32>
    %155 = vector.shape_cast %152 : vector<1x10xf32> to vector<1x1x10xf32>
    tpu.vector_store %arg18[%c0_163, %c0_164, %c0_165], %155 {strides = array<i32>} : memref<1x1x10xf32, #tpu.memory_space<vmem>>, vector<1x1x10xf32>,
    return
  }
  func.func @transform_0(%arg0: i32) -> (i32, i32, i32) {
    %c0_i32 = arith.constant 0 : i32
    %c0_i32_0 = arith.constant 0 : i32
    %c0_i32_1 = arith.constant 0 : i32
    return %arg0, %c0_i32, %c0_i32_0 : i32, i32, i32
  }
  func.func @transform_1(%arg0: i32) -> (i32, i32, i32) {
    %c0_i32 = arith.constant 0 : i32
    %c0_i32_0 = arith.constant 0 : i32
    %c0_i32_1 = arith.constant 0 : i32
    %c0_i32_2 = arith.constant 0 : i32
    return %c0_i32, %c0_i32_0, %c0_i32_1 : i32, i32, i32
  }
  func.func @transform_2(%arg0: i32) -> (i32, i32) {
    %c0_i32 = arith.constant 0 : i32
    %c0_i32_0 = arith.constant 0 : i32
    %c0_i32_1 = arith.constant 0 : i32
    return %c0_i32, %c0_i32_0 : i32, i32
  }
  func.func @transform_3(%arg0: i32) -> (i32, i32, i32) {
    %c0_i32 = arith.constant 0 : i32
    %c0_i32_0 = arith.constant 0 : i32
    %c0_i32_1 = arith.constant 0 : i32
    %c0_i32_2 = arith.constant 0 : i32
    return %c0_i32, %c0_i32_0, %c0_i32_1 : i32, i32, i32
  }
  func.func @transform_4(%arg0: i32) -> (i32, i32, i32) {
    %c0_i32 = arith.constant 0 : i32
    %c0_i32_0 = arith.constant 0 : i32
    %c0_i32_1 = arith.constant 0 : i32
    %c0_i32_2 = arith.constant 0 : i32
    return %c0_i32, %c0_i32_0, %c0_i32_1 : i32, i32, i32
  }
  func.func @transform_5(%arg0: i32) -> (i32, i32, i32) {
    %c0_i32 = arith.constant 0 : i32
    %c0_i32_0 = arith.constant 0 : i32
    %c0_i32_1 = arith.constant 0 : i32
    %c0_i32_2 = arith.constant 0 : i32
    return %c0_i32, %c0_i32_0, %c0_i32_1 : i32, i32, i32
  }
  func.func @transform_6(%arg0: i32) -> (i32, i32, i32) {
    %c0_i32 = arith.constant 0 : i32
    %c0_i32_0 = arith.constant 0 : i32
    %c0_i32_1 = arith.constant 0 : i32
    %c0_i32_2 = arith.constant 0 : i32
    return %c0_i32, %c0_i32_0, %c0_i32_1 : i32, i32, i32
  }
  func.func @transform_7(%arg0: i32) -> (i32, i32) {
    %c0_i32 = arith.constant 0 : i32
    %c0_i32_0 = arith.constant 0 : i32
    %c0_i32_1 = arith.constant 0 : i32
    return %c0_i32, %c0_i32_0 : i32, i32
  }
  func.func @transform_8(%arg0: i32) -> (i32, i32, i32) {
    %c0_i32 = arith.constant 0 : i32
    %c0_i32_0 = arith.constant 0 : i32
    %c0_i32_1 = arith.constant 0 : i32
    %c0_i32_2 = arith.constant 0 : i32
    return %c0_i32, %c0_i32_0, %c0_i32_1 : i32, i32, i32
  }
  func.func @transform_9(%arg0: i32) -> (i32, i32, i32) {
    %c0_i32 = arith.constant 0 : i32
    %c0_i32_0 = arith.constant 0 : i32
    %c0_i32_1 = arith.constant 0 : i32
    %c0_i32_2 = arith.constant 0 : i32
    return %c0_i32, %c0_i32_0, %c0_i32_1 : i32, i32, i32
  }
  func.func @transform_10(%arg0: i32) -> (i32, i32, i32) {
    %c0_i32 = arith.constant 0 : i32
    %c0_i32_0 = arith.constant 0 : i32
    %c0_i32_1 = arith.constant 0 : i32
    %c0_i32_2 = arith.constant 0 : i32
    return %c0_i32, %c0_i32_0, %c0_i32_1 : i32, i32, i32
  }
  func.func @transform_11(%arg0: i32) -> (i32, i32, i32) {
    %c0_i32 = arith.constant 0 : i32
    %c0_i32_0 = arith.constant 0 : i32
    %c0_i32_1 = arith.constant 0 : i32
    %c0_i32_2 = arith.constant 0 : i32
    return %c0_i32, %c0_i32_0, %c0_i32_1 : i32, i32, i32
  }
  func.func @transform_12(%arg0: i32) -> (i32, i32) {
    %c0_i32 = arith.constant 0 : i32
    %c0_i32_0 = arith.constant 0 : i32
    %c0_i32_1 = arith.constant 0 : i32
    return %c0_i32, %c0_i32_0 : i32, i32
  }
  func.func @transform_13(%arg0: i32) -> (i32, i32) {
    %c0_i32 = arith.constant 0 : i32
    %c0_i32_0 = arith.constant 0 : i32
    %c0_i32_1 = arith.constant 0 : i32
    return %c0_i32, %c0_i32_0 : i32, i32
  }
  func.func @transform_14(%arg0: i32) -> (i32, i32) {
    %c0_i32 = arith.constant 0 : i32
    %c0_i32_0 = arith.constant 0 : i32
    %c0_i32_1 = arith.constant 0 : i32
    return %c0_i32, %c0_i32_0 : i32, i32
  }
  func.func @transform_15(%arg0: i32) -> (i32, i32) {
    %c0_i32 = arith.constant 0 : i32
    %c0_i32_0 = arith.constant 0 : i32
    %c0_i32_1 = arith.constant 0 : i32
    return %c0_i32, %c0_i32_0 : i32, i32
  }
  func.func @transform_16(%arg0: i32) -> (i32, i32) {
    %c0_i32 = arith.constant 0 : i32
    %c0_i32_0 = arith.constant 0 : i32
    %c0_i32_1 = arith.constant 0 : i32
    return %c0_i32, %c0_i32_0 : i32, i32
  }
  func.func @transform_17(%arg0: i32) -> (i32, i32, i32) {
    %c0_i32 = arith.constant 0 : i32
    %c0_i32_0 = arith.constant 0 : i32
    %c0_i32_1 = arith.constant 0 : i32
    return %arg0, %c0_i32, %c0_i32_0 : i32, i32, i32
  }
}

</mosaic_0001>

<llo_original>
// kernel: cnn_forward.1
$region0: #{cnn_forward.1}
  #allocation0 [shape = 'u32[]', space=smem, size = 0x4, offset = 0x4, fixed_abs, tag = 'smem constant byte address 0x4 - core index']
  #allocation1 [shape = 'u32[72,128]{1,0:T(1,128)}', space=vmem, size = 0x9000, scoped, tag = 'internal scratch']
  %s0 = inlined_call_operand.vmem [shape: f32[2,32,96], index: 0, kind: input, shape index: {}]
  %s1 = inlined_call_operand.vmem [shape: f32[5,96,168], index: 1, kind: input, shape index: {}]
  %s2 = inlined_call_operand.vmem [shape: f32[1,168], index: 2, kind: input, shape index: {}]
  %s3 = inlined_call_operand.vmem [shape: f32[2,14,28], index: 3, kind: input, shape index: {}]
  %s4 = inlined_call_operand.vmem [shape: f32[2,168,84], index: 4, kind: input, shape index: {}]
  %s5 = inlined_call_operand.vmem [shape: f32[5,10,14], index: 5, kind: input, shape index: {}]
  %s6 = inlined_call_operand.vmem [shape: f32[5,84,160], index: 6, kind: input, shape index: {}]
  %s7 = inlined_call_operand.vmem [shape: f32[1,160], index: 7, kind: input, shape index: {}]
  %s8 = inlined_call_operand.vmem [shape: f32[2,5,10], index: 8, kind: input, shape index: {}]
  %s9 = inlined_call_operand.vmem [shape: f32[2,160,80], index: 9, kind: input, shape index: {}]
  %s10 = inlined_call_operand.vmem [shape: f32[5,1,5], index: 10, kind: input, shape index: {}]
  %s11 = inlined_call_operand.vmem [shape: f32[5,80,100], index: 11, kind: input, shape index: {}]
  %s12 = inlined_call_operand.vmem [shape: f32[1,100], index: 12, kind: input, shape index: {}]
  %s13 = inlined_call_operand.vmem [shape: f32[100,50], index: 13, kind: input, shape index: {}]
  %s14 = inlined_call_operand.vmem [shape: f32[1,50], index: 14, kind: input, shape index: {}]
  %s15 = inlined_call_operand.vmem [shape: f32[50,10], index: 15, kind: input, shape index: {}]
  %s16 = inlined_call_operand.vmem [shape: f32[1,10], index: 16, kind: input, shape index: {}]
  %s17 = inlined_call_operand.hbm [shape: f32[2,1,10], index: 17, kind: output, shape index: {}]
  %s18 = sld [smem:[#allocation0]]
  $region101: #{cnn_forward.1} parent=0
    _
  %s20 = ssub.s32 1, %s18
  %s21 = scalar_select 0, %s20, %s18
  $region1: #{cnn_forward.1} parent=0
    #allocation2 [shape = 'u8[1024]{0}', space=vmem, size = 0x400, scoped, tag = 'output window, operand 0']
    #allocation3 [shape = 's32[2]{0}', space=sflag, size = 0x8, scoped, tag = 'scoped memory for cnn_forward.1']
    %22 = vsyncpa [#allocation3], 0
    %s23 = scalar_lea.sflag [#allocation3], 1
    %24 = vsyncpa %s23, 0
    loop: start=0, step=1, limit=4
    $region2: #{cnn_forward.1} parent=1 // loop_pre_header
      _
    $region3: #{cnn_forward.1} parent=1 // loop_header
      %s26 = sphi 0, %s30
      %p27 = scmp.ge.s32.totalorder %s26, 4
      %s36 = sphi 0, %s38
      %s39 = sphi 0, %s36
      %s40 = sphi 0, %s39
      %s56 = sphi 0, %s40
      %s60 = sphi 0, %s60
      %s62 = sphi 0, %s60
      %s63 = sphi 0, %s62
      %s77 = sphi 0, %s63
      %s81 = sphi 0, %s81
      %s83 = sphi 0, %s81
      %s84 = sphi 0, %s83
      %s98 = sphi 0, %s84
      %s102 = sphi 0, %s102
      %s104 = sphi 0, %s102
      %s105 = sphi 0, %s104
      %s119 = sphi 0, %s105
      %s123 = sphi 0, %s123
      %s125 = sphi 0, %s123
      %s126 = sphi 0, %s125
      %s140 = sphi 0, %s126
      %s144 = sphi 0, %s144
      %s146 = sphi 0, %s144
      %s147 = sphi 0, %s146
      %s161 = sphi 0, %s147
      %s165 = sphi 0, %s165
      %s167 = sphi 0, %s165
      %s168 = sphi 0, %s167
      %s182 = sphi 0, %s168
      %s186 = sphi 0, %s186
      %s188 = sphi 0, %s186
      %s189 = sphi 0, %s188
      %s203 = sphi 0, %s189
      %s207 = sphi 0, %s207
      %s209 = sphi 0, %s207
      %s210 = sphi 0, %s209
      %s224 = sphi 0, %s210
      %s228 = sphi 0, %s228
      %s230 = sphi 0, %s228
      %s231 = sphi 0, %s230
      %s245 = sphi 0, %s231
      %s249 = sphi 0, %s249
      %s251 = sphi 0, %s249
      %s252 = sphi 0, %s251
      %s266 = sphi 0, %s252
      %s270 = sphi 0, %s270
      %s272 = sphi 0, %s270
      %s273 = sphi 0, %s272
      %s287 = sphi 0, %s273
      %s291 = sphi 0, %s291
      %s293 = sphi 0, %s291
      %s294 = sphi 0, %s293
      %s308 = sphi 0, %s294
      %s312 = sphi 0, %s312
      %s314 = sphi 0, %s312
      %s315 = sphi 0, %s314
      %s329 = sphi 0, %s315
      %s333 = sphi 0, %s333
      %s335 = sphi 0, %s333
      %s336 = sphi 0, %s335
      %s350 = sphi 0, %s336
      %s354 = sphi 0, %s354
      %s356 = sphi 0, %s354
      %s357 = sphi 0, %s356
      %s371 = sphi 0, %s357
      %s375 = sphi 0, %s375
      %s377 = sphi 0, %s375
      %s378 = sphi 0, %s377
      %s392 = sphi 0, %s378
      %s398 = sphi 0, %s400
      %s401 = sphi 0, %s398
      %s402 = sphi 0, %s401
      %s418 = sphi 0, %s402
    $region4: #{cnn_forward.1} parent=1 // loop_header_branch
      %29 = sbr.rel (%p27) target = $region8
    $region5: #{cnn_forward.1} parent=1 // loop_body
      %s31 = ssub.s32 %s26, 1
      %s32 = ssub.s32 %s26, 2
      %s33 = sadd.s32 %s26, 1
      %s34 = ssub.s32 %s26, %s33
      %p35 = scmp.eq.s32.totalorder %s34, 0
      %s37 = sadd.s32 %s36, 1
      %s38 = scalar_select %p35, %s36, %s37
      %p41 = pneg %p35
      %p42 = scmp.eq.s32.totalorder %s26, 1
      %p43 = por %p41, %p42
      %p44 = scmp.ne.s32.totalorder %s36, %s39
      %p45 = scmp.eq.s32.totalorder %s26, 0
      %p46 = por %p44, %p45
      %p47 = scmp.ne.s32.totalorder %s36, %s39
      %p48 = scmp.eq.s32.totalorder %s31, 1
      %p49 = por %p47, %p48
      %p50 = scmp.ne.s32.totalorder %s39, %s40
      %p51 = scmp.eq.s32.totalorder %s31, 0
      %p52 = por %p50, %p51
      %p53 = scmp.ne.s32.totalorder %s39, %s40
      %p54 = scmp.eq.s32.totalorder %s32, 1
      %p55 = por %p53, %p54
      %p57 = scmp.ne.s32.totalorder %s40, %s56
      %p58 = scmp.eq.s32.totalorder %s32, 0
      %p59 = por %p57, %p58
      %s61 = sadd.s32 %s60, 1
      %p64 = scmp.eq.s32.totalorder %s26, 1
      %p65 = scmp.ne.s32.totalorder %s60, %s62
      %p66 = scmp.eq.s32.totalorder %s26, 0
      %p67 = por %p65, %p66
      %p68 = scmp.ne.s32.totalorder %s60, %s62
      %p69 = scmp.eq.s32.totalorder %s31, 1
      %p70 = por %p68, %p69
      %p71 = scmp.ne.s32.totalorder %s62, %s63
      %p72 = scmp.eq.s32.totalorder %s31, 0
      %p73 = por %p71, %p72
      %p74 = scmp.ne.s32.totalorder %s62, %s63
      %p75 = scmp.eq.s32.totalorder %s32, 1
      %p76 = por %p74, %p75
      %p78 = scmp.ne.s32.totalorder %s63, %s77
      %p79 = scmp.eq.s32.totalorder %s32, 0
      %p80 = por %p78, %p79
      %s82 = sadd.s32 %s81, 1
      %p85 = scmp.eq.s32.totalorder %s26, 1
      %p86 = scmp.ne.s32.totalorder %s81, %s83
      %p87 = scmp.eq.s32.totalorder %s26, 0
      %p88 = por %p86, %p87
      %p89 = scmp.ne.s32.totalorder %s81, %s83
      %p90 = scmp.eq.s32.totalorder %s31, 1
      %p91 = por %p89, %p90
      %p92 = scmp.ne.s32.totalorder %s83, %s84
      %p93 = scmp.eq.s32.totalorder %s31, 0
      %p94 = por %p92, %p93
      %p95 = scmp.ne.s32.totalorder %s83, %s84
      %p96 = scmp.eq.s32.totalorder %s32, 1
      %p97 = por %p95, %p96
      %p99 = scmp.ne.s32.totalorder %s84, %s98
      %p100 = scmp.eq.s32.totalorder %s32, 0
      %p101 = por %p99, %p100
      %s103 = sadd.s32 %s102, 1
      %p106 = scmp.eq.s32.totalorder %s26, 1
      %p107 = scmp.ne.s32.totalorder %s102, %s104
      %p108 = scmp.eq.s32.totalorder %s26, 0
      %p109 = por %p107, %p108
      %p110 = scmp.ne.s32.totalorder %s102, %s104
      %p111 = scmp.eq.s32.totalorder %s31, 1
      %p112 = por %p110, %p111
      %p113 = scmp.ne.s32.totalorder %s104, %s105
      %p114 = scmp.eq.s32.totalorder %s31, 0
      %p115 = por %p113, %p114
      %p116 = scmp.ne.s32.totalorder %s104, %s105
      %p117 = scmp.eq.s32.totalorder %s32, 1
      %p118 = por %p116, %p117
      %p120 = scmp.ne.s32.totalorder %s105, %s119
      %p121 = scmp.eq.s32.totalorder %s32, 0
      %p122 = por %p120, %p121
      %s124 = sadd.s32 %s123, 1
      %p127 = scmp.eq.s32.totalorder %s26, 1
      %p128 = scmp.ne.s32.totalorder %s123, %s125
      %p129 = scmp.eq.s32.totalorder %s26, 0
      %p130 = por %p128, %p129
      %p131 = scmp.ne.s32.totalorder %s123, %s125
      %p132 = scmp.eq.s32.totalorder %s31, 1
      %p133 = por %p131, %p132
      %p134 = scmp.ne.s32.totalorder %s125, %s126
      %p135 = scmp.eq.s32.totalorder %s31, 0
      %p136 = por %p134, %p135
      %p137 = scmp.ne.s32.totalorder %s125, %s126
      %p138 = scmp.eq.s32.totalorder %s32, 1
      %p139 = por %p137, %p138
      %p141 = scmp.ne.s32.totalorder %s126, %s140
      %p142 = scmp.eq.s32.totalorder %s32, 0
      %p143 = por %p141, %p142
      %s145 = sadd.s32 %s144, 1
      %p148 = scmp.eq.s32.totalorder %s26, 1
      %p149 = scmp.ne.s32.totalorder %s144, %s146
      %p150 = scmp.eq.s32.totalorder %s26, 0
      %p151 = por %p149, %p150
      %p152 = scmp.ne.s32.totalorder %s144, %s146
      %p153 = scmp.eq.s32.totalorder %s31, 1
      %p154 = por %p152, %p153
      %p155 = scmp.ne.s32.totalorder %s146, %s147
      %p156 = scmp.eq.s32.totalorder %s31, 0
      %p157 = por %p155, %p156
      %p158 = scmp.ne.s32.totalorder %s146, %s147
      %p159 = scmp.eq.s32.totalorder %s32, 1
      %p160 = por %p158, %p159
      %p162 = scmp.ne.s32.totalorder %s147, %s161
      %p163 = scmp.eq.s32.totalorder %s32, 0
      %p164 = por %p162, %p163
      %s166 = sadd.s32 %s165, 1
      %p169 = scmp.eq.s32.totalorder %s26, 1
      %p170 = scmp.ne.s32.totalorder %s165, %s167
      %p171 = scmp.eq.s32.totalorder %s26, 0
      %p172 = por %p170, %p171
      %p173 = scmp.ne.s32.totalorder %s165, %s167
      %p174 = scmp.eq.s32.totalorder %s31, 1
      %p175 = por %p173, %p174
      %p176 = scmp.ne.s32.totalorder %s167, %s168
      %p177 = scmp.eq.s32.totalorder %s31, 0
      %p178 = por %p176, %p177
      %p179 = scmp.ne.s32.totalorder %s167, %s168
      %p180 = scmp.eq.s32.totalorder %s32, 1
      %p181 = por %p179, %p180
      %p183 = scmp.ne.s32.totalorder %s168, %s182
      %p184 = scmp.eq.s32.totalorder %s32, 0
      %p185 = por %p183, %p184
      %s187 = sadd.s32 %s186, 1
      %p190 = scmp.eq.s32.totalorder %s26, 1
      %p191 = scmp.ne.s32.totalorder %s186, %s188
      %p192 = scmp.eq.s32.totalorder %s26, 0
      %p193 = por %p191, %p192
      %p194 = scmp.ne.s32.totalorder %s186, %s188
      %p195 = scmp.eq.s32.totalorder %s31, 1
      %p196 = por %p194, %p195
      %p197 = scmp.ne.s32.totalorder %s188, %s189
      %p198 = scmp.eq.s32.totalorder %s31, 0
      %p199 = por %p197, %p198
      %p200 = scmp.ne.s32.totalorder %s188, %s189
      %p201 = scmp.eq.s32.totalorder %s32, 1
      %p202 = por %p200, %p201
      %p204 = scmp.ne.s32.totalorder %s189, %s203
      %p205 = scmp.eq.s32.totalorder %s32, 0
      %p206 = por %p204, %p205
      %s208 = sadd.s32 %s207, 1
      %p211 = scmp.eq.s32.totalorder %s26, 1
      %p212 = scmp.ne.s32.totalorder %s207, %s209
      %p213 = scmp.eq.s32.totalorder %s26, 0
      %p214 = por %p212, %p213
      %p215 = scmp.ne.s32.totalorder %s207, %s209
      %p216 = scmp.eq.s32.totalorder %s31, 1
      %p217 = por %p215, %p216
      %p218 = scmp.ne.s32.totalorder %s209, %s210
      %p219 = scmp.eq.s32.totalorder %s31, 0
      %p220 = por %p218, %p219
      %p221 = scmp.ne.s32.totalorder %s209, %s210
      %p222 = scmp.eq.s32.totalorder %s32, 1
      %p223 = por %p221, %p222
      %p225 = scmp.ne.s32.totalorder %s210, %s224
      %p226 = scmp.eq.s32.totalorder %s32, 0
      %p227 = por %p225, %p226
      %s229 = sadd.s32 %s228, 1
      %p232 = scmp.eq.s32.totalorder %s26, 1
      %p233 = scmp.ne.s32.totalorder %s228, %s230
      %p234 = scmp.eq.s32.totalorder %s26, 0
      %p235 = por %p233, %p234
      %p236 = scmp.ne.s32.totalorder %s228, %s230
      %p237 = scmp.eq.s32.totalorder %s31, 1
      %p238 = por %p236, %p237
      %p239 = scmp.ne.s32.totalorder %s230, %s231
      %p240 = scmp.eq.s32.totalorder %s31, 0
      %p241 = por %p239, %p240
      %p242 = scmp.ne.s32.totalorder %s230, %s231
      %p243 = scmp.eq.s32.totalorder %s32, 1
      %p244 = por %p242, %p243
      %p246 = scmp.ne.s32.totalorder %s231, %s245
      %p247 = scmp.eq.s32.totalorder %s32, 0
      %p248 = por %p246, %p247
      %s250 = sadd.s32 %s249, 1
      %p253 = scmp.eq.s32.totalorder %s26, 1
      %p254 = scmp.ne.s32.totalorder %s249, %s251
      %p255 = scmp.eq.s32.totalorder %s26, 0
      %p256 = por %p254, %p255
      %p257 = scmp.ne.s32.totalorder %s249, %s251
      %p258 = scmp.eq.s32.totalorder %s31, 1
      %p259 = por %p257, %p258
      %p260 = scmp.ne.s32.totalorder %s251, %s252
      %p261 = scmp.eq.s32.totalorder %s31, 0
      %p262 = por %p260, %p261
      %p263 = scmp.ne.s32.totalorder %s251, %s252
      %p264 = scmp.eq.s32.totalorder %s32, 1
      %p265 = por %p263, %p264
      %p267 = scmp.ne.s32.totalorder %s252, %s266
      %p268 = scmp.eq.s32.totalorder %s32, 0
      %p269 = por %p267, %p268
      %s271 = sadd.s32 %s270, 1
      %p274 = scmp.eq.s32.totalorder %s26, 1
      %p275 = scmp.ne.s32.totalorder %s270, %s272
      %p276 = scmp.eq.s32.totalorder %s26, 0
      %p277 = por %p275, %p276
      %p278 = scmp.ne.s32.totalorder %s270, %s272
      %p279 = scmp.eq.s32.totalorder %s31, 1
      %p280 = por %p278, %p279
      %p281 = scmp.ne.s32.totalorder %s272, %s273
      %p282 = scmp.eq.s32.totalorder %s31, 0
      %p283 = por %p281, %p282
      %p284 = scmp.ne.s32.totalorder %s272, %s273
      %p285 = scmp.eq.s32.totalorder %s32, 1
      %p286 = por %p284, %p285
      %p288 = scmp.ne.s32.totalorder %s273, %s287
      %p289 = scmp.eq.s32.totalorder %s32, 0
      %p290 = por %p288, %p289
      %s292 = sadd.s32 %s291, 1
      %p295 = scmp.eq.s32.totalorder %s26, 1
      %p296 = scmp.ne.s32.totalorder %s291, %s293
      %p297 = scmp.eq.s32.totalorder %s26, 0
      %p298 = por %p296, %p297
      %p299 = scmp.ne.s32.totalorder %s291, %s293
      %p300 = scmp.eq.s32.totalorder %s31, 1
      %p301 = por %p299, %p300
      %p302 = scmp.ne.s32.totalorder %s293, %s294
      %p303 = scmp.eq.s32.totalorder %s31, 0
      %p304 = por %p302, %p303
      %p305 = scmp.ne.s32.totalorder %s293, %s294
      %p306 = scmp.eq.s32.totalorder %s32, 1
      %p307 = por %p305, %p306
      %p309 = scmp.ne.s32.totalorder %s294, %s308
      %p310 = scmp.eq.s32.totalorder %s32, 0
      %p311 = por %p309, %p310
      %s313 = sadd.s32 %s312, 1
      %p316 = scmp.eq.s32.totalorder %s26, 1
      %p317 = scmp.ne.s32.totalorder %s312, %s314
      %p318 = scmp.eq.s32.totalorder %s26, 0
      %p319 = por %p317, %p318
      %p320 = scmp.ne.s32.totalorder %s312, %s314
      %p321 = scmp.eq.s32.totalorder %s31, 1
      %p322 = por %p320, %p321
      %p323 = scmp.ne.s32.totalorder %s314, %s315
      %p324 = scmp.eq.s32.totalorder %s31, 0
      %p325 = por %p323, %p324
      %p326 = scmp.ne.s32.totalorder %s314, %s315
      %p327 = scmp.eq.s32.totalorder %s32, 1
      %p328 = por %p326, %p327
      %p330 = scmp.ne.s32.totalorder %s315, %s329
      %p331 = scmp.eq.s32.totalorder %s32, 0
      %p332 = por %p330, %p331
      %s334 = sadd.s32 %s333, 1
      %p337 = scmp.eq.s32.totalorder %s26, 1
      %p338 = scmp.ne.s32.totalorder %s333, %s335
      %p339 = scmp.eq.s32.totalorder %s26, 0
      %p340 = por %p338, %p339
      %p341 = scmp.ne.s32.totalorder %s333, %s335
      %p342 = scmp.eq.s32.totalorder %s31, 1
      %p343 = por %p341, %p342
      %p344 = scmp.ne.s32.totalorder %s335, %s336
      %p345 = scmp.eq.s32.totalorder %s31, 0
      %p346 = por %p344, %p345
      %p347 = scmp.ne.s32.totalorder %s335, %s336
      %p348 = scmp.eq.s32.totalorder %s32, 1
      %p349 = por %p347, %p348
      %p351 = scmp.ne.s32.totalorder %s336, %s350
      %p352 = scmp.eq.s32.totalorder %s32, 0
      %p353 = por %p351, %p352
      %s355 = sadd.s32 %s354, 1
      %p358 = scmp.eq.s32.totalorder %s26, 1
      %p359 = scmp.ne.s32.totalorder %s354, %s356
      %p360 = scmp.eq.s32.totalorder %s26, 0
      %p361 = por %p359, %p360
      %p362 = scmp.ne.s32.totalorder %s354, %s356
      %p363 = scmp.eq.s32.totalorder %s31, 1
      %p364 = por %p362, %p363
      %p365 = scmp.ne.s32.totalorder %s356, %s357
      %p366 = scmp.eq.s32.totalorder %s31, 0
      %p367 = por %p365, %p366
      %p368 = scmp.ne.s32.totalorder %s356, %s357
      %p369 = scmp.eq.s32.totalorder %s32, 1
      %p370 = por %p368, %p369
      %p372 = scmp.ne.s32.totalorder %s357, %s371
      %p373 = scmp.eq.s32.totalorder %s32, 0
      %p374 = por %p372, %p373
      %s376 = sadd.s32 %s375, 1
      %p379 = scmp.eq.s32.totalorder %s26, 1
      %p380 = scmp.ne.s32.totalorder %s375, %s377
      %p381 = scmp.eq.s32.totalorder %s26, 0
      %p382 = por %p380, %p381
      %p383 = scmp.ne.s32.totalorder %s375, %s377
      %p384 = scmp.eq.s32.totalorder %s31, 1
      %p385 = por %p383, %p384
      %p386 = scmp.ne.s32.totalorder %s377, %s378
      %p387 = scmp.eq.s32.totalorder %s31, 0
      %p388 = por %p386, %p387
      %p389 = scmp.ne.s32.totalorder %s377, %s378
      %p390 = scmp.eq.s32.totalorder %s32, 1
      %p391 = por %p389, %p390
      %p393 = scmp.ne.s32.totalorder %s378, %s392
      %p394 = scmp.eq.s32.totalorder %s32, 0
      %p395 = por %p393, %p394
      %s396 = ssub.s32 %s26, %s33
      %p397 = scmp.eq.s32.totalorder %s396, 0
      %s399 = sadd.s32 %s398, 1
      %s400 = scalar_select %p397, %s398, %s399
      %p403 = pneg %p397
      %p404 = scmp.eq.s32.totalorder %s26, 1
      %p405 = por %p403, %p404
      %p406 = scmp.ne.s32.totalorder %s398, %s401
      %p407 = scmp.eq.s32.totalorder %s26, 0
      %p408 = por %p406, %p407
      %p409 = scmp.ne.s32.totalorder %s398, %s401
      %p410 = scmp.eq.s32.totalorder %s31, 1
      %p411 = por %p409, %p410
      %p412 = scmp.ne.s32.totalorder %s401, %s402
      %p413 = scmp.eq.s32.totalorder %s31, 0
      %p414 = por %p412, %p413
      %p415 = scmp.ne.s32.totalorder %s401, %s402
      %p416 = scmp.eq.s32.totalorder %s32, 1
      %p417 = por %p415, %p416
      %p419 = scmp.ne.s32.totalorder %s402, %s418
      %p420 = scmp.eq.s32.totalorder %s32, 0
      %p421 = por %p419, %p420
      %p422 = scmp.le.s32.totalorder 1, %s26
      %p423 = scmp.lt.s32.totalorder %s26, 3
      %p424 = pnand %p422, %p423
      %p425 = pneg %p424
      // Predicated region
      $region9: #{cnn_forward.1} parent=5 // pred_check
        _
      $region10: #{cnn_forward.1} parent=5 // pred_check_branch
        %427 = sbr.rel (%p424) target = $region12
      $region11: #{cnn_forward.1} parent=5 // pred_region
        %s428 = ssub.s32 %s26, 1
        // Predicated region
        $region13: #{cnn_forward.1} parent=11 // pred_check
          %p429 = pneg %p73
        $region14: #{cnn_forward.1} parent=11 // pred_check_branch
          %431 = sbr.rel (%p429) target = $region16
        $region15: #{cnn_forward.1} parent=11 // pred_region
          _
        $region16: #{cnn_forward.1} parent=11 // pred_fallthru
          _
        // Predicated region
        $region17: #{cnn_forward.1} parent=11 // pred_check
          %p432 = pneg %p94
        $region18: #{cnn_forward.1} parent=11 // pred_check_branch
          %434 = sbr.rel (%p432) target = $region20
        $region19: #{cnn_forward.1} parent=11 // pred_region
          _
        $region20: #{cnn_forward.1} parent=11 // pred_fallthru
          _
        // Predicated region
        $region21: #{cnn_forward.1} parent=11 // pred_check
          %p435 = pneg %p115
        $region22: #{cnn_forward.1} parent=11 // pred_check_branch
          %437 = sbr.rel (%p435) target = $region24
        $region23: #{cnn_forward.1} parent=11 // pred_region
          _
        $region24: #{cnn_forward.1} parent=11 // pred_fallthru
          _
        // Predicated region
        $region25: #{cnn_forward.1} parent=11 // pred_check
          %p438 = pneg %p136
        $region26: #{cnn_forward.1} parent=11 // pred_check_branch
          %440 = sbr.rel (%p438) target = $region28
        $region27: #{cnn_forward.1} parent=11 // pred_region
          _
        $region28: #{cnn_forward.1} parent=11 // pred_fallthru
          _
        // Predicated region
        $region29: #{cnn_forward.1} parent=11 // pred_check
          %p441 = pneg %p157
        $region30: #{cnn_forward.1} parent=11 // pred_check_branch
          %443 = sbr.rel (%p441) target = $region32
        $region31: #{cnn_forward.1} parent=11 // pred_region
          _
        $region32: #{cnn_forward.1} parent=11 // pred_fallthru
          _
        // Predicated region
        $region33: #{cnn_forward.1} parent=11 // pred_check
          %p444 = pneg %p178
        $region34: #{cnn_forward.1} parent=11 // pred_check_branch
          %446 = sbr.rel (%p444) target = $region36
        $region35: #{cnn_forward.1} parent=11 // pred_region
          _
        $region36: #{cnn_forward.1} parent=11 // pred_fallthru
          _
        // Predicated region
        $region37: #{cnn_forward.1} parent=11 // pred_check
          %p447 = pneg %p199
        $region38: #{cnn_forward.1} parent=11 // pred_check_branch
          %449 = sbr.rel (%p447) target = $region40
        $region39: #{cnn_forward.1} parent=11 // pred_region
          _
        $region40: #{cnn_forward.1} parent=11 // pred_fallthru
          _
        // Predicated region
        $region41: #{cnn_forward.1} parent=11 // pred_check
          %p450 = pneg %p220
        $region42: #{cnn_forward.1} parent=11 // pred_check_branch
          %452 = sbr.rel (%p450) target = $region44
        $region43: #{cnn_forward.1} parent=11 // pred_region
          _
        $region44: #{cnn_forward.1} parent=11 // pred_fallthru
          _
        // Predicated region
        $region45: #{cnn_forward.1} parent=11 // pred_check
          %p453 = pneg %p241
        $region46: #{cnn_forward.1} parent=11 // pred_check_branch
          %455 = sbr.rel (%p453) target = $region48
        $region47: #{cnn_forward.1} parent=11 // pred_region
          _
        $region48: #{cnn_forward.1} parent=11 // pred_fallthru
          _
        // Predicated region
        $region49: #{cnn_forward.1} parent=11 // pred_check
          %p456 = pneg %p262
        $region50: #{cnn_forward.1} parent=11 // pred_check_branch
          %458 = sbr.rel (%p456) target = $region52
        $region51: #{cnn_forward.1} parent=11 // pred_region
          _
        $region52: #{cnn_forward.1} parent=11 // pred_fallthru
          _
        // Predicated region
        $region53: #{cnn_forward.1} parent=11 // pred_check
          %p459 = pneg %p283
        $region54: #{cnn_forward.1} parent=11 // pred_check_branch
          %461 = sbr.rel (%p459) target = $region56
        $region55: #{cnn_forward.1} parent=11 // pred_region
          _
        $region56: #{cnn_forward.1} parent=11 // pred_fallthru
          _
        // Predicated region
        $region57: #{cnn_forward.1} parent=11 // pred_check
          %p462 = pneg %p304
        $region58: #{cnn_forward.1} parent=11 // pred_check_branch
          %464 = sbr.rel (%p462) target = $region60
        $region59: #{cnn_forward.1} parent=11 // pred_region
          _
        $region60: #{cnn_forward.1} parent=11 // pred_fallthru
          _
        // Predicated region
        $region61: #{cnn_forward.1} parent=11 // pred_check
          %p465 = pneg %p325
        $region62: #{cnn_forward.1} parent=11 // pred_check_branch
          %467 = sbr.rel (%p465) target = $region64
        $region63: #{cnn_forward.1} parent=11 // pred_region
          _
        $region64: #{cnn_forward.1} parent=11 // pred_fallthru
          _
        // Predicated region
        $region65: #{cnn_forward.1} parent=11 // pred_check
          %p468 = pneg %p346
        $region66: #{cnn_forward.1} parent=11 // pred_check_branch
          %470 = sbr.rel (%p468) target = $region68
        $region67: #{cnn_forward.1} parent=11 // pred_region
          _
        $region68: #{cnn_forward.1} parent=11 // pred_fallthru
          _
        // Predicated region
        $region69: #{cnn_forward.1} parent=11 // pred_check
          %p471 = pneg %p367
        $region70: #{cnn_forward.1} parent=11 // pred_check_branch
          %473 = sbr.rel (%p471) target = $region72
        $region71: #{cnn_forward.1} parent=11 // pred_region
          _
        $region72: #{cnn_forward.1} parent=11 // pred_fallthru
          _
        // Predicated region
        $region73: #{cnn_forward.1} parent=11 // pred_check
          %p474 = pneg %p388
        $region74: #{cnn_forward.1} parent=11 // pred_check_branch
          %476 = sbr.rel (%p474) target = $region76
        $region75: #{cnn_forward.1} parent=11 // pred_region
          _
        $region76: #{cnn_forward.1} parent=11 // pred_fallthru
          _
      $region12: #{cnn_forward.1} parent=5 // pred_fallthru
        _
      %p477 = scmp.lt.s32.totalorder %s26, 2
      // Predicated region
      $region77: #{cnn_forward.1} parent=5 // pred_check
        %p478 = pneg %p477
      $region78: #{cnn_forward.1} parent=5 // pred_check_branch
        %480 = sbr.rel (%p478) target = $region80
      $region79: #{cnn_forward.1} parent=5 // pred_region
        // Predicated region
        $region81: #{cnn_forward.1} parent=79 // pred_check
          %p481 = pneg %p46
        $region82: #{cnn_forward.1} parent=79 // pred_check_branch
          %483 = sbr.rel (%p481) target = $region84
        $region83: #{cnn_forward.1} parent=79 // pred_region
          %p484 = scmp.lt.s32.totalorder %s26, 1
          %s485 = scalar_select %p484, %s26, 1
          %s486 = smul.addr %s485, 4
          %s487 = smul.addr %s486, 8
          %s488 = scalar_lea.vmem %s0, %s487
        $region84: #{cnn_forward.1} parent=79 // pred_fallthru
          _
      $region80: #{cnn_forward.1} parent=5 // pred_fallthru
        _
      %p489 = scmp.le.s32.totalorder 1, %s26
      %p490 = scmp.lt.s32.totalorder %s26, 3
      %p491 = pnand %p489, %p490
      %p492 = pneg %p491
      // Predicated region
      $region85: #{cnn_forward.1} parent=5 // pred_check
        _
      $region86: #{cnn_forward.1} parent=5 // pred_check_branch
        %494 = sbr.rel (%p491) target = $region88
      $region87: #{cnn_forward.1} parent=5 // pred_region
        %s495 = ssub.s32 %s26, 1
        %p496 = scmp.lt.s32.totalorder %s31, 1
        %s497 = scalar_select %p496, %s31, 1
        %s498 = smul.addr %s497, 4
        %s499 = smul.addr %s498, 8
        %s500 = scalar_lea.vmem %s0, %s499
        %p501 = pneg %p52
        %p502 = pneg %p49
        %p503 = pneg %p73
        %p504 = pneg %p70
        %p505 = pneg %p94
        %p506 = pneg %p91
        %p507 = pneg %p115
        %p508 = pneg %p112
        %p509 = pneg %p136
        %p510 = pneg %p133
        %p511 = pneg %p157
        %p512 = pneg %p154
        %p513 = pneg %p178
        %p514 = pneg %p175
        %p515 = pneg %p199
        %p516 = pneg %p196
        %p517 = pneg %p220
        %p518 = pneg %p217
        %p519 = pneg %p241
        %p520 = pneg %p238
        %p521 = pneg %p262
        %p522 = pneg %p259
        %p523 = pneg %p283
        %p524 = pneg %p280
        %p525 = pneg %p304
        %p526 = pneg %p301
        %p527 = pneg %p325
        %p528 = pneg %p322
        %p529 = pneg %p346
        %p530 = pneg %p343
        %p531 = pneg %p367
        %p532 = pneg %p364
        %p533 = pneg %p388
        %p534 = pneg %p385
        %p535 = pneg %p414
        %p536 = pneg %p411
        %s537 = sand.u32 %s401, 1
        %s538 = scalar_lea.sflag [#allocation3], %s537
        %s539 = sand.u32 %s401, 1
        %s540 = scalar_lea.vmem [#allocation2], %s539
        %p541 = scmp.lt.s32.totalorder %s31, 1
        %s542 = scalar_select %p541, %s31, 1
        %s543 = smul.addr %s542, 4
        %s544 = smul.addr %s543, 8
        %s545 = scalar_lea.vmem %s0, %s544
        %v546 = vld [vmem:[%s545] sm:$0xff]
        %v547 = vld [vmem:[%s545 + $0x8] sm:$0xff]
        %v548 = vld [vmem:[%s545 + $0x10] sm:$0xff]
        %v549 = vld [vmem:[%s545 + $0x18] sm:$0xf]
        %v550 = vld [vmem:[%s1] sm:$0xff]
        %v551 = vld [vmem:[%s1 + $0x8] sm:$0xff]
        %v552 = vld [vmem:[%s1 + $0x10] sm:$0xff]
        %v553 = vld [vmem:[%s1 + $0x18] sm:$0xff]
        %v554 = vld [vmem:[%s1 + $0x20] sm:$0xff]
        %v555 = vld [vmem:[%s1 + $0x28] sm:$0xff]
        %v556 = vld [vmem:[%s1 + $0x30] sm:$0xff]
        %v557 = vld [vmem:[%s1 + $0x38] sm:$0xff]
        %v558 = vld [vmem:[%s1 + $0x40] sm:$0xff]
        %v559 = vld [vmem:[%s1 + $0x48] sm:$0xff]
        %v560 = vld [vmem:[%s1 + $0x50] sm:$0xff]
        %v561 = vld [vmem:[%s1 + $0x58] sm:$0xff]
        %v562 = vld [vmem:[%s1 + $0x60] sm:$0xff]
        %v563 = vld [vmem:[%s1 + $0x68] sm:$0xff]
        %v564 = vld [vmem:[%s1 + $0x70] sm:$0xff]
        %v565 = vld [vmem:[%s1 + $0x78] sm:$0xff]
        %v566 = vld [vmem:[%s1 + $0x80] sm:$0xff]
        %v567 = vld [vmem:[%s1 + $0x88] sm:$0xff]
        %v568 = vld [vmem:[%s1 + $0x90] sm:$0xff]
        %v569 = vld [vmem:[%s1 + $0x98] sm:$0xff]
        %v570 = vld [vmem:[%s1 + $0xa0] sm:$0xff]
        %v571 = vld [vmem:[%s1 + $0xa8] sm:$0xff]
        %v572 = vld [vmem:[%s1 + $0xb0] sm:$0xff]
        %v573 = vld [vmem:[%s1 + $0xb8] sm:$0xff]
        %v574 = vld [vmem:[%s545 + $0x1] sm:$0xff]
        %v575 = vld [vmem:[%s545 + $0x9] sm:$0xff]
        %v576 = vld [vmem:[%s545 + $0x11] sm:$0xff]
        %v577 = vld [vmem:[%s545 + $0x19] sm:$0xf]
        %s578 = scalar_lea.vmem %s1, 192
        %v579 = vld [vmem:[%s578] sm:$0xff]
        %v580 = vld [vmem:[%s578 + $0x8] sm:$0xff]
        %v581 = vld [vmem:[%s578 + $0x10] sm:$0xff]
        %v582 = vld [vmem:[%s578 + $0x18] sm:$0xff]
        %v583 = vld [vmem:[%s578 + $0x20] sm:$0xff]
        %v584 = vld [vmem:[%s578 + $0x28] sm:$0xff]
        %v585 = vld [vmem:[%s578 + $0x30] sm:$0xff]
        %v586 = vld [vmem:[%s578 + $0x38] sm:$0xff]
        %v587 = vld [vmem:[%s578 + $0x40] sm:$0xff]
        %v588 = vld [vmem:[%s578 + $0x48] sm:$0xff]
        %v589 = vld [vmem:[%s578 + $0x50] sm:$0xff]
        %v590 = vld [vmem:[%s578 + $0x58] sm:$0xff]
        %v591 = vld [vmem:[%s578 + $0x60] sm:$0xff]
        %v592 = vld [vmem:[%s578 + $0x68] sm:$0xff]
        %v593 = vld [vmem:[%s578 + $0x70] sm:$0xff]
        %v594 = vld [vmem:[%s578 + $0x78] sm:$0xff]
        %v595 = vld [vmem:[%s578 + $0x80] sm:$0xff]
        %v596 = vld [vmem:[%s578 + $0x88] sm:$0xff]
        %v597 = vld [vmem:[%s578 + $0x90] sm:$0xff]
        %v598 = vld [vmem:[%s578 + $0x98] sm:$0xff]
        %v599 = vld [vmem:[%s578 + $0xa0] sm:$0xff]
        %v600 = vld [vmem:[%s578 + $0xa8] sm:$0xff]
        %v601 = vld [vmem:[%s578 + $0xb0] sm:$0xff]
        %v602 = vld [vmem:[%s578 + $0xb8] sm:$0xff]
        %vm603 = vcmask 785408
        %v605 = vsel %vm603, %v574, 0
        %v608 = vsel %vm603, %v575, 0
        %v611 = vsel %vm603, %v576, 0
        %v614 = vsel %vm603, %v577, 0
        %616 = vmatpush.msra.mxu0 0.0
        %617 = vmatpush.msra.mxu0 0.0
        %618 = vmatpush.msra.mxu0 0.0
        %619 = vmatpush.msra.mxu0 0.0
        %620 = vmatpush.msra.mxu0 %v601
        %621 = vmatpush.msra.mxu0 %v599
        %622 = vmatpush.msra.mxu0 %v597
        %623 = vmatpush.msra.mxu0 %v595
        %624 = vmatpush.msra.mxu0 %v593
        %625 = vmatpush.msra.mxu0 %v591
        %626 = vmatpush.msra.mxu0 %v589
        %627 = vmatpush.msra.mxu0 %v587
        %628 = vmatpush.msra.mxu0 %v585
        %629 = vmatpush.msra.mxu0 %v583
        %630 = vmatpush.msra.mxu0 %v581
        %631 = vmatpush.msra.mxu0 %v579
        %632 = vmatmul.f32.gmra.mxu0 %v605
        %v633 = vpop.f32.mrf.mxu0
        %v634 = vadd.f32 0.0, %v633
        %635 = vmatmul.f32.gmra.mxu0 %v608
        %v636 = vpop.f32.mrf.mxu0
        %v637 = vadd.f32 0.0, %v636
        %638 = vmatmul.f32.gmra.mxu0 %v611
        %v639 = vpop.f32.mrf.mxu0
        %v640 = vadd.f32 0.0, %v639
        %641 = vmatmul.f32.gmra.mxu0 %v614
        %v642 = vpop.f32.mrf.mxu0
        %v643 = vadd.f32 0.0, %v642
        %644 = vdwg.mxu0
        %645 = vmatpush.msra.mxu0 0.0
        %646 = vmatpush.msra.mxu0 0.0
        %647 = vmatpush.msra.mxu0 0.0
        %648 = vmatpush.msra.mxu0 0.0
        %649 = vmatpush.msra.mxu0 %v602
        %650 = vmatpush.msra.mxu0 %v600
        %651 = vmatpush.msra.mxu0 %v598
        %652 = vmatpush.msra.mxu0 %v596
        %653 = vmatpush.msra.mxu0 %v594
        %654 = vmatpush.msra.mxu0 %v592
        %655 = vmatpush.msra.mxu0 %v590
        %656 = vmatpush.msra.mxu0 %v588
        %657 = vmatpush.msra.mxu0 %v586
        %658 = vmatpush.msra.mxu0 %v584
        %659 = vmatpush.msra.mxu0 %v582
        %660 = vmatpush.msra.mxu0 %v580
        %661 = vmatmul.f32.gmra.mxu0 %v605
        %v662 = vpop.f32.mrf.mxu0
        %v663 = vadd.f32 0.0, %v662
        %664 = vmatmul.f32.gmra.mxu0 %v608
        %v665 = vpop.f32.mrf.mxu0
        %v666 = vadd.f32 0.0, %v665
        %667 = vmatmul.f32.gmra.mxu0 %v611
        %v668 = vpop.f32.mrf.mxu0
        %v669 = vadd.f32 0.0, %v668
        %670 = vmatmul.f32.gmra.mxu0 %v614
        %v671 = vpop.f32.mrf.mxu0
        %v672 = vadd.f32 0.0, %v671
        %673 = vdwg.mxu0
        %v675 = vsel %vm603, %v546, 0
        %v678 = vsel %vm603, %v547, 0
        %v681 = vsel %vm603, %v548, 0
        %v684 = vsel %vm603, %v549, 0
        %686 = vmatpush.msra.mxu0 0.0
        %687 = vmatpush.msra.mxu0 0.0
        %688 = vmatpush.msra.mxu0 0.0
        %689 = vmatpush.msra.mxu0 0.0
        %690 = vmatpush.msra.mxu0 %v572
        %691 = vmatpush.msra.mxu0 %v570
        %692 = vmatpush.msra.mxu0 %v568
        %693 = vmatpush.msra.mxu0 %v566
        %694 = vmatpush.msra.mxu0 %v564
        %695 = vmatpush.msra.mxu0 %v562
        %696 = vmatpush.msra.mxu0 %v560
        %697 = vmatpush.msra.mxu0 %v558
        %698 = vmatpush.msra.mxu0 %v556
        %699 = vmatpush.msra.mxu0 %v554
        %700 = vmatpush.msra.mxu0 %v552
        %701 = vmatpush.msra.mxu0 %v550
        %702 = vmatmul.f32.gmra.mxu0 %v675
        %v703 = vpop.f32.mrf.mxu0
        %v704 = vadd.f32 %v634, %v703
        %705 = vmatmul.f32.gmra.mxu0 %v678
        %v706 = vpop.f32.mrf.mxu0
        %v707 = vadd.f32 %v637, %v706
        %708 = vmatmul.f32.gmra.mxu0 %v681
        %v709 = vpop.f32.mrf.mxu0
        %v710 = vadd.f32 %v640, %v709
        %711 = vmatmul.f32.gmra.mxu0 %v684
        %v712 = vpop.f32.mrf.mxu0
        %v713 = vadd.f32 %v643, %v712
        %714 = vdwg.mxu0
        %715 = vmatpush.msra.mxu0 0.0
        %716 = vmatpush.msra.mxu0 0.0
        %717 = vmatpush.msra.mxu0 0.0
        %718 = vmatpush.msra.mxu0 0.0
        %719 = vmatpush.msra.mxu0 %v573
        %720 = vmatpush.msra.mxu0 %v571
        %721 = vmatpush.msra.mxu0 %v569
        %722 = vmatpush.msra.mxu0 %v567
        %723 = vmatpush.msra.mxu0 %v565
        %724 = vmatpush.msra.mxu0 %v563
        %725 = vmatpush.msra.mxu0 %v561
        %726 = vmatpush.msra.mxu0 %v559
        %727 = vmatpush.msra.mxu0 %v557
        %728 = vmatpush.msra.mxu0 %v555
        %729 = vmatpush.msra.mxu0 %v553
        %730 = vmatpush.msra.mxu0 %v551
        %731 = vmatmul.f32.gmra.mxu0 %v675
        %v732 = vpop.f32.mrf.mxu0
        %v733 = vadd.f32 %v663, %v732
        %734 = vmatmul.f32.gmra.mxu0 %v678
        %v735 = vpop.f32.mrf.mxu0
        %v736 = vadd.f32 %v666, %v735
        %737 = vmatmul.f32.gmra.mxu0 %v681
        %v738 = vpop.f32.mrf.mxu0
        %v739 = vadd.f32 %v669, %v738
        %740 = vmatmul.f32.gmra.mxu0 %v684
        %v741 = vpop.f32.mrf.mxu0
        %v742 = vadd.f32 %v672, %v741
        %743 = vdwg.mxu0
        %v744 = vld [vmem:[%s545 + $0x2] sm:$0xff]
        %v745 = vld [vmem:[%s545 + $0xa] sm:$0xff]
        %v746 = vld [vmem:[%s545 + $0x12] sm:$0xff]
        %v747 = vld [vmem:[%s545 + $0x1a] sm:$0xf]
        %s748 = scalar_lea.vmem %s1, 384
        %v749 = vld [vmem:[%s748] sm:$0xff]
        %v750 = vld [vmem:[%s748 + $0x8] sm:$0xff]
        %v751 = vld [vmem:[%s748 + $0x10] sm:$0xff]
        %v752 = vld [vmem:[%s748 + $0x18] sm:$0xff]
        %v753 = vld [vmem:[%s748 + $0x20] sm:$0xff]
        %v754 = vld [vmem:[%s748 + $0x28] sm:$0xff]
        %v755 = vld [vmem:[%s748 + $0x30] sm:$0xff]
        %v756 = vld [vmem:[%s748 + $0x38] sm:$0xff]
        %v757 = vld [vmem:[%s748 + $0x40] sm:$0xff]
        %v758 = vld [vmem:[%s748 + $0x48] sm:$0xff]
        %v759 = vld [vmem:[%s748 + $0x50] sm:$0xff]
        %v760 = vld [vmem:[%s748 + $0x58] sm:$0xff]
        %v761 = vld [vmem:[%s748 + $0x60] sm:$0xff]
        %v762 = vld [vmem:[%s748 + $0x68] sm:$0xff]
        %v763 = vld [vmem:[%s748 + $0x70] sm:$0xff]
        %v764 = vld [vmem:[%s748 + $0x78] sm:$0xff]
        %v765 = vld [vmem:[%s748 + $0x80] sm:$0xff]
        %v766 = vld [vmem:[%s748 + $0x88] sm:$0xff]
        %v767 = vld [vmem:[%s748 + $0x90] sm:$0xff]
        %v768 = vld [vmem:[%s748 + $0x98] sm:$0xff]
        %v769 = vld [vmem:[%s748 + $0xa0] sm:$0xff]
        %v770 = vld [vmem:[%s748 + $0xa8] sm:$0xff]
        %v771 = vld [vmem:[%s748 + $0xb0] sm:$0xff]
        %v772 = vld [vmem:[%s748 + $0xb8] sm:$0xff]
        %v774 = vsel %vm603, %v744, 0
        %v777 = vsel %vm603, %v745, 0
        %v780 = vsel %vm603, %v746, 0
        %v783 = vsel %vm603, %v747, 0
        %785 = vmatpush.msra.mxu0 0.0
        %786 = vmatpush.msra.mxu0 0.0
        %787 = vmatpush.msra.mxu0 0.0
        %788 = vmatpush.msra.mxu0 0.0
        %789 = vmatpush.msra.mxu0 %v771
        %790 = vmatpush.msra.mxu0 %v769
        %791 = vmatpush.msra.mxu0 %v767
        %792 = vmatpush.msra.mxu0 %v765
        %793 = vmatpush.msra.mxu0 %v763
        %794 = vmatpush.msra.mxu0 %v761
        %795 = vmatpush.msra.mxu0 %v759
        %796 = vmatpush.msra.mxu0 %v757
        %797 = vmatpush.msra.mxu0 %v755
        %798 = vmatpush.msra.mxu0 %v753
        %799 = vmatpush.msra.mxu0 %v751
        %800 = vmatpush.msra.mxu0 %v749
        %801 = vmatmul.f32.gmra.mxu0 %v774
        %v802 = vpop.f32.mrf.mxu0
        %v803 = vadd.f32 0.0, %v802
        %804 = vmatmul.f32.gmra.mxu0 %v777
        %v805 = vpop.f32.mrf.mxu0
        %v806 = vadd.f32 0.0, %v805
        %807 = vmatmul.f32.gmra.mxu0 %v780
        %v808 = vpop.f32.mrf.mxu0
        %v809 = vadd.f32 0.0, %v808
        %810 = vmatmul.f32.gmra.mxu0 %v783
        %v811 = vpop.f32.mrf.mxu0
        %v812 = vadd.f32 0.0, %v811
        %813 = vdwg.mxu0
        %814 = vmatpush.msra.mxu0 0.0
        %815 = vmatpush.msra.mxu0 0.0
        %816 = vmatpush.msra.mxu0 0.0
        %817 = vmatpush.msra.mxu0 0.0
        %818 = vmatpush.msra.mxu0 %v772
        %819 = vmatpush.msra.mxu0 %v770
        %820 = vmatpush.msra.mxu0 %v768
        %821 = vmatpush.msra.mxu0 %v766
        %822 = vmatpush.msra.mxu0 %v764
        %823 = vmatpush.msra.mxu0 %v762
        %824 = vmatpush.msra.mxu0 %v760
        %825 = vmatpush.msra.mxu0 %v758
        %826 = vmatpush.msra.mxu0 %v756
        %827 = vmatpush.msra.mxu0 %v754
        %828 = vmatpush.msra.mxu0 %v752
        %829 = vmatpush.msra.mxu0 %v750
        %830 = vmatmul.f32.gmra.mxu0 %v774
        %v831 = vpop.f32.mrf.mxu0
        %v832 = vadd.f32 0.0, %v831
        %833 = vmatmul.f32.gmra.mxu0 %v777
        %v834 = vpop.f32.mrf.mxu0
        %v835 = vadd.f32 0.0, %v834
        %836 = vmatmul.f32.gmra.mxu0 %v780
        %v837 = vpop.f32.mrf.mxu0
        %v838 = vadd.f32 0.0, %v837
        %839 = vmatmul.f32.gmra.mxu0 %v783
        %v840 = vpop.f32.mrf.mxu0
        %v841 = vadd.f32 0.0, %v840
        %842 = vdwg.mxu0
        %v843 = vadd.f32 %v704, %v803
        %v844 = vadd.f32 %v733, %v832
        %v845 = vadd.f32 %v707, %v806
        %v846 = vadd.f32 %v736, %v835
        %v847 = vadd.f32 %v710, %v809
        %v848 = vadd.f32 %v739, %v838
        %v849 = vadd.f32 %v713, %v812
        %v850 = vadd.f32 %v742, %v841
        %v851 = vld [vmem:[%s545 + $0x3] sm:$0xff]
        %v852 = vld [vmem:[%s545 + $0xb] sm:$0xff]
        %v853 = vld [vmem:[%s545 + $0x13] sm:$0xff]
        %v854 = vld [vmem:[%s545 + $0x1b] sm:$0xf]
        %s855 = scalar_lea.vmem %s1, 576
        %v856 = vld [vmem:[%s855] sm:$0xff]
        %v857 = vld [vmem:[%s855 + $0x8] sm:$0xff]
        %v858 = vld [vmem:[%s855 + $0x10] sm:$0xff]
        %v859 = vld [vmem:[%s855 + $0x18] sm:$0xff]
        %v860 = vld [vmem:[%s855 + $0x20] sm:$0xff]
        %v861 = vld [vmem:[%s855 + $0x28] sm:$0xff]
        %v862 = vld [vmem:[%s855 + $0x30] sm:$0xff]
        %v863 = vld [vmem:[%s855 + $0x38] sm:$0xff]
        %v864 = vld [vmem:[%s855 + $0x40] sm:$0xff]
        %v865 = vld [vmem:[%s855 + $0x48] sm:$0xff]
        %v866 = vld [vmem:[%s855 + $0x50] sm:$0xff]
        %v867 = vld [vmem:[%s855 + $0x58] sm:$0xff]
        %v868 = vld [vmem:[%s855 + $0x60] sm:$0xff]
        %v869 = vld [vmem:[%s855 + $0x68] sm:$0xff]
        %v870 = vld [vmem:[%s855 + $0x70] sm:$0xff]
        %v871 = vld [vmem:[%s855 + $0x78] sm:$0xff]
        %v872 = vld [vmem:[%s855 + $0x80] sm:$0xff]
        %v873 = vld [vmem:[%s855 + $0x88] sm:$0xff]
        %v874 = vld [vmem:[%s855 + $0x90] sm:$0xff]
        %v875 = vld [vmem:[%s855 + $0x98] sm:$0xff]
        %v876 = vld [vmem:[%s855 + $0xa0] sm:$0xff]
        %v877 = vld [vmem:[%s855 + $0xa8] sm:$0xff]
        %v878 = vld [vmem:[%s855 + $0xb0] sm:$0xff]
        %v879 = vld [vmem:[%s855 + $0xb8] sm:$0xff]
        %v881 = vsel %vm603, %v851, 0
        %v884 = vsel %vm603, %v852, 0
        %v887 = vsel %vm603, %v853, 0
        %v890 = vsel %vm603, %v854, 0
        %892 = vmatpush.msra.mxu0 0.0
        %893 = vmatpush.msra.mxu0 0.0
        %894 = vmatpush.msra.mxu0 0.0
        %895 = vmatpush.msra.mxu0 0.0
        %896 = vmatpush.msra.mxu0 %v878
        %897 = vmatpush.msra.mxu0 %v876
        %898 = vmatpush.msra.mxu0 %v874
        %899 = vmatpush.msra.mxu0 %v872
        %900 = vmatpush.msra.mxu0 %v870
        %901 = vmatpush.msra.mxu0 %v868
        %902 = vmatpush.msra.mxu0 %v866
        %903 = vmatpush.msra.mxu0 %v864
        %904 = vmatpush.msra.mxu0 %v862
        %905 = vmatpush.msra.mxu0 %v860
        %906 = vmatpush.msra.mxu0 %v858
        %907 = vmatpush.msra.mxu0 %v856
        %908 = vmatmul.f32.gmra.mxu0 %v881
        %v909 = vpop.f32.mrf.mxu0
        %v910 = vadd.f32 0.0, %v909
        %911 = vmatmul.f32.gmra.mxu0 %v884
        %v912 = vpop.f32.mrf.mxu0
        %v913 = vadd.f32 0.0, %v912
        %914 = vmatmul.f32.gmra.mxu0 %v887
        %v915 = vpop.f32.mrf.mxu0
        %v916 = vadd.f32 0.0, %v915
        %917 = vmatmul.f32.gmra.mxu0 %v890
        %v918 = vpop.f32.mrf.mxu0
        %v919 = vadd.f32 0.0, %v918
        %920 = vdwg.mxu0
        %921 = vmatpush.msra.mxu0 0.0
        %922 = vmatpush.msra.mxu0 0.0
        %923 = vmatpush.msra.mxu0 0.0
        %924 = vmatpush.msra.mxu0 0.0
        %925 = vmatpush.msra.mxu0 %v879
        %926 = vmatpush.msra.mxu0 %v877
        %927 = vmatpush.msra.mxu0 %v875
        %928 = vmatpush.msra.mxu0 %v873
        %929 = vmatpush.msra.mxu0 %v871
        %930 = vmatpush.msra.mxu0 %v869
        %931 = vmatpush.msra.mxu0 %v867
        %932 = vmatpush.msra.mxu0 %v865
        %933 = vmatpush.msra.mxu0 %v863
        %934 = vmatpush.msra.mxu0 %v861
        %935 = vmatpush.msra.mxu0 %v859
        %936 = vmatpush.msra.mxu0 %v857
        %937 = vmatmul.f32.gmra.mxu0 %v881
        %v938 = vpop.f32.mrf.mxu0
        %v939 = vadd.f32 0.0, %v938
        %940 = vmatmul.f32.gmra.mxu0 %v884
        %v941 = vpop.f32.mrf.mxu0
        %v942 = vadd.f32 0.0, %v941
        %943 = vmatmul.f32.gmra.mxu0 %v887
        %v944 = vpop.f32.mrf.mxu0
        %v945 = vadd.f32 0.0, %v944
        %946 = vmatmul.f32.gmra.mxu0 %v890
        %v947 = vpop.f32.mrf.mxu0
        %v948 = vadd.f32 0.0, %v947
        %949 = vdwg.mxu0
        %v950 = vadd.f32 %v843, %v910
        %v951 = vadd.f32 %v844, %v939
        %v952 = vadd.f32 %v845, %v913
        %v953 = vadd.f32 %v846, %v942
        %v954 = vadd.f32 %v847, %v916
        %v955 = vadd.f32 %v848, %v945
        %v956 = vadd.f32 %v849, %v919
        %v957 = vadd.f32 %v850, %v948
        %v958 = vld [vmem:[%s545 + $0x4] sm:$0xff]
        %v959 = vld [vmem:[%s545 + $0xc] sm:$0xff]
        %v960 = vld [vmem:[%s545 + $0x14] sm:$0xff]
        %v961 = vld [vmem:[%s545 + $0x1c] sm:$0xf]
        %s962 = scalar_lea.vmem %s1, 768
        %v963 = vld [vmem:[%s962] sm:$0xff]
        %v964 = vld [vmem:[%s962 + $0x8] sm:$0xff]
        %v965 = vld [vmem:[%s962 + $0x10] sm:$0xff]
        %v966 = vld [vmem:[%s962 + $0x18] sm:$0xff]
        %v967 = vld [vmem:[%s962 + $0x20] sm:$0xff]
        %v968 = vld [vmem:[%s962 + $0x28] sm:$0xff]
        %v969 = vld [vmem:[%s962 + $0x30] sm:$0xff]
        %v970 = vld [vmem:[%s962 + $0x38] sm:$0xff]
        %v971 = vld [vmem:[%s962 + $0x40] sm:$0xff]
        %v972 = vld [vmem:[%s962 + $0x48] sm:$0xff]
        %v973 = vld [vmem:[%s962 + $0x50] sm:$0xff]
        %v974 = vld [vmem:[%s962 + $0x58] sm:$0xff]
        %v975 = vld [vmem:[%s962 + $0x60] sm:$0xff]
        %v976 = vld [vmem:[%s962 + $0x68] sm:$0xff]
        %v977 = vld [vmem:[%s962 + $0x70] sm:$0xff]
        %v978 = vld [vmem:[%s962 + $0x78] sm:$0xff]
        %v979 = vld [vmem:[%s962 + $0x80] sm:$0xff]
        %v980 = vld [vmem:[%s962 + $0x88] sm:$0xff]
        %v981 = vld [vmem:[%s962 + $0x90] sm:$0xff]
        %v982 = vld [vmem:[%s962 + $0x98] sm:$0xff]
        %v983 = vld [vmem:[%s962 + $0xa0] sm:$0xff]
        %v984 = vld [vmem:[%s962 + $0xa8] sm:$0xff]
        %v985 = vld [vmem:[%s962 + $0xb0] sm:$0xff]
        %v986 = vld [vmem:[%s962 + $0xb8] sm:$0xff]
        %v988 = vsel %vm603, %v958, 0
        %v991 = vsel %vm603, %v959, 0
        %v994 = vsel %vm603, %v960, 0
        %v997 = vsel %vm603, %v961, 0
        %999 = vmatpush.msra.mxu0 0.0
        %1000 = vmatpush.msra.mxu0 0.0
        %1001 = vmatpush.msra.mxu0 0.0
        %1002 = vmatpush.msra.mxu0 0.0
        %1003 = vmatpush.msra.mxu0 %v985
        %1004 = vmatpush.msra.mxu0 %v983
        %1005 = vmatpush.msra.mxu0 %v981
        %1006 = vmatpush.msra.mxu0 %v979
        %1007 = vmatpush.msra.mxu0 %v977
        %1008 = vmatpush.msra.mxu0 %v975
        %1009 = vmatpush.msra.mxu0 %v973
        %1010 = vmatpush.msra.mxu0 %v971
        %1011 = vmatpush.msra.mxu0 %v969
        %1012 = vmatpush.msra.mxu0 %v967
        %1013 = vmatpush.msra.mxu0 %v965
        %1014 = vmatpush.msra.mxu0 %v963
        %1015 = vmatmul.f32.gmra.mxu0 %v988
        %v1016 = vpop.f32.mrf.mxu0
        %v1017 = vadd.f32 0.0, %v1016
        %1018 = vmatmul.f32.gmra.mxu0 %v991
        %v1019 = vpop.f32.mrf.mxu0
        %v1020 = vadd.f32 0.0, %v1019
        %1021 = vmatmul.f32.gmra.mxu0 %v994
        %v1022 = vpop.f32.mrf.mxu0
        %v1023 = vadd.f32 0.0, %v1022
        %1024 = vmatmul.f32.gmra.mxu0 %v997
        %v1025 = vpop.f32.mrf.mxu0
        %v1026 = vadd.f32 0.0, %v1025
        %1027 = vdwg.mxu0
        %1028 = vmatpush.msra.mxu0 0.0
        %1029 = vmatpush.msra.mxu0 0.0
        %1030 = vmatpush.msra.mxu0 0.0
        %1031 = vmatpush.msra.mxu0 0.0
        %1032 = vmatpush.msra.mxu0 %v986
        %1033 = vmatpush.msra.mxu0 %v984
        %1034 = vmatpush.msra.mxu0 %v982
        %1035 = vmatpush.msra.mxu0 %v980
        %1036 = vmatpush.msra.mxu0 %v978
        %1037 = vmatpush.msra.mxu0 %v976
        %1038 = vmatpush.msra.mxu0 %v974
        %1039 = vmatpush.msra.mxu0 %v972
        %1040 = vmatpush.msra.mxu0 %v970
        %1041 = vmatpush.msra.mxu0 %v968
        %1042 = vmatpush.msra.mxu0 %v966
        %1043 = vmatpush.msra.mxu0 %v964
        %1044 = vmatmul.f32.gmra.mxu0 %v988
        %v1045 = vpop.f32.mrf.mxu0
        %v1046 = vadd.f32 0.0, %v1045
        %1047 = vmatmul.f32.gmra.mxu0 %v991
        %v1048 = vpop.f32.mrf.mxu0
        %v1049 = vadd.f32 0.0, %v1048
        %1050 = vmatmul.f32.gmra.mxu0 %v994
        %v1051 = vpop.f32.mrf.mxu0
        %v1052 = vadd.f32 0.0, %v1051
        %1053 = vmatmul.f32.gmra.mxu0 %v997
        %v1054 = vpop.f32.mrf.mxu0
        %v1055 = vadd.f32 0.0, %v1054
        %1056 = vdwg.mxu0
        %v1057 = vadd.f32 %v950, %v1017
        %v1058 = vadd.f32 %v951, %v1046
        %v1059 = vadd.f32 %v952, %v1020
        %v1060 = vadd.f32 %v953, %v1049
        %v1061 = vadd.f32 %v954, %v1023
        %v1062 = vadd.f32 %v955, %v1052
        %v1063 = vadd.f32 %v956, %v1026
        %v1064 = vadd.f32 %v957, %v1055
        %v1065 = vld [vmem:[%s2] sm:$0x3]
        %v1067 = vperm.slane %v1065, 0
        %v1068 = vperm.slane %v1065, 1
        %v1071 = vadd.f32 %v1057, %v1067
        %v1072 = vadd.f32 %v1058, %v1068
        %v1073 = vadd.f32 %v1059, %v1067
        %v1074 = vadd.f32 %v1060, %v1068
        %v1075 = vadd.f32 %v1061, %v1067
        %v1076 = vadd.f32 %v1062, %v1068
        %v1077 = vadd.f32 %v1063, %v1067
        %v1078 = vadd.f32 %v1064, %v1068
        %v1079 = vmax.f32 %v1071, 0.0
        %v1080 = vmax.f32 %v1072, 0.0
        %v1081 = vmax.f32 %v1073, 0.0
        %v1082 = vmax.f32 %v1074, 0.0
        %v1083 = vmax.f32 %v1075, 0.0
        %v1084 = vmax.f32 %v1076, 0.0
        %v1085 = vmax.f32 %v1077, 0.0
        %v1086 = vmax.f32 %v1078, 0.0
        %v1087 = vld [vmem:[%s4] sm:$0xff]
        %v1088 = vld [vmem:[%s4 + $0x8] sm:$0xff]
        %v1089 = vld [vmem:[%s4 + $0x10] sm:$0xff]
        %v1090 = vld [vmem:[%s4 + $0x18] sm:$0xff]
        %v1091 = vld [vmem:[%s4 + $0x20] sm:$0xff]
        %v1092 = vld [vmem:[%s4 + $0x28] sm:$0xff]
        %v1093 = vld [vmem:[%s4 + $0x30] sm:$0xff]
        %v1094 = vld [vmem:[%s4 + $0x38] sm:$0xff]
        %v1095 = vld [vmem:[%s4 + $0x40] sm:$0xff]
        %v1096 = vld [vmem:[%s4 + $0x48] sm:$0xff]
        %v1097 = vld [vmem:[%s4 + $0x50] sm:$0xff]
        %v1098 = vld [vmem:[%s4 + $0x58] sm:$0xff]
        %v1099 = vld [vmem:[%s4 + $0x60] sm:$0xff]
        %v1100 = vld [vmem:[%s4 + $0x68] sm:$0xff]
        %v1101 = vld [vmem:[%s4 + $0x70] sm:$0xff]
        %v1102 = vld [vmem:[%s4 + $0x78] sm:$0xff]
        %v1103 = vld [vmem:[%s4 + $0x80] sm:$0xff]
        %v1104 = vld [vmem:[%s4 + $0x88] sm:$0xff]
        %v1105 = vld [vmem:[%s4 + $0x90] sm:$0xff]
        %v1106 = vld [vmem:[%s4 + $0x98] sm:$0xff]
        %v1107 = vld [vmem:[%s4 + $0xa0] sm:$0xff]
        %vm1108 = vcmask 326656
        %v1110 = vsel %vm1108, %v1080, 0
        %v1113 = vsel %vm1108, %v1082, 0
        %v1116 = vsel %vm1108, %v1084, 0
        %v1119 = vsel %vm1108, %v1086, 0
        %1121 = vmatpush.msra.mxu0 %v1102
        %1122 = vmatpush.msra.mxu0 %v1101
        %1123 = vmatpush.msra.mxu0 %v1100
        %1124 = vmatpush.msra.mxu0 %v1099
        %1125 = vmatpush.msra.mxu0 %v1098
        %1126 = vmatpush.msra.mxu0 %v1097
        %1127 = vmatpush.msra.mxu0 %v1096
        %1128 = vmatpush.msra.mxu0 %v1095
        %1129 = vmatpush.msra.mxu0 %v1094
        %1130 = vmatpush.msra.mxu0 %v1093
        %1131 = vmatpush.msra.mxu0 %v1092
        %1132 = vmatpush.msra.mxu0 %v1091
        %1133 = vmatpush.msra.mxu0 %v1090
        %1134 = vmatpush.msra.mxu0 %v1089
        %1135 = vmatpush.msra.mxu0 %v1088
        %1136 = vmatpush.msra.mxu0 %v1087
        %1137 = vmatmul.f32.gmra.mxu0 %v1079
        %v1138 = vpop.f32.mrf.mxu0
        %v1139 = vadd.f32 0.0, %v1138
        %1140 = vmatmul.f32.gmra.mxu0 %v1081
        %v1141 = vpop.f32.mrf.mxu0
        %v1142 = vadd.f32 0.0, %v1141
        %1143 = vmatmul.f32.gmra.mxu0 %v1083
        %v1144 = vpop.f32.mrf.mxu0
        %v1145 = vadd.f32 0.0, %v1144
        %1146 = vmatmul.f32.gmra.mxu0 %v1085
        %v1147 = vpop.f32.mrf.mxu0
        %v1148 = vadd.f32 0.0, %v1147
        %1149 = vdwg.mxu0
        %1150 = vmatpush.msra.mxu0 0.0
        %1151 = vmatpush.msra.mxu0 0.0
        %1152 = vmatpush.msra.mxu0 0.0
        %1153 = vmatpush.msra.mxu0 0.0
        %1154 = vmatpush.msra.mxu0 0.0
        %1155 = vmatpush.msra.mxu0 0.0
        %1156 = vmatpush.msra.mxu0 0.0
        %1157 = vmatpush.msra.mxu0 0.0
        %1158 = vmatpush.msra.mxu0 0.0
        %1159 = vmatpush.msra.mxu0 0.0
        %1160 = vmatpush.msra.mxu0 0.0
        %1161 = vmatpush.msra.mxu0 %v1107
        %1162 = vmatpush.msra.mxu0 %v1106
        %1163 = vmatpush.msra.mxu0 %v1105
        %1164 = vmatpush.msra.mxu0 %v1104
        %1165 = vmatpush.msra.mxu0 %v1103
        %1166 = vmatmul.f32.gmra.mxu0 %v1110
        %v1167 = vpop.f32.mrf.mxu0
        %v1168 = vadd.f32 %v1139, %v1167
        %1169 = vmatmul.f32.gmra.mxu0 %v1113
        %v1170 = vpop.f32.mrf.mxu0
        %v1171 = vadd.f32 %v1142, %v1170
        %1172 = vmatmul.f32.gmra.mxu0 %v1116
        %v1173 = vpop.f32.mrf.mxu0
        %v1174 = vadd.f32 %v1145, %v1173
        %1175 = vmatmul.f32.gmra.mxu0 %v1119
        %v1176 = vpop.f32.mrf.mxu0
        %v1177 = vadd.f32 %v1148, %v1176
        %1178 = vdwg.mxu0
        %s1179 = scalar_lea.vmem %s4, 168
        %v1180 = vld [vmem:[%s1179] sm:$0xff]
        %v1181 = vld [vmem:[%s1179 + $0x8] sm:$0xff]
        %v1182 = vld [vmem:[%s1179 + $0x10] sm:$0xff]
        %v1183 = vld [vmem:[%s1179 + $0x18] sm:$0xff]
        %v1184 = vld [vmem:[%s1179 + $0x20] sm:$0xff]
        %v1185 = vld [vmem:[%s1179 + $0x28] sm:$0xff]
        %v1186 = vld [vmem:[%s1179 + $0x30] sm:$0xff]
        %v1187 = vld [vmem:[%s1179 + $0x38] sm:$0xff]
        %v1188 = vld [vmem:[%s1179 + $0x40] sm:$0xff]
        %v1189 = vld [vmem:[%s1179 + $0x48] sm:$0xff]
        %v1190 = vld [vmem:[%s1179 + $0x50] sm:$0xff]
        %v1191 = vld [vmem:[%s1179 + $0x58] sm:$0xff]
        %v1192 = vld [vmem:[%s1179 + $0x60] sm:$0xff]
        %v1193 = vld [vmem:[%s1179 + $0x68] sm:$0xff]
        %v1194 = vld [vmem:[%s1179 + $0x70] sm:$0xff]
        %v1195 = vld [vmem:[%s1179 + $0x78] sm:$0xff]
        %v1196 = vld [vmem:[%s1179 + $0x80] sm:$0xff]
        %v1197 = vld [vmem:[%s1179 + $0x88] sm:$0xff]
        %v1198 = vld [vmem:[%s1179 + $0x90] sm:$0xff]
        %v1199 = vld [vmem:[%s1179 + $0x98] sm:$0xff]
        %v1200 = vld [vmem:[%s1179 + $0xa0] sm:$0xff]
        %1201 = vmatpush.msra.mxu0 %v1195
        %1202 = vmatpush.msra.mxu0 %v1194
        %1203 = vmatpush.msra.mxu0 %v1193
        %1204 = vmatpush.msra.mxu0 %v1192
        %1205 = vmatpush.msra.mxu0 %v1191
        %1206 = vmatpush.msra.mxu0 %v1190
        %1207 = vmatpush.msra.mxu0 %v1189
        %1208 = vmatpush.msra.mxu0 %v1188
        %1209 = vmatpush.msra.mxu0 %v1187
        %1210 = vmatpush.msra.mxu0 %v1186
        %1211 = vmatpush.msra.mxu0 %v1185
        %1212 = vmatpush.msra.mxu0 %v1184
        %1213 = vmatpush.msra.mxu0 %v1183
        %1214 = vmatpush.msra.mxu0 %v1182
        %1215 = vmatpush.msra.mxu0 %v1181
        %1216 = vmatpush.msra.mxu0 %v1180
        %1217 = vmatmul.f32.gmra.mxu0 %v1079
        %v1218 = vpop.f32.mrf.mxu0
        %v1219 = vadd.f32 0.0, %v1218
        %1220 = vmatmul.f32.gmra.mxu0 %v1081
        %v1221 = vpop.f32.mrf.mxu0
        %v1222 = vadd.f32 0.0, %v1221
        %1223 = vmatmul.f32.gmra.mxu0 %v1083
        %v1224 = vpop.f32.mrf.mxu0
        %v1225 = vadd.f32 0.0, %v1224
        %1226 = vmatmul.f32.gmra.mxu0 %v1085
        %v1227 = vpop.f32.mrf.mxu0
        %v1228 = vadd.f32 0.0, %v1227
        %1229 = vdwg.mxu0
        %1230 = vmatpush.msra.mxu0 0.0
        %1231 = vmatpush.msra.mxu0 0.0
        %1232 = vmatpush.msra.mxu0 0.0
        %1233 = vmatpush.msra.mxu0 0.0
        %1234 = vmatpush.msra.mxu0 0.0
        %1235 = vmatpush.msra.mxu0 0.0
        %1236 = vmatpush.msra.mxu0 0.0
        %1237 = vmatpush.msra.mxu0 0.0
        %1238 = vmatpush.msra.mxu0 0.0
        %1239 = vmatpush.msra.mxu0 0.0
        %1240 = vmatpush.msra.mxu0 0.0
        %1241 = vmatpush.msra.mxu0 %v1200
        %1242 = vmatpush.msra.mxu0 %v1199
        %1243 = vmatpush.msra.mxu0 %v1198
        %1244 = vmatpush.msra.mxu0 %v1197
        %1245 = vmatpush.msra.mxu0 %v1196
        %1246 = vmatmul.f32.gmra.mxu0 %v1110
        %v1247 = vpop.f32.mrf.mxu0
        %v1248 = vadd.f32 %v1219, %v1247
        %1249 = vmatmul.f32.gmra.mxu0 %v1113
        %v1250 = vpop.f32.mrf.mxu0
        %v1251 = vadd.f32 %v1222, %v1250
        %1252 = vmatmul.f32.gmra.mxu0 %v1116
        %v1253 = vpop.f32.mrf.mxu0
        %v1254 = vadd.f32 %v1225, %v1253
        %1255 = vmatmul.f32.gmra.mxu0 %v1119
        %v1256 = vpop.f32.mrf.mxu0
        %v1257 = vadd.f32 %v1228, %v1256
        %1258 = vdwg.mxu0
        %v1259 = vmax.f32 %v1168, %v1248
        %v1260 = vmax.f32 %v1171, %v1251
        %v1261 = vmax.f32 %v1174, %v1254
        %v1262 = vmax.f32 %v1177, %v1257
        %v1263 = vld [vmem:[%s3] sm:$0xff]
        %v1264 = vld [vmem:[%s3 + $0x8] sm:$0x3f]
        %vm1265 = vcmask 228352
        %v1267 = vsel %vm1265, %v1263, 0
        %v1270 = vsel %vm1265, %v1264, 0
        %vm1272 = vcmask 1043456
        %v1274 = vsel %vm1272, %v1262, 0
        %1276 = vmatpush.msra.mxu0 0.0
        %1277 = vmatpush.msra.mxu0 0.0
        %1278 = vmatpush.msra.mxu0 0.0
        %1279 = vmatpush.msra.mxu0 0.0
        %1280 = vmatpush.msra.mxu0 0.0
        %1281 = vmatpush.msra.mxu0 0.0
        %1282 = vmatpush.msra.mxu0 0.0
        %1283 = vmatpush.msra.mxu0 0.0
        %1284 = vmatpush.msra.mxu0 0.0
        %1285 = vmatpush.msra.mxu0 0.0
        %1286 = vmatpush.msra.mxu0 0.0
        %1287 = vmatpush.msra.mxu0 0.0
        %1288 = vmatpush.msra.mxu0 %v1274
        %1289 = vmatpush.msra.mxu0 %v1261
        %1290 = vmatpush.msra.mxu0 %v1260
        %1291 = vmatpush.msra.mxu0 %v1259
        %1292 = vmatmul.f32.gmra.mxu0 %v1267
        %v1293 = vpop.f32.mrf.mxu0
        %v1294 = vadd.f32 0.0, %v1293
        %1295 = vmatmul.f32.gmra.mxu0 %v1270
        %v1296 = vpop.f32.mrf.mxu0
        %v1297 = vadd.f32 0.0, %v1296
        %1298 = vdwg.mxu0
        %s1299 = scalar_lea.vmem %s3, 16
        %v1300 = vld [vmem:[%s1299] sm:$0xff]
        %v1301 = vld [vmem:[%s1299 + $0x8] sm:$0x3f]
        %v1303 = vsel %vm1265, %v1300, 0
        %v1306 = vsel %vm1265, %v1301, 0
        %1308 = vmatpush.msra.mxu0 0.0
        %1309 = vmatpush.msra.mxu0 0.0
        %1310 = vmatpush.msra.mxu0 0.0
        %1311 = vmatpush.msra.mxu0 0.0
        %1312 = vmatpush.msra.mxu0 0.0
        %1313 = vmatpush.msra.mxu0 0.0
        %1314 = vmatpush.msra.mxu0 0.0
        %1315 = vmatpush.msra.mxu0 0.0
        %1316 = vmatpush.msra.mxu0 0.0
        %1317 = vmatpush.msra.mxu0 0.0
        %1318 = vmatpush.msra.mxu0 0.0
        %1319 = vmatpush.msra.mxu0 0.0
        %1320 = vmatpush.msra.mxu0 %v1274
        %1321 = vmatpush.msra.mxu0 %v1261
        %1322 = vmatpush.msra.mxu0 %v1260
        %1323 = vmatpush.msra.mxu0 %v1259
        %1324 = vmatmul.f32.gmra.mxu0 %v1303
        %v1325 = vpop.f32.mrf.mxu0
        %v1326 = vadd.f32 0.0, %v1325
        %1327 = vmatmul.f32.gmra.mxu0 %v1306
        %v1328 = vpop.f32.mrf.mxu0
        %v1329 = vadd.f32 0.0, %v1328
        %1330 = vdwg.mxu0
        %v1331 = vmax.f32 %v1294, %v1326
        %v1332 = vmax.f32 %v1297, %v1329
        %v1333 = vld [vmem:[%s5] sm:$0xff]
        %v1334 = vld [vmem:[%s5 + $0x8] sm:$0x3]
        %vm1335 = vcmask 113664
        %v1337 = vsel %vm1335, %v1333, 0
        %v1340 = vsel %vm1335, %v1334, 0
        %vm1342 = vcmask 1045504
        %v1344 = vsel %vm1342, %v1332, 0
        %1346 = vmatpush.msra.mxu0 0.0
        %1347 = vmatpush.msra.mxu0 0.0
        %1348 = vmatpush.msra.mxu0 0.0
        %1349 = vmatpush.msra.mxu0 0.0
        %1350 = vmatpush.msra.mxu0 0.0
        %1351 = vmatpush.msra.mxu0 0.0
        %1352 = vmatpush.msra.mxu0 0.0
        %1353 = vmatpush.msra.mxu0 0.0
        %1354 = vmatpush.msra.mxu0 0.0
        %1355 = vmatpush.msra.mxu0 0.0
        %1356 = vmatpush.msra.mxu0 0.0
        %1357 = vmatpush.msra.mxu0 0.0
        %1358 = vmatpush.msra.mxu0 0.0
        %1359 = vmatpush.msra.mxu0 0.0
        %1360 = vmatpush.msra.mxu0 %v1344
        %1361 = vmatpush.msra.mxu0 %v1331
        %1362 = vmatmul.f32.gmra.mxu0 %v1337
        %v1363 = vpop.f32.mrf.mxu0
        %v1364 = vadd.f32 0.0, %v1363
        %1365 = vmatmul.f32.gmra.mxu0 %v1340
        %v1366 = vpop.f32.mrf.mxu0
        %v1367 = vadd.f32 0.0, %v1366
        %1368 = vdwg.mxu0
        %v1369 = vld [vmem:[%s6] sm:$0xff]
        %v1370 = vld [vmem:[%s6 + $0x8] sm:$0xff]
        %v1371 = vld [vmem:[%s6 + $0x10] sm:$0xff]
        %v1372 = vld [vmem:[%s6 + $0x18] sm:$0xff]
        %v1373 = vld [vmem:[%s6 + $0x20] sm:$0xff]
        %v1374 = vld [vmem:[%s6 + $0x28] sm:$0xff]
        %v1375 = vld [vmem:[%s6 + $0x30] sm:$0xff]
        %v1376 = vld [vmem:[%s6 + $0x38] sm:$0xff]
        %v1377 = vld [vmem:[%s6 + $0x40] sm:$0xff]
        %v1378 = vld [vmem:[%s6 + $0x48] sm:$0xff]
        %v1379 = vld [vmem:[%s6 + $0x50] sm:$0xff]
        %v1380 = vld [vmem:[%s6 + $0x58] sm:$0xff]
        %v1381 = vld [vmem:[%s6 + $0x60] sm:$0xff]
        %v1382 = vld [vmem:[%s6 + $0x68] sm:$0xff]
        %v1383 = vld [vmem:[%s6 + $0x70] sm:$0xff]
        %v1384 = vld [vmem:[%s6 + $0x78] sm:$0xff]
        %v1385 = vld [vmem:[%s6 + $0x80] sm:$0xff]
        %v1386 = vld [vmem:[%s6 + $0x88] sm:$0xff]
        %v1387 = vld [vmem:[%s6 + $0x90] sm:$0xff]
        %v1388 = vld [vmem:[%s6 + $0x98] sm:$0xff]
        %v1389 = vld [vmem:[%s6 + $0xa0] sm:$0xf]
        %v1390 = vld [vmem:[%s6 + $0xa8] sm:$0xf]
        %s1391 = scalar_lea.vmem %s5, 16
        %v1392 = vld [vmem:[%s1391] sm:$0xff]
        %v1393 = vld [vmem:[%s1391 + $0x8] sm:$0x3]
        %v1395 = vsel %vm1335, %v1392, 0
        %v1398 = vsel %vm1335, %v1393, 0
        %1400 = vmatpush.msra.mxu0 0.0
        %1401 = vmatpush.msra.mxu0 0.0
        %1402 = vmatpush.msra.mxu0 0.0
        %1403 = vmatpush.msra.mxu0 0.0
        %1404 = vmatpush.msra.mxu0 0.0
        %1405 = vmatpush.msra.mxu0 0.0
        %1406 = vmatpush.msra.mxu0 0.0
        %1407 = vmatpush.msra.mxu0 0.0
        %1408 = vmatpush.msra.mxu0 0.0
        %1409 = vmatpush.msra.mxu0 0.0
        %1410 = vmatpush.msra.mxu0 0.0
        %1411 = vmatpush.msra.mxu0 0.0
        %1412 = vmatpush.msra.mxu0 0.0
        %1413 = vmatpush.msra.mxu0 0.0
        %1414 = vmatpush.msra.mxu0 %v1344
        %1415 = vmatpush.msra.mxu0 %v1331
        %1416 = vmatmul.f32.gmra.mxu0 %v1395
        %v1417 = vpop.f32.mrf.mxu0
        %v1418 = vadd.f32 0.0, %v1417
        %1419 = vmatmul.f32.gmra.mxu0 %v1398
        %v1420 = vpop.f32.mrf.mxu0
        %v1421 = vadd.f32 0.0, %v1420
        %1422 = vdwg.mxu0
        %s1423 = scalar_lea.vmem %s6, 176
        %v1424 = vld [vmem:[%s1423] sm:$0xff]
        %v1425 = vld [vmem:[%s1423 + $0x8] sm:$0xff]
        %v1426 = vld [vmem:[%s1423 + $0x10] sm:$0xff]
        %v1427 = vld [vmem:[%s1423 + $0x18] sm:$0xff]
        %v1428 = vld [vmem:[%s1423 + $0x20] sm:$0xff]
        %v1429 = vld [vmem:[%s1423 + $0x28] sm:$0xff]
        %v1430 = vld [vmem:[%s1423 + $0x30] sm:$0xff]
        %v1431 = vld [vmem:[%s1423 + $0x38] sm:$0xff]
        %v1432 = vld [vmem:[%s1423 + $0x40] sm:$0xff]
        %v1433 = vld [vmem:[%s1423 + $0x48] sm:$0xff]
        %v1434 = vld [vmem:[%s1423 + $0x50] sm:$0xff]
        %v1435 = vld [vmem:[%s1423 + $0x58] sm:$0xff]
        %v1436 = vld [vmem:[%s1423 + $0x60] sm:$0xff]
        %v1437 = vld [vmem:[%s1423 + $0x68] sm:$0xff]
        %v1438 = vld [vmem:[%s1423 + $0x70] sm:$0xff]
        %v1439 = vld [vmem:[%s1423 + $0x78] sm:$0xff]
        %v1440 = vld [vmem:[%s1423 + $0x80] sm:$0xff]
        %v1441 = vld [vmem:[%s1423 + $0x88] sm:$0xff]
        %v1442 = vld [vmem:[%s1423 + $0x90] sm:$0xff]
        %v1443 = vld [vmem:[%s1423 + $0x98] sm:$0xff]
        %v1444 = vld [vmem:[%s1423 + $0xa0] sm:$0xf]
        %v1445 = vld [vmem:[%s1423 + $0xa8] sm:$0xf]
        %vm1446 = vcmask 687104
        %v1448 = vsel %vm1446, %v1418, 0
        %v1451 = vsel %vm1446, %v1421, 0
        %v1454 = vsel %vm1272, %v1444, 0
        %v1457 = vsel %vm1272, %v1445, 0
        %1459 = vmatpush.msra.mxu0 0.0
        %1460 = vmatpush.msra.mxu0 0.0
        %1461 = vmatpush.msra.mxu0 0.0
        %1462 = vmatpush.msra.mxu0 0.0
        %1463 = vmatpush.msra.mxu0 0.0
        %1464 = vmatpush.msra.mxu0 %v1454
        %1465 = vmatpush.msra.mxu0 %v1442
        %1466 = vmatpush.msra.mxu0 %v1440
        %1467 = vmatpush.msra.mxu0 %v1438
        %1468 = vmatpush.msra.mxu0 %v1436
        %1469 = vmatpush.msra.mxu0 %v1434
        %1470 = vmatpush.msra.mxu0 %v1432
        %1471 = vmatpush.msra.mxu0 %v1430
        %1472 = vmatpush.msra.mxu0 %v1428
        %1473 = vmatpush.msra.mxu0 %v1426
        %1474 = vmatpush.msra.mxu0 %v1424
        %1475 = vmatmul.f32.gmra.mxu0 %v1448
        %v1476 = vpop.f32.mrf.mxu0
        %v1477 = vadd.f32 0.0, %v1476
        %1478 = vmatmul.f32.gmra.mxu0 %v1451
        %v1479 = vpop.f32.mrf.mxu0
        %v1480 = vadd.f32 0.0, %v1479
        %1481 = vdwg.mxu0
        %1482 = vmatpush.msra.mxu0 0.0
        %1483 = vmatpush.msra.mxu0 0.0
        %1484 = vmatpush.msra.mxu0 0.0
        %1485 = vmatpush.msra.mxu0 0.0
        %1486 = vmatpush.msra.mxu0 0.0
        %1487 = vmatpush.msra.mxu0 %v1457
        %1488 = vmatpush.msra.mxu0 %v1443
        %1489 = vmatpush.msra.mxu0 %v1441
        %1490 = vmatpush.msra.mxu0 %v1439
        %1491 = vmatpush.msra.mxu0 %v1437
        %1492 = vmatpush.msra.mxu0 %v1435
        %1493 = vmatpush.msra.mxu0 %v1433
        %1494 = vmatpush.msra.mxu0 %v1431
        %1495 = vmatpush.msra.mxu0 %v1429
        %1496 = vmatpush.msra.mxu0 %v1427
        %1497 = vmatpush.msra.mxu0 %v1425
        %1498 = vmatmul.f32.gmra.mxu0 %v1448
        %v1499 = vpop.f32.mrf.mxu0
        %v1500 = vadd.f32 0.0, %v1499
        %1501 = vmatmul.f32.gmra.mxu0 %v1451
        %v1502 = vpop.f32.mrf.mxu0
        %v1503 = vadd.f32 0.0, %v1502
        %1504 = vdwg.mxu0
        %v1506 = vsel %vm1446, %v1364, 0
        %v1509 = vsel %vm1446, %v1367, 0
        %v1512 = vsel %vm1272, %v1389, 0
        %v1515 = vsel %vm1272, %v1390, 0
        %1517 = vmatpush.msra.mxu0 0.0
        %1518 = vmatpush.msra.mxu0 0.0
        %1519 = vmatpush.msra.mxu0 0.0
        %1520 = vmatpush.msra.mxu0 0.0
        %1521 = vmatpush.msra.mxu0 0.0
        %1522 = vmatpush.msra.mxu0 %v1512
        %1523 = vmatpush.msra.mxu0 %v1387
        %1524 = vmatpush.msra.mxu0 %v1385
        %1525 = vmatpush.msra.mxu0 %v1383
        %1526 = vmatpush.msra.mxu0 %v1381
        %1527 = vmatpush.msra.mxu0 %v1379
        %1528 = vmatpush.msra.mxu0 %v1377
        %1529 = vmatpush.msra.mxu0 %v1375
        %1530 = vmatpush.msra.mxu0 %v1373
        %1531 = vmatpush.msra.mxu0 %v1371
        %1532 = vmatpush.msra.mxu0 %v1369
        %1533 = vmatmul.f32.gmra.mxu0 %v1506
        %v1534 = vpop.f32.mrf.mxu0
        %v1535 = vadd.f32 %v1477, %v1534
        %1536 = vmatmul.f32.gmra.mxu0 %v1509
        %v1537 = vpop.f32.mrf.mxu0
        %v1538 = vadd.f32 %v1480, %v1537
        %1539 = vdwg.mxu0
        %1540 = vmatpush.msra.mxu0 0.0
        %1541 = vmatpush.msra.mxu0 0.0
        %1542 = vmatpush.msra.mxu0 0.0
        %1543 = vmatpush.msra.mxu0 0.0
        %1544 = vmatpush.msra.mxu0 0.0
        %1545 = vmatpush.msra.mxu0 %v1515
        %1546 = vmatpush.msra.mxu0 %v1388
        %1547 = vmatpush.msra.mxu0 %v1386
        %1548 = vmatpush.msra.mxu0 %v1384
        %1549 = vmatpush.msra.mxu0 %v1382
        %1550 = vmatpush.msra.mxu0 %v1380
        %1551 = vmatpush.msra.mxu0 %v1378
        %1552 = vmatpush.msra.mxu0 %v1376
        %1553 = vmatpush.msra.mxu0 %v1374
        %1554 = vmatpush.msra.mxu0 %v1372
        %1555 = vmatpush.msra.mxu0 %v1370
        %1556 = vmatmul.f32.gmra.mxu0 %v1506
        %v1557 = vpop.f32.mrf.mxu0
        %v1558 = vadd.f32 %v1500, %v1557
        %1559 = vmatmul.f32.gmra.mxu0 %v1509
        %v1560 = vpop.f32.mrf.mxu0
        %v1561 = vadd.f32 %v1503, %v1560
        %1562 = vdwg.mxu0
        %s1563 = scalar_lea.vmem %s5, 32
        %v1564 = vld [vmem:[%s1563] sm:$0xff]
        %v1565 = vld [vmem:[%s1563 + $0x8] sm:$0x3]
        %v1567 = vsel %vm1335, %v1564, 0
        %v1570 = vsel %vm1335, %v1565, 0
        %1572 = vmatpush.msra.mxu0 0.0
        %1573 = vmatpush.msra.mxu0 0.0
        %1574 = vmatpush.msra.mxu0 0.0
        %1575 = vmatpush.msra.mxu0 0.0
        %1576 = vmatpush.msra.mxu0 0.0
        %1577 = vmatpush.msra.mxu0 0.0
        %1578 = vmatpush.msra.mxu0 0.0
        %1579 = vmatpush.msra.mxu0 0.0
        %1580 = vmatpush.msra.mxu0 0.0
        %1581 = vmatpush.msra.mxu0 0.0
        %1582 = vmatpush.msra.mxu0 0.0
        %1583 = vmatpush.msra.mxu0 0.0
        %1584 = vmatpush.msra.mxu0 0.0
        %1585 = vmatpush.msra.mxu0 0.0
        %1586 = vmatpush.msra.mxu0 %v1344
        %1587 = vmatpush.msra.mxu0 %v1331
        %1588 = vmatmul.f32.gmra.mxu0 %v1567
        %v1589 = vpop.f32.mrf.mxu0
        %v1590 = vadd.f32 0.0, %v1589
        %1591 = vmatmul.f32.gmra.mxu0 %v1570
        %v1592 = vpop.f32.mrf.mxu0
        %v1593 = vadd.f32 0.0, %v1592
        %1594 = vdwg.mxu0
        %s1595 = scalar_lea.vmem %s6, 352
        %v1596 = vld [vmem:[%s1595] sm:$0xff]
        %v1597 = vld [vmem:[%s1595 + $0x8] sm:$0xff]
        %v1598 = vld [vmem:[%s1595 + $0x10] sm:$0xff]
        %v1599 = vld [vmem:[%s1595 + $0x18] sm:$0xff]
        %v1600 = vld [vmem:[%s1595 + $0x20] sm:$0xff]
        %v1601 = vld [vmem:[%s1595 + $0x28] sm:$0xff]
        %v1602 = vld [vmem:[%s1595 + $0x30] sm:$0xff]
        %v1603 = vld [vmem:[%s1595 + $0x38] sm:$0xff]
        %v1604 = vld [vmem:[%s1595 + $0x40] sm:$0xff]
        %v1605 = vld [vmem:[%s1595 + $0x48] sm:$0xff]
        %v1606 = vld [vmem:[%s1595 + $0x50] sm:$0xff]
        %v1607 = vld [vmem:[%s1595 + $0x58] sm:$0xff]
        %v1608 = vld [vmem:[%s1595 + $0x60] sm:$0xff]
        %v1609 = vld [vmem:[%s1595 + $0x68] sm:$0xff]
        %v1610 = vld [vmem:[%s1595 + $0x70] sm:$0xff]
        %v1611 = vld [vmem:[%s1595 + $0x78] sm:$0xff]
        %v1612 = vld [vmem:[%s1595 + $0x80] sm:$0xff]
        %v1613 = vld [vmem:[%s1595 + $0x88] sm:$0xff]
        %v1614 = vld [vmem:[%s1595 + $0x90] sm:$0xff]
        %v1615 = vld [vmem:[%s1595 + $0x98] sm:$0xff]
        %v1616 = vld [vmem:[%s1595 + $0xa0] sm:$0xf]
        %v1617 = vld [vmem:[%s1595 + $0xa8] sm:$0xf]
        %v1619 = vsel %vm1446, %v1590, 0
        %v1622 = vsel %vm1446, %v1593, 0
        %v1625 = vsel %vm1272, %v1616, 0
        %v1628 = vsel %vm1272, %v1617, 0
        %1630 = vmatpush.msra.mxu0 0.0
        %1631 = vmatpush.msra.mxu0 0.0
        %1632 = vmatpush.msra.mxu0 0.0
        %1633 = vmatpush.msra.mxu0 0.0
        %1634 = vmatpush.msra.mxu0 0.0
        %1635 = vmatpush.msra.mxu0 %v1625
        %1636 = vmatpush.msra.mxu0 %v1614
        %1637 = vmatpush.msra.mxu0 %v1612
        %1638 = vmatpush.msra.mxu0 %v1610
        %1639 = vmatpush.msra.mxu0 %v1608
        %1640 = vmatpush.msra.mxu0 %v1606
        %1641 = vmatpush.msra.mxu0 %v1604
        %1642 = vmatpush.msra.mxu0 %v1602
        %1643 = vmatpush.msra.mxu0 %v1600
        %1644 = vmatpush.msra.mxu0 %v1598
        %1645 = vmatpush.msra.mxu0 %v1596
        %1646 = vmatmul.f32.gmra.mxu0 %v1619
        %v1647 = vpop.f32.mrf.mxu0
        %v1648 = vadd.f32 0.0, %v1647
        %1649 = vmatmul.f32.gmra.mxu0 %v1622
        %v1650 = vpop.f32.mrf.mxu0
        %v1651 = vadd.f32 0.0, %v1650
        %1652 = vdwg.mxu0
        %1653 = vmatpush.msra.mxu0 0.0
        %1654 = vmatpush.msra.mxu0 0.0
        %1655 = vmatpush.msra.mxu0 0.0
        %1656 = vmatpush.msra.mxu0 0.0
        %1657 = vmatpush.msra.mxu0 0.0
        %1658 = vmatpush.msra.mxu0 %v1628
        %1659 = vmatpush.msra.mxu0 %v1615
        %1660 = vmatpush.msra.mxu0 %v1613
        %1661 = vmatpush.msra.mxu0 %v1611
        %1662 = vmatpush.msra.mxu0 %v1609
        %1663 = vmatpush.msra.mxu0 %v1607
        %1664 = vmatpush.msra.mxu0 %v1605
        %1665 = vmatpush.msra.mxu0 %v1603
        %1666 = vmatpush.msra.mxu0 %v1601
        %1667 = vmatpush.msra.mxu0 %v1599
        %1668 = vmatpush.msra.mxu0 %v1597
        %1669 = vmatmul.f32.gmra.mxu0 %v1619
        %v1670 = vpop.f32.mrf.mxu0
        %v1671 = vadd.f32 0.0, %v1670
        %1672 = vmatmul.f32.gmra.mxu0 %v1622
        %v1673 = vpop.f32.mrf.mxu0
        %v1674 = vadd.f32 0.0, %v1673
        %1675 = vdwg.mxu0
        %v1676 = vadd.f32 %v1535, %v1648
        %v1677 = vadd.f32 %v1558, %v1671
        %v1678 = vadd.f32 %v1538, %v1651
        %v1679 = vadd.f32 %v1561, %v1674
        %s1680 = scalar_lea.vmem %s5, 48
        %v1681 = vld [vmem:[%s1680] sm:$0xff]
        %v1682 = vld [vmem:[%s1680 + $0x8] sm:$0x3]
        %v1684 = vsel %vm1335, %v1681, 0
        %v1687 = vsel %vm1335, %v1682, 0
        %1689 = vmatpush.msra.mxu0 0.0
        %1690 = vmatpush.msra.mxu0 0.0
        %1691 = vmatpush.msra.mxu0 0.0
        %1692 = vmatpush.msra.mxu0 0.0
        %1693 = vmatpush.msra.mxu0 0.0
        %1694 = vmatpush.msra.mxu0 0.0
        %1695 = vmatpush.msra.mxu0 0.0
        %1696 = vmatpush.msra.mxu0 0.0
        %1697 = vmatpush.msra.mxu0 0.0
        %1698 = vmatpush.msra.mxu0 0.0
        %1699 = vmatpush.msra.mxu0 0.0
        %1700 = vmatpush.msra.mxu0 0.0
        %1701 = vmatpush.msra.mxu0 0.0
        %1702 = vmatpush.msra.mxu0 0.0
        %1703 = vmatpush.msra.mxu0 %v1344
        %1704 = vmatpush.msra.mxu0 %v1331
        %1705 = vmatmul.f32.gmra.mxu0 %v1684
        %v1706 = vpop.f32.mrf.mxu0
        %v1707 = vadd.f32 0.0, %v1706
        %1708 = vmatmul.f32.gmra.mxu0 %v1687
        %v1709 = vpop.f32.mrf.mxu0
        %v1710 = vadd.f32 0.0, %v1709
        %1711 = vdwg.mxu0
        %s1712 = scalar_lea.vmem %s6, 528
        %v1713 = vld [vmem:[%s1712] sm:$0xff]
        %v1714 = vld [vmem:[%s1712 + $0x8] sm:$0xff]
        %v1715 = vld [vmem:[%s1712 + $0x10] sm:$0xff]
        %v1716 = vld [vmem:[%s1712 + $0x18] sm:$0xff]
        %v1717 = vld [vmem:[%s1712 + $0x20] sm:$0xff]
        %v1718 = vld [vmem:[%s1712 + $0x28] sm:$0xff]
        %v1719 = vld [vmem:[%s1712 + $0x30] sm:$0xff]
        %v1720 = vld [vmem:[%s1712 + $0x38] sm:$0xff]
        %v1721 = vld [vmem:[%s1712 + $0x40] sm:$0xff]
        %v1722 = vld [vmem:[%s1712 + $0x48] sm:$0xff]
        %v1723 = vld [vmem:[%s1712 + $0x50] sm:$0xff]
        %v1724 = vld [vmem:[%s1712 + $0x58] sm:$0xff]
        %v1725 = vld [vmem:[%s1712 + $0x60] sm:$0xff]
        %v1726 = vld [vmem:[%s1712 + $0x68] sm:$0xff]
        %v1727 = vld [vmem:[%s1712 + $0x70] sm:$0xff]
        %v1728 = vld [vmem:[%s1712 + $0x78] sm:$0xff]
        %v1729 = vld [vmem:[%s1712 + $0x80] sm:$0xff]
        %v1730 = vld [vmem:[%s1712 + $0x88] sm:$0xff]
        %v1731 = vld [vmem:[%s1712 + $0x90] sm:$0xff]
        %v1732 = vld [vmem:[%s1712 + $0x98] sm:$0xff]
        %v1733 = vld [vmem:[%s1712 + $0xa0] sm:$0xf]
        %v1734 = vld [vmem:[%s1712 + $0xa8] sm:$0xf]
        %v1736 = vsel %vm1446, %v1707, 0
        %v1739 = vsel %vm1446, %v1710, 0
        %v1742 = vsel %vm1272, %v1733, 0
        %v1745 = vsel %vm1272, %v1734, 0
        %1747 = vmatpush.msra.mxu0 0.0
        %1748 = vmatpush.msra.mxu0 0.0
        %1749 = vmatpush.msra.mxu0 0.0
        %1750 = vmatpush.msra.mxu0 0.0
        %1751 = vmatpush.msra.mxu0 0.0
        %1752 = vmatpush.msra.mxu0 %v1742
        %1753 = vmatpush.msra.mxu0 %v1731
        %1754 = vmatpush.msra.mxu0 %v1729
        %1755 = vmatpush.msra.mxu0 %v1727
        %1756 = vmatpush.msra.mxu0 %v1725
        %1757 = vmatpush.msra.mxu0 %v1723
        %1758 = vmatpush.msra.mxu0 %v1721
        %1759 = vmatpush.msra.mxu0 %v1719
        %1760 = vmatpush.msra.mxu0 %v1717
        %1761 = vmatpush.msra.mxu0 %v1715
        %1762 = vmatpush.msra.mxu0 %v1713
        %1763 = vmatmul.f32.gmra.mxu0 %v1736
        %v1764 = vpop.f32.mrf.mxu0
        %v1765 = vadd.f32 0.0, %v1764
        %1766 = vmatmul.f32.gmra.mxu0 %v1739
        %v1767 = vpop.f32.mrf.mxu0
        %v1768 = vadd.f32 0.0, %v1767
        %1769 = vdwg.mxu0
        %1770 = vmatpush.msra.mxu0 0.0
        %1771 = vmatpush.msra.mxu0 0.0
        %1772 = vmatpush.msra.mxu0 0.0
        %1773 = vmatpush.msra.mxu0 0.0
        %1774 = vmatpush.msra.mxu0 0.0
        %1775 = vmatpush.msra.mxu0 %v1745
        %1776 = vmatpush.msra.mxu0 %v1732
        %1777 = vmatpush.msra.mxu0 %v1730
        %1778 = vmatpush.msra.mxu0 %v1728
        %1779 = vmatpush.msra.mxu0 %v1726
        %1780 = vmatpush.msra.mxu0 %v1724
        %1781 = vmatpush.msra.mxu0 %v1722
        %1782 = vmatpush.msra.mxu0 %v1720
        %1783 = vmatpush.msra.mxu0 %v1718
        %1784 = vmatpush.msra.mxu0 %v1716
        %1785 = vmatpush.msra.mxu0 %v1714
        %1786 = vmatmul.f32.gmra.mxu0 %v1736
        %v1787 = vpop.f32.mrf.mxu0
        %v1788 = vadd.f32 0.0, %v1787
        %1789 = vmatmul.f32.gmra.mxu0 %v1739
        %v1790 = vpop.f32.mrf.mxu0
        %v1791 = vadd.f32 0.0, %v1790
        %1792 = vdwg.mxu0
        %v1793 = vadd.f32 %v1676, %v1765
        %v1794 = vadd.f32 %v1677, %v1788
        %v1795 = vadd.f32 %v1678, %v1768
        %v1796 = vadd.f32 %v1679, %v1791
        %s1797 = scalar_lea.vmem %s5, 64
        %v1798 = vld [vmem:[%s1797] sm:$0xff]
        %v1799 = vld [vmem:[%s1797 + $0x8] sm:$0x3]
        %v1801 = vsel %vm1335, %v1798, 0
        %v1804 = vsel %vm1335, %v1799, 0
        %1806 = vmatpush.msra.mxu0 0.0
        %1807 = vmatpush.msra.mxu0 0.0
        %1808 = vmatpush.msra.mxu0 0.0
        %1809 = vmatpush.msra.mxu0 0.0
        %1810 = vmatpush.msra.mxu0 0.0
        %1811 = vmatpush.msra.mxu0 0.0
        %1812 = vmatpush.msra.mxu0 0.0
        %1813 = vmatpush.msra.mxu0 0.0
        %1814 = vmatpush.msra.mxu0 0.0
        %1815 = vmatpush.msra.mxu0 0.0
        %1816 = vmatpush.msra.mxu0 0.0
        %1817 = vmatpush.msra.mxu0 0.0
        %1818 = vmatpush.msra.mxu0 0.0
        %1819 = vmatpush.msra.mxu0 0.0
        %1820 = vmatpush.msra.mxu0 %v1344
        %1821 = vmatpush.msra.mxu0 %v1331
        %1822 = vmatmul.f32.gmra.mxu0 %v1801
        %v1823 = vpop.f32.mrf.mxu0
        %v1824 = vadd.f32 0.0, %v1823
        %1825 = vmatmul.f32.gmra.mxu0 %v1804
        %v1826 = vpop.f32.mrf.mxu0
        %v1827 = vadd.f32 0.0, %v1826
        %1828 = vdwg.mxu0
        %s1829 = scalar_lea.vmem %s6, 704
        %v1830 = vld [vmem:[%s1829] sm:$0xff]
        %v1831 = vld [vmem:[%s1829 + $0x8] sm:$0xff]
        %v1832 = vld [vmem:[%s1829 + $0x10] sm:$0xff]
        %v1833 = vld [vmem:[%s1829 + $0x18] sm:$0xff]
        %v1834 = vld [vmem:[%s1829 + $0x20] sm:$0xff]
        %v1835 = vld [vmem:[%s1829 + $0x28] sm:$0xff]
        %v1836 = vld [vmem:[%s1829 + $0x30] sm:$0xff]
        %v1837 = vld [vmem:[%s1829 + $0x38] sm:$0xff]
        %v1838 = vld [vmem:[%s1829 + $0x40] sm:$0xff]
        %v1839 = vld [vmem:[%s1829 + $0x48] sm:$0xff]
        %v1840 = vld [vmem:[%s1829 + $0x50] sm:$0xff]
        %v1841 = vld [vmem:[%s1829 + $0x58] sm:$0xff]
        %v1842 = vld [vmem:[%s1829 + $0x60] sm:$0xff]
        %v1843 = vld [vmem:[%s1829 + $0x68] sm:$0xff]
        %v1844 = vld [vmem:[%s1829 + $0x70] sm:$0xff]
        %v1845 = vld [vmem:[%s1829 + $0x78] sm:$0xff]
        %v1846 = vld [vmem:[%s1829 + $0x80] sm:$0xff]
        %v1847 = vld [vmem:[%s1829 + $0x88] sm:$0xff]
        %v1848 = vld [vmem:[%s1829 + $0x90] sm:$0xff]
        %v1849 = vld [vmem:[%s1829 + $0x98] sm:$0xff]
        %v1850 = vld [vmem:[%s1829 + $0xa0] sm:$0xf]
        %v1851 = vld [vmem:[%s1829 + $0xa8] sm:$0xf]
        %v1853 = vsel %vm1446, %v1824, 0
        %v1856 = vsel %vm1446, %v1827, 0
        %v1859 = vsel %vm1272, %v1850, 0
        %v1862 = vsel %vm1272, %v1851, 0
        %1864 = vmatpush.msra.mxu0 0.0
        %1865 = vmatpush.msra.mxu0 0.0
        %1866 = vmatpush.msra.mxu0 0.0
        %1867 = vmatpush.msra.mxu0 0.0
        %1868 = vmatpush.msra.mxu0 0.0
        %1869 = vmatpush.msra.mxu0 %v1859
        %1870 = vmatpush.msra.mxu0 %v1848
        %1871 = vmatpush.msra.mxu0 %v1846
        %1872 = vmatpush.msra.mxu0 %v1844
        %1873 = vmatpush.msra.mxu0 %v1842
        %1874 = vmatpush.msra.mxu0 %v1840
        %1875 = vmatpush.msra.mxu0 %v1838
        %1876 = vmatpush.msra.mxu0 %v1836
        %1877 = vmatpush.msra.mxu0 %v1834
        %1878 = vmatpush.msra.mxu0 %v1832
        %1879 = vmatpush.msra.mxu0 %v1830
        %1880 = vmatmul.f32.gmra.mxu0 %v1853
        %v1881 = vpop.f32.mrf.mxu0
        %v1882 = vadd.f32 0.0, %v1881
        %1883 = vmatmul.f32.gmra.mxu0 %v1856
        %v1884 = vpop.f32.mrf.mxu0
        %v1885 = vadd.f32 0.0, %v1884
        %1886 = vdwg.mxu0
        %1887 = vmatpush.msra.mxu0 0.0
        %1888 = vmatpush.msra.mxu0 0.0
        %1889 = vmatpush.msra.mxu0 0.0
        %1890 = vmatpush.msra.mxu0 0.0
        %1891 = vmatpush.msra.mxu0 0.0
        %1892 = vmatpush.msra.mxu0 %v1862
        %1893 = vmatpush.msra.mxu0 %v1849
        %1894 = vmatpush.msra.mxu0 %v1847
        %1895 = vmatpush.msra.mxu0 %v1845
        %1896 = vmatpush.msra.mxu0 %v1843
        %1897 = vmatpush.msra.mxu0 %v1841
        %1898 = vmatpush.msra.mxu0 %v1839
        %1899 = vmatpush.msra.mxu0 %v1837
        %1900 = vmatpush.msra.mxu0 %v1835
        %1901 = vmatpush.msra.mxu0 %v1833
        %1902 = vmatpush.msra.mxu0 %v1831
        %1903 = vmatmul.f32.gmra.mxu0 %v1853
        %v1904 = vpop.f32.mrf.mxu0
        %v1905 = vadd.f32 0.0, %v1904
        %1906 = vmatmul.f32.gmra.mxu0 %v1856
        %v1907 = vpop.f32.mrf.mxu0
        %v1908 = vadd.f32 0.0, %v1907
        %1909 = vdwg.mxu0
        %v1910 = vadd.f32 %v1793, %v1882
        %v1911 = vadd.f32 %v1794, %v1905
        %v1912 = vadd.f32 %v1795, %v1885
        %v1913 = vadd.f32 %v1796, %v1908
        %v1914 = vld [vmem:[%s7] sm:$0x3]
        %v1916 = vperm.slane %v1914, 0
        %v1917 = vperm.slane %v1914, 1
        %v1920 = vadd.f32 %v1910, %v1916
        %v1921 = vadd.f32 %v1911, %v1917
        %v1922 = vadd.f32 %v1912, %v1916
        %v1923 = vadd.f32 %v1913, %v1917
        %v1924 = vmax.f32 %v1920, 0.0
        %v1925 = vmax.f32 %v1921, 0.0
        %v1926 = vmax.f32 %v1922, 0.0
        %v1927 = vmax.f32 %v1923, 0.0
        %v1928 = vld [vmem:[%s9] sm:$0xff]
        %v1929 = vld [vmem:[%s9 + $0x8] sm:$0xff]
        %v1930 = vld [vmem:[%s9 + $0x10] sm:$0xff]
        %v1931 = vld [vmem:[%s9 + $0x18] sm:$0xff]
        %v1932 = vld [vmem:[%s9 + $0x20] sm:$0xff]
        %v1933 = vld [vmem:[%s9 + $0x28] sm:$0xff]
        %v1934 = vld [vmem:[%s9 + $0x30] sm:$0xff]
        %v1935 = vld [vmem:[%s9 + $0x38] sm:$0xff]
        %v1936 = vld [vmem:[%s9 + $0x40] sm:$0xff]
        %v1937 = vld [vmem:[%s9 + $0x48] sm:$0xff]
        %v1938 = vld [vmem:[%s9 + $0x50] sm:$0xff]
        %v1939 = vld [vmem:[%s9 + $0x58] sm:$0xff]
        %v1940 = vld [vmem:[%s9 + $0x60] sm:$0xff]
        %v1941 = vld [vmem:[%s9 + $0x68] sm:$0xff]
        %v1942 = vld [vmem:[%s9 + $0x70] sm:$0xff]
        %v1943 = vld [vmem:[%s9 + $0x78] sm:$0xff]
        %v1944 = vld [vmem:[%s9 + $0x80] sm:$0xff]
        %v1945 = vld [vmem:[%s9 + $0x88] sm:$0xff]
        %v1946 = vld [vmem:[%s9 + $0x90] sm:$0xff]
        %v1947 = vld [vmem:[%s9 + $0x98] sm:$0xff]
        %vm1948 = vcmask 261120
        %v1950 = vsel %vm1948, %v1925, 0
        %v1953 = vsel %vm1948, %v1927, 0
        %1955 = vmatpush.msra.mxu0 %v1943
        %1956 = vmatpush.msra.mxu0 %v1942
        %1957 = vmatpush.msra.mxu0 %v1941
        %1958 = vmatpush.msra.mxu0 %v1940
        %1959 = vmatpush.msra.mxu0 %v1939
        %1960 = vmatpush.msra.mxu0 %v1938
        %1961 = vmatpush.msra.mxu0 %v1937
        %1962 = vmatpush.msra.mxu0 %v1936
        %1963 = vmatpush.msra.mxu0 %v1935
        %1964 = vmatpush.msra.mxu0 %v1934
        %1965 = vmatpush.msra.mxu0 %v1933
        %1966 = vmatpush.msra.mxu0 %v1932
        %1967 = vmatpush.msra.mxu0 %v1931
        %1968 = vmatpush.msra.mxu0 %v1930
        %1969 = vmatpush.msra.mxu0 %v1929
        %1970 = vmatpush.msra.mxu0 %v1928
        %1971 = vmatmul.f32.gmra.mxu0 %v1924
        %v1972 = vpop.f32.mrf.mxu0
        %v1973 = vadd.f32 0.0, %v1972
        %1974 = vmatmul.f32.gmra.mxu0 %v1926
        %v1975 = vpop.f32.mrf.mxu0
        %v1976 = vadd.f32 0.0, %v1975
        %1977 = vdwg.mxu0
        %1978 = vmatpush.msra.mxu0 0.0
        %1979 = vmatpush.msra.mxu0 0.0
        %1980 = vmatpush.msra.mxu0 0.0
        %1981 = vmatpush.msra.mxu0 0.0
        %1982 = vmatpush.msra.mxu0 0.0
        %1983 = vmatpush.msra.mxu0 0.0
        %1984 = vmatpush.msra.mxu0 0.0
        %1985 = vmatpush.msra.mxu0 0.0
        %1986 = vmatpush.msra.mxu0 0.0
        %1987 = vmatpush.msra.mxu0 0.0
        %1988 = vmatpush.msra.mxu0 0.0
        %1989 = vmatpush.msra.mxu0 0.0
        %1990 = vmatpush.msra.mxu0 %v1947
        %1991 = vmatpush.msra.mxu0 %v1946
        %1992 = vmatpush.msra.mxu0 %v1945
        %1993 = vmatpush.msra.mxu0 %v1944
        %1994 = vmatmul.f32.gmra.mxu0 %v1950
        %v1995 = vpop.f32.mrf.mxu0
        %v1996 = vadd.f32 %v1973, %v1995
        %1997 = vmatmul.f32.gmra.mxu0 %v1953
        %v1998 = vpop.f32.mrf.mxu0
        %v1999 = vadd.f32 %v1976, %v1998
        %2000 = vdwg.mxu0
        %s2001 = scalar_lea.vmem %s9, 160
        %v2002 = vld [vmem:[%s2001] sm:$0xff]
        %v2003 = vld [vmem:[%s2001 + $0x8] sm:$0xff]
        %v2004 = vld [vmem:[%s2001 + $0x10] sm:$0xff]
        %v2005 = vld [vmem:[%s2001 + $0x18] sm:$0xff]
        %v2006 = vld [vmem:[%s2001 + $0x20] sm:$0xff]
        %v2007 = vld [vmem:[%s2001 + $0x28] sm:$0xff]
        %v2008 = vld [vmem:[%s2001 + $0x30] sm:$0xff]
        %v2009 = vld [vmem:[%s2001 + $0x38] sm:$0xff]
        %v2010 = vld [vmem:[%s2001 + $0x40] sm:$0xff]
        %v2011 = vld [vmem:[%s2001 + $0x48] sm:$0xff]
        %v2012 = vld [vmem:[%s2001 + $0x50] sm:$0xff]
        %v2013 = vld [vmem:[%s2001 + $0x58] sm:$0xff]
        %v2014 = vld [vmem:[%s2001 + $0x60] sm:$0xff]
        %v2015 = vld [vmem:[%s2001 + $0x68] sm:$0xff]
        %v2016 = vld [vmem:[%s2001 + $0x70] sm:$0xff]
        %v2017 = vld [vmem:[%s2001 + $0x78] sm:$0xff]
        %v2018 = vld [vmem:[%s2001 + $0x80] sm:$0xff]
        %v2019 = vld [vmem:[%s2001 + $0x88] sm:$0xff]
        %v2020 = vld [vmem:[%s2001 + $0x90] sm:$0xff]
        %v2021 = vld [vmem:[%s2001 + $0x98] sm:$0xff]
        %2022 = vmatpush.msra.mxu0 %v2017
        %2023 = vmatpush.msra.mxu0 %v2016
        %2024 = vmatpush.msra.mxu0 %v2015
        %2025 = vmatpush.msra.mxu0 %v2014
        %2026 = vmatpush.msra.mxu0 %v2013
        %2027 = vmatpush.msra.mxu0 %v2012
        %2028 = vmatpush.msra.mxu0 %v2011
        %2029 = vmatpush.msra.mxu0 %v2010
        %2030 = vmatpush.msra.mxu0 %v2009
        %2031 = vmatpush.msra.mxu0 %v2008
        %2032 = vmatpush.msra.mxu0 %v2007
        %2033 = vmatpush.msra.mxu0 %v2006
        %2034 = vmatpush.msra.mxu0 %v2005
        %2035 = vmatpush.msra.mxu0 %v2004
        %2036 = vmatpush.msra.mxu0 %v2003
        %2037 = vmatpush.msra.mxu0 %v2002
        %2038 = vmatmul.f32.gmra.mxu0 %v1924
        %v2039 = vpop.f32.mrf.mxu0
        %v2040 = vadd.f32 0.0, %v2039
        %2041 = vmatmul.f32.gmra.mxu0 %v1926
        %v2042 = vpop.f32.mrf.mxu0
        %v2043 = vadd.f32 0.0, %v2042
        %2044 = vdwg.mxu0
        %2045 = vmatpush.msra.mxu0 0.0
        %2046 = vmatpush.msra.mxu0 0.0
        %2047 = vmatpush.msra.mxu0 0.0
        %2048 = vmatpush.msra.mxu0 0.0
        %2049 = vmatpush.msra.mxu0 0.0
        %2050 = vmatpush.msra.mxu0 0.0
        %2051 = vmatpush.msra.mxu0 0.0
        %2052 = vmatpush.msra.mxu0 0.0
        %2053 = vmatpush.msra.mxu0 0.0
        %2054 = vmatpush.msra.mxu0 0.0
        %2055 = vmatpush.msra.mxu0 0.0
        %2056 = vmatpush.msra.mxu0 0.0
        %2057 = vmatpush.msra.mxu0 %v2021
        %2058 = vmatpush.msra.mxu0 %v2020
        %2059 = vmatpush.msra.mxu0 %v2019
        %2060 = vmatpush.msra.mxu0 %v2018
        %2061 = vmatmul.f32.gmra.mxu0 %v1950
        %v2062 = vpop.f32.mrf.mxu0
        %v2063 = vadd.f32 %v2040, %v2062
        %2064 = vmatmul.f32.gmra.mxu0 %v1953
        %v2065 = vpop.f32.mrf.mxu0
        %v2066 = vadd.f32 %v2043, %v2065
        %2067 = vdwg.mxu0
        %v2068 = vmax.f32 %v1996, %v2063
        %v2069 = vmax.f32 %v1999, %v2066
        %v2070 = vld [vmem:[%s8] sm:$0x1f]
        %vm2071 = vcmask 80896
        %v2073 = vsel %vm2071, %v2070, 0
        %vm2075 = vcmask 1041408
        %v2077 = vsel %vm2075, %v2069, 0
        %2079 = vmatpush.msra.mxu0 0.0
        %2080 = vmatpush.msra.mxu0 0.0
        %2081 = vmatpush.msra.mxu0 0.0
        %2082 = vmatpush.msra.mxu0 0.0
        %2083 = vmatpush.msra.mxu0 0.0
        %2084 = vmatpush.msra.mxu0 0.0
        %2085 = vmatpush.msra.mxu0 0.0
        %2086 = vmatpush.msra.mxu0 0.0
        %2087 = vmatpush.msra.mxu0 0.0
        %2088 = vmatpush.msra.mxu0 0.0
        %2089 = vmatpush.msra.mxu0 0.0
        %2090 = vmatpush.msra.mxu0 0.0
        %2091 = vmatpush.msra.mxu0 0.0
        %2092 = vmatpush.msra.mxu0 0.0
        %2093 = vmatpush.msra.mxu0 %v2077
        %2094 = vmatpush.msra.mxu0 %v2068
        %2095 = vmatmul.f32.gmra.mxu0 %v2073
        %v2096 = vpop.f32.mrf.mxu0
        %v2097 = vadd.f32 0.0, %v2096
        %2098 = vdwg.mxu0
        %s2099 = scalar_lea.vmem %s8, 8
        %v2100 = vld [vmem:[%s2099] sm:$0x1f]
        %v2102 = vsel %vm2071, %v2100, 0
        %2104 = vmatpush.msra.mxu0 0.0
        %2105 = vmatpush.msra.mxu0 0.0
        %2106 = vmatpush.msra.mxu0 0.0
        %2107 = vmatpush.msra.mxu0 0.0
        %2108 = vmatpush.msra.mxu0 0.0
        %2109 = vmatpush.msra.mxu0 0.0
        %2110 = vmatpush.msra.mxu0 0.0
        %2111 = vmatpush.msra.mxu0 0.0
        %2112 = vmatpush.msra.mxu0 0.0
        %2113 = vmatpush.msra.mxu0 0.0
        %2114 = vmatpush.msra.mxu0 0.0
        %2115 = vmatpush.msra.mxu0 0.0
        %2116 = vmatpush.msra.mxu0 0.0
        %2117 = vmatpush.msra.mxu0 0.0
        %2118 = vmatpush.msra.mxu0 %v2077
        %2119 = vmatpush.msra.mxu0 %v2068
        %2120 = vmatmul.f32.gmra.mxu0 %v2102
        %v2121 = vpop.f32.mrf.mxu0
        %v2122 = vadd.f32 0.0, %v2121
        %2123 = vdwg.mxu0
        %v2124 = vmax.f32 %v2097, %v2122
        %v2125 = vld [vmem:[%s12] sm:$0x1]
        %v2126 = vld [vmem:[%s10] sm:$0x1]
        %vm2127 = vcmask 39936
        %v2129 = vsel %vm2127, %v2126, 0
        %vm2131 = vcmask 1044480
        %v2133 = vsel %vm2131, %v2124, 0
        %2135 = vmatpush.msra.mxu0 0.0
        %2136 = vmatpush.msra.mxu0 0.0
        %2137 = vmatpush.msra.mxu0 0.0
        %2138 = vmatpush.msra.mxu0 0.0
        %2139 = vmatpush.msra.mxu0 0.0
        %2140 = vmatpush.msra.mxu0 0.0
        %2141 = vmatpush.msra.mxu0 0.0
        %2142 = vmatpush.msra.mxu0 0.0
        %2143 = vmatpush.msra.mxu0 0.0
        %2144 = vmatpush.msra.mxu0 0.0
        %2145 = vmatpush.msra.mxu0 0.0
        %2146 = vmatpush.msra.mxu0 0.0
        %2147 = vmatpush.msra.mxu0 0.0
        %2148 = vmatpush.msra.mxu0 0.0
        %2149 = vmatpush.msra.mxu0 0.0
        %2150 = vmatpush.msra.mxu0 %v2133
        %2151 = vmatmul.f32.gmra.mxu0 %v2129
        %v2152 = vpop.f32.mrf.mxu0
        %v2153 = vadd.f32 0.0, %v2152
        %2154 = vdwg.mxu0
        %v2155 = vld [vmem:[%s11] sm:$0xff]
        %v2156 = vld [vmem:[%s11 + $0x8] sm:$0xff]
        %v2157 = vld [vmem:[%s11 + $0x10] sm:$0xff]
        %v2158 = vld [vmem:[%s11 + $0x18] sm:$0xff]
        %v2159 = vld [vmem:[%s11 + $0x20] sm:$0xff]
        %v2160 = vld [vmem:[%s11 + $0x28] sm:$0xff]
        %v2161 = vld [vmem:[%s11 + $0x30] sm:$0xff]
        %v2162 = vld [vmem:[%s11 + $0x38] sm:$0xff]
        %v2163 = vld [vmem:[%s11 + $0x40] sm:$0xff]
        %v2164 = vld [vmem:[%s11 + $0x48] sm:$0xff]
        %vm2165 = vcmask 654336
        %v2167 = vsel %vm2165, %v2153, 0
        %2169 = vmatpush.msra.mxu0 0.0
        %2170 = vmatpush.msra.mxu0 0.0
        %2171 = vmatpush.msra.mxu0 0.0
        %2172 = vmatpush.msra.mxu0 0.0
        %2173 = vmatpush.msra.mxu0 0.0
        %2174 = vmatpush.msra.mxu0 0.0
        %2175 = vmatpush.msra.mxu0 %v2164
        %2176 = vmatpush.msra.mxu0 %v2163
        %2177 = vmatpush.msra.mxu0 %v2162
        %2178 = vmatpush.msra.mxu0 %v2161
        %2179 = vmatpush.msra.mxu0 %v2160
        %2180 = vmatpush.msra.mxu0 %v2159
        %2181 = vmatpush.msra.mxu0 %v2158
        %2182 = vmatpush.msra.mxu0 %v2157
        %2183 = vmatpush.msra.mxu0 %v2156
        %2184 = vmatpush.msra.mxu0 %v2155
        %2185 = vmatmul.f32.gmra.mxu0 %v2167
        %v2186 = vpop.f32.mrf.mxu0
        %v2187 = vadd.f32 0.0, %v2186
        %2188 = vdwg.mxu0
        %v2189 = vadd.f32 %v2125, %v2187
        %s2190 = scalar_lea.vmem %s10, 1
        %v2191 = vld [vmem:[%s2190] sm:$0x1]
        %v2193 = vsel %vm2127, %v2191, 0
        %2195 = vmatpush.msra.mxu0 0.0
        %2196 = vmatpush.msra.mxu0 0.0
        %2197 = vmatpush.msra.mxu0 0.0
        %2198 = vmatpush.msra.mxu0 0.0
        %2199 = vmatpush.msra.mxu0 0.0
        %2200 = vmatpush.msra.mxu0 0.0
        %2201 = vmatpush.msra.mxu0 0.0
        %2202 = vmatpush.msra.mxu0 0.0
        %2203 = vmatpush.msra.mxu0 0.0
        %2204 = vmatpush.msra.mxu0 0.0
        %2205 = vmatpush.msra.mxu0 0.0
        %2206 = vmatpush.msra.mxu0 0.0
        %2207 = vmatpush.msra.mxu0 0.0
        %2208 = vmatpush.msra.mxu0 0.0
        %2209 = vmatpush.msra.mxu0 0.0
        %2210 = vmatpush.msra.mxu0 %v2133
        %2211 = vmatmul.f32.gmra.mxu0 %v2193
        %v2212 = vpop.f32.mrf.mxu0
        %v2213 = vadd.f32 0.0, %v2212
        %2214 = vdwg.mxu0
        %s2215 = scalar_lea.vmem %s11, 80
        %v2216 = vld [vmem:[%s2215] sm:$0xff]
        %v2217 = vld [vmem:[%s2215 + $0x8] sm:$0xff]
        %v2218 = vld [vmem:[%s2215 + $0x10] sm:$0xff]
        %v2219 = vld [vmem:[%s2215 + $0x18] sm:$0xff]
        %v2220 = vld [vmem:[%s2215 + $0x20] sm:$0xff]
        %v2221 = vld [vmem:[%s2215 + $0x28] sm:$0xff]
        %v2222 = vld [vmem:[%s2215 + $0x30] sm:$0xff]
        %v2223 = vld [vmem:[%s2215 + $0x38] sm:$0xff]
        %v2224 = vld [vmem:[%s2215 + $0x40] sm:$0xff]
        %v2225 = vld [vmem:[%s2215 + $0x48] sm:$0xff]
        %v2227 = vsel %vm2165, %v2213, 0
        %2229 = vmatpush.msra.mxu0 0.0
        %2230 = vmatpush.msra.mxu0 0.0
        %2231 = vmatpush.msra.mxu0 0.0
        %2232 = vmatpush.msra.mxu0 0.0
        %2233 = vmatpush.msra.mxu0 0.0
        %2234 = vmatpush.msra.mxu0 0.0
        %2235 = vmatpush.msra.mxu0 %v2225
        %2236 = vmatpush.msra.mxu0 %v2224
        %2237 = vmatpush.msra.mxu0 %v2223
        %2238 = vmatpush.msra.mxu0 %v2222
        %2239 = vmatpush.msra.mxu0 %v2221
        %2240 = vmatpush.msra.mxu0 %v2220
        %2241 = vmatpush.msra.mxu0 %v2219
        %2242 = vmatpush.msra.mxu0 %v2218
        %2243 = vmatpush.msra.mxu0 %v2217
        %2244 = vmatpush.msra.mxu0 %v2216
        %2245 = vmatmul.f32.gmra.mxu0 %v2227
        %v2246 = vpop.f32.mrf.mxu0
        %v2247 = vadd.f32 0.0, %v2246
        %2248 = vdwg.mxu0
        %v2249 = vadd.f32 %v2189, %v2247
        %s2250 = scalar_lea.vmem %s10, 2
        %v2251 = vld [vmem:[%s2250] sm:$0x1]
        %v2253 = vsel %vm2127, %v2251, 0
        %2255 = vmatpush.msra.mxu0 0.0
        %2256 = vmatpush.msra.mxu0 0.0
        %2257 = vmatpush.msra.mxu0 0.0
        %2258 = vmatpush.msra.mxu0 0.0
        %2259 = vmatpush.msra.mxu0 0.0
        %2260 = vmatpush.msra.mxu0 0.0
        %2261 = vmatpush.msra.mxu0 0.0
        %2262 = vmatpush.msra.mxu0 0.0
        %2263 = vmatpush.msra.mxu0 0.0
        %2264 = vmatpush.msra.mxu0 0.0
        %2265 = vmatpush.msra.mxu0 0.0
        %2266 = vmatpush.msra.mxu0 0.0
        %2267 = vmatpush.msra.mxu0 0.0
        %2268 = vmatpush.msra.mxu0 0.0
        %2269 = vmatpush.msra.mxu0 0.0
        %2270 = vmatpush.msra.mxu0 %v2133
        %2271 = vmatmul.f32.gmra.mxu0 %v2253
        %v2272 = vpop.f32.mrf.mxu0
        %v2273 = vadd.f32 0.0, %v2272
        %2274 = vdwg.mxu0
        %s2275 = scalar_lea.vmem %s11, 160
        %v2276 = vld [vmem:[%s2275] sm:$0xff]
        %v2277 = vld [vmem:[%s2275 + $0x8] sm:$0xff]
        %v2278 = vld [vmem:[%s2275 + $0x10] sm:$0xff]
        %v2279 = vld [vmem:[%s2275 + $0x18] sm:$0xff]
        %v2280 = vld [vmem:[%s2275 + $0x20] sm:$0xff]
        %v2281 = vld [vmem:[%s2275 + $0x28] sm:$0xff]
        %v2282 = vld [vmem:[%s2275 + $0x30] sm:$0xff]
        %v2283 = vld [vmem:[%s2275 + $0x38] sm:$0xff]
        %v2284 = vld [vmem:[%s2275 + $0x40] sm:$0xff]
        %v2285 = vld [vmem:[%s2275 + $0x48] sm:$0xff]
        %v2287 = vsel %vm2165, %v2273, 0
        %2289 = vmatpush.msra.mxu0 0.0
        %2290 = vmatpush.msra.mxu0 0.0
        %2291 = vmatpush.msra.mxu0 0.0
        %2292 = vmatpush.msra.mxu0 0.0
        %2293 = vmatpush.msra.mxu0 0.0
        %2294 = vmatpush.msra.mxu0 0.0
        %2295 = vmatpush.msra.mxu0 %v2285
        %2296 = vmatpush.msra.mxu0 %v2284
        %2297 = vmatpush.msra.mxu0 %v2283
        %2298 = vmatpush.msra.mxu0 %v2282
        %2299 = vmatpush.msra.mxu0 %v2281
        %2300 = vmatpush.msra.mxu0 %v2280
        %2301 = vmatpush.msra.mxu0 %v2279
        %2302 = vmatpush.msra.mxu0 %v2278
        %2303 = vmatpush.msra.mxu0 %v2277
        %2304 = vmatpush.msra.mxu0 %v2276
        %2305 = vmatmul.f32.gmra.mxu0 %v2287
        %v2306 = vpop.f32.mrf.mxu0
        %v2307 = vadd.f32 0.0, %v2306
        %2308 = vdwg.mxu0
        %v2309 = vadd.f32 %v2249, %v2307
        %s2310 = scalar_lea.vmem %s10, 3
        %v2311 = vld [vmem:[%s2310] sm:$0x1]
        %v2313 = vsel %vm2127, %v2311, 0
        %2315 = vmatpush.msra.mxu0 0.0
        %2316 = vmatpush.msra.mxu0 0.0
        %2317 = vmatpush.msra.mxu0 0.0
        %2318 = vmatpush.msra.mxu0 0.0
        %2319 = vmatpush.msra.mxu0 0.0
        %2320 = vmatpush.msra.mxu0 0.0
        %2321 = vmatpush.msra.mxu0 0.0
        %2322 = vmatpush.msra.mxu0 0.0
        %2323 = vmatpush.msra.mxu0 0.0
        %2324 = vmatpush.msra.mxu0 0.0
        %2325 = vmatpush.msra.mxu0 0.0
        %2326 = vmatpush.msra.mxu0 0.0
        %2327 = vmatpush.msra.mxu0 0.0
        %2328 = vmatpush.msra.mxu0 0.0
        %2329 = vmatpush.msra.mxu0 0.0
        %2330 = vmatpush.msra.mxu0 %v2133
        %2331 = vmatmul.f32.gmra.mxu0 %v2313
        %v2332 = vpop.f32.mrf.mxu0
        %v2333 = vadd.f32 0.0, %v2332
        %2334 = vdwg.mxu0
        %s2335 = scalar_lea.vmem %s11, 240
        %v2336 = vld [vmem:[%s2335] sm:$0xff]
        %v2337 = vld [vmem:[%s2335 + $0x8] sm:$0xff]
        %v2338 = vld [vmem:[%s2335 + $0x10] sm:$0xff]
        %v2339 = vld [vmem:[%s2335 + $0x18] sm:$0xff]
        %v2340 = vld [vmem:[%s2335 + $0x20] sm:$0xff]
        %v2341 = vld [vmem:[%s2335 + $0x28] sm:$0xff]
        %v2342 = vld [vmem:[%s2335 + $0x30] sm:$0xff]
        %v2343 = vld [vmem:[%s2335 + $0x38] sm:$0xff]
        %v2344 = vld [vmem:[%s2335 + $0x40] sm:$0xff]
        %v2345 = vld [vmem:[%s2335 + $0x48] sm:$0xff]
        %v2347 = vsel %vm2165, %v2333, 0
        %2349 = vmatpush.msra.mxu0 0.0
        %2350 = vmatpush.msra.mxu0 0.0
        %2351 = vmatpush.msra.mxu0 0.0
        %2352 = vmatpush.msra.mxu0 0.0
        %2353 = vmatpush.msra.mxu0 0.0
        %2354 = vmatpush.msra.mxu0 0.0
        %2355 = vmatpush.msra.mxu0 %v2345
        %2356 = vmatpush.msra.mxu0 %v2344
        %2357 = vmatpush.msra.mxu0 %v2343
        %2358 = vmatpush.msra.mxu0 %v2342
        %2359 = vmatpush.msra.mxu0 %v2341
        %2360 = vmatpush.msra.mxu0 %v2340
        %2361 = vmatpush.msra.mxu0 %v2339
        %2362 = vmatpush.msra.mxu0 %v2338
        %2363 = vmatpush.msra.mxu0 %v2337
        %2364 = vmatpush.msra.mxu0 %v2336
        %2365 = vmatmul.f32.gmra.mxu0 %v2347
        %v2366 = vpop.f32.mrf.mxu0
        %v2367 = vadd.f32 0.0, %v2366
        %2368 = vdwg.mxu0
        %v2369 = vadd.f32 %v2309, %v2367
        %s2370 = scalar_lea.vmem %s10, 4
        %v2371 = vld [vmem:[%s2370] sm:$0x1]
        %v2373 = vsel %vm2127, %v2371, 0
        %2375 = vmatpush.msra.mxu0 0.0
        %2376 = vmatpush.msra.mxu0 0.0
        %2377 = vmatpush.msra.mxu0 0.0
        %2378 = vmatpush.msra.mxu0 0.0
        %2379 = vmatpush.msra.mxu0 0.0
        %2380 = vmatpush.msra.mxu0 0.0
        %2381 = vmatpush.msra.mxu0 0.0
        %2382 = vmatpush.msra.mxu0 0.0
        %2383 = vmatpush.msra.mxu0 0.0
        %2384 = vmatpush.msra.mxu0 0.0
        %2385 = vmatpush.msra.mxu0 0.0
        %2386 = vmatpush.msra.mxu0 0.0
        %2387 = vmatpush.msra.mxu0 0.0
        %2388 = vmatpush.msra.mxu0 0.0
        %2389 = vmatpush.msra.mxu0 0.0
        %2390 = vmatpush.msra.mxu0 %v2133
        %2391 = vmatmul.f32.gmra.mxu0 %v2373
        %v2392 = vpop.f32.mrf.mxu0
        %v2393 = vadd.f32 0.0, %v2392
        %2394 = vdwg.mxu0
        %s2395 = scalar_lea.vmem %s11, 320
        %v2396 = vld [vmem:[%s2395] sm:$0xff]
        %v2397 = vld [vmem:[%s2395 + $0x8] sm:$0xff]
        %v2398 = vld [vmem:[%s2395 + $0x10] sm:$0xff]
        %v2399 = vld [vmem:[%s2395 + $0x18] sm:$0xff]
        %v2400 = vld [vmem:[%s2395 + $0x20] sm:$0xff]
        %v2401 = vld [vmem:[%s2395 + $0x28] sm:$0xff]
        %v2402 = vld [vmem:[%s2395 + $0x30] sm:$0xff]
        %v2403 = vld [vmem:[%s2395 + $0x38] sm:$0xff]
        %v2404 = vld [vmem:[%s2395 + $0x40] sm:$0xff]
        %v2405 = vld [vmem:[%s2395 + $0x48] sm:$0xff]
        %v2407 = vsel %vm2165, %v2393, 0
        %2409 = vmatpush.msra.mxu0 0.0
        %2410 = vmatpush.msra.mxu0 0.0
        %2411 = vmatpush.msra.mxu0 0.0
        %2412 = vmatpush.msra.mxu0 0.0
        %2413 = vmatpush.msra.mxu0 0.0
        %2414 = vmatpush.msra.mxu0 0.0
        %2415 = vmatpush.msra.mxu0 %v2405
        %2416 = vmatpush.msra.mxu0 %v2404
        %2417 = vmatpush.msra.mxu0 %v2403
        %2418 = vmatpush.msra.mxu0 %v2402
        %2419 = vmatpush.msra.mxu0 %v2401
        %2420 = vmatpush.msra.mxu0 %v2400
        %2421 = vmatpush.msra.mxu0 %v2399
        %2422 = vmatpush.msra.mxu0 %v2398
        %2423 = vmatpush.msra.mxu0 %v2397
        %2424 = vmatpush.msra.mxu0 %v2396
        %2425 = vmatmul.f32.gmra.mxu0 %v2407
        %v2426 = vpop.f32.mrf.mxu0
        %v2427 = vadd.f32 0.0, %v2426
        %2428 = vdwg.mxu0
        %v2429 = vadd.f32 %v2369, %v2427
        %v2430 = vmax.f32 %v2429, 0.0
        %v2431 = vld [vmem:[%s13] sm:$0xff]
        %v2432 = vld [vmem:[%s13 + $0x8] sm:$0xff]
        %v2433 = vld [vmem:[%s13 + $0x10] sm:$0xff]
        %v2434 = vld [vmem:[%s13 + $0x18] sm:$0xff]
        %v2435 = vld [vmem:[%s13 + $0x20] sm:$0xff]
        %v2436 = vld [vmem:[%s13 + $0x28] sm:$0xff]
        %v2437 = vld [vmem:[%s13 + $0x30] sm:$0xff]
        %v2438 = vld [vmem:[%s13 + $0x38] sm:$0xff]
        %v2439 = vld [vmem:[%s13 + $0x40] sm:$0xff]
        %v2440 = vld [vmem:[%s13 + $0x48] sm:$0xff]
        %v2441 = vld [vmem:[%s13 + $0x50] sm:$0xff]
        %v2442 = vld [vmem:[%s13 + $0x58] sm:$0xff]
        %v2443 = vld [vmem:[%s13 + $0x60] sm:$0xf]
        %v2444 = vld [vmem:[%s14] sm:$0x1]
        %vm2445 = vcmask 818176
        %v2447 = vsel %vm2445, %v2430, 0
        %v2450 = vsel %vm1272, %v2443, 0
        %2452 = vmatpush.msra.mxu0 0.0
        %2453 = vmatpush.msra.mxu0 0.0
        %2454 = vmatpush.msra.mxu0 0.0
        %2455 = vmatpush.msra.mxu0 %v2450
        %2456 = vmatpush.msra.mxu0 %v2442
        %2457 = vmatpush.msra.mxu0 %v2441
        %2458 = vmatpush.msra.mxu0 %v2440
        %2459 = vmatpush.msra.mxu0 %v2439
        %2460 = vmatpush.msra.mxu0 %v2438
        %2461 = vmatpush.msra.mxu0 %v2437
        %2462 = vmatpush.msra.mxu0 %v2436
        %2463 = vmatpush.msra.mxu0 %v2435
        %2464 = vmatpush.msra.mxu0 %v2434
        %2465 = vmatpush.msra.mxu0 %v2433
        %2466 = vmatpush.msra.mxu0 %v2432
        %2467 = vmatpush.msra.mxu0 %v2431
        %2468 = vmatmul.f32.gmra.mxu0 %v2447
        %v2469 = vpop.f32.mrf.mxu0
        %v2470 = vadd.f32 %v2444, %v2469
        %2471 = vdwg.mxu0
        %v2472 = vmax.f32 %v2470, 0.0
        %v2473 = vld [vmem:[%s15] sm:$0xff]
        %v2474 = vld [vmem:[%s15 + $0x8] sm:$0xff]
        %v2475 = vld [vmem:[%s15 + $0x10] sm:$0xff]
        %v2476 = vld [vmem:[%s15 + $0x18] sm:$0xff]
        %v2477 = vld [vmem:[%s15 + $0x20] sm:$0xff]
        %v2478 = vld [vmem:[%s15 + $0x28] sm:$0xff]
        %v2479 = vld [vmem:[%s15 + $0x30] sm:$0x3]
        %v2480 = vld [vmem:[%s16] sm:$0x1]
        %vm2481 = vcmask 408576
        %v2483 = vsel %vm2481, %v2472, 0
        %v2486 = vsel %vm2075, %v2479, 0
        %2488 = vmatpush.msra.mxu0 0.0
        %2489 = vmatpush.msra.mxu0 0.0
        %2490 = vmatpush.msra.mxu0 0.0
        %2491 = vmatpush.msra.mxu0 0.0
        %2492 = vmatpush.msra.mxu0 0.0
        %2493 = vmatpush.msra.mxu0 0.0
        %2494 = vmatpush.msra.mxu0 0.0
        %2495 = vmatpush.msra.mxu0 0.0
        %2496 = vmatpush.msra.mxu0 0.0
        %2497 = vmatpush.msra.mxu0 %v2486
        %2498 = vmatpush.msra.mxu0 %v2478
        %2499 = vmatpush.msra.mxu0 %v2477
        %2500 = vmatpush.msra.mxu0 %v2476
        %2501 = vmatpush.msra.mxu0 %v2475
        %2502 = vmatpush.msra.mxu0 %v2474
        %2503 = vmatpush.msra.mxu0 %v2473
        %2504 = vmatmul.f32.gmra.mxu0 %v2483
        %v2505 = vpop.f32.mrf.mxu0
        %v2506 = vadd.f32 %v2480, %v2505
        %2507 = vdwg.mxu0
        %vm2508 = vcmask 73728
        %2509 = vst.msk [vmem:[%s540] sm:$0x1] %vm2508, %v2506
        %s2510 = sand.u32 %s401, 1
        %s2511 = scalar_lea.sflag [#allocation3], %s2510
        %s2512 = sand.u32 %s401, 1
        %s2513 = scalar_lea.vmem [#allocation2], %s2512
        // Predicated region
        $region89: #{cnn_forward.1} parent=87 // pred_check
          %p2514 = pneg %p411
        $region90: #{cnn_forward.1} parent=87 // pred_check_branch
          %2516 = sbr.rel (%p2514) target = $region92
        $region91: #{cnn_forward.1} parent=87 // pred_region
          %2518 = vsyncadd %s2511, 0
          %s2519 = scalar_lea.hbm %s17, %s31
          %s2521 = sshll.u32 %s2513, 4
          %s2522 = int_to_ptr.vmem [resolvable:$true] %s2521
          %s2523 = sshll.u32 %s2519, 4
          %s2524 = int_to_ptr.hbm [resolvable:$true] %s2523
          %2526 = dma.vmem_to_hbm [thread:$0]  %s2522, 16, %s2524, %s2511
        $region92: #{cnn_forward.1} parent=87 // pred_fallthru
          _
      $region88: #{cnn_forward.1} parent=5 // pred_fallthru
        _
      %p2527 = scmp.le.s32.totalorder 2, %s26
      // Predicated region
      $region93: #{cnn_forward.1} parent=5 // pred_check
        %p2528 = pneg %p2527
      $region94: #{cnn_forward.1} parent=5 // pred_check_branch
        %2530 = sbr.rel (%p2528) target = $region96
      $region95: #{cnn_forward.1} parent=5 // pred_region
        %s2531 = ssub.s32 %s26, 2
        // Predicated region
        $region97: #{cnn_forward.1} parent=95 // pred_check
          %p2532 = pneg %p417
        $region98: #{cnn_forward.1} parent=95 // pred_check_branch
          %2534 = sbr.rel (%p2532) target = $region100
        $region99: #{cnn_forward.1} parent=95 // pred_region
          %s2535 = sand.u32 %s402, 1
          %s2536 = scalar_lea.sflag [#allocation3], %s2535
          %s2537 = sand.u32 %s402, 1
          %s2538 = scalar_lea.vmem [#allocation2], %s2537
          %2540 = dma.done %s2536, 16
        $region100: #{cnn_forward.1} parent=95 // pred_fallthru
          _
      $region96: #{cnn_forward.1} parent=5 // pred_fallthru
        _
    $region6: #{cnn_forward.1} parent=1 // loop_footer
      %s30 = sadd.s32 1, %s26
    $region7: #{cnn_forward.1} parent=1 // loop_footer_branch
      %25 = sbr.rel target = $region3
    $region8: #{cnn_forward.1} parent=1 // loop_exit
      _
    %2541 = vsyncpa [#allocation3], 1
    %s2542 = scalar_lea.sflag [#allocation3], 1
    %2543 = vsyncpa %s2542, 1

</llo_original>
